<compile_context>
chip_gen: v5e
topology: v5e:2x2
jax: 0.10.0
libtpu: 0.0.40
codegen_flags: <defaults>
</compile_context>

<pallas_src>
import functools

import numpy as np
import jax
import jax.numpy as jnp
from jax import lax
from jax.experimental import pallas as pl
from jax.experimental.pallas import tpu as pltpu


# ---------------------------------------------------------------------------
# Fused 3x3 conv (+bias+ReLU, optional fused normalize, optional 2x2 maxpool)
# ---------------------------------------------------------------------------

def _make_conv_kernel(TH, W, Cin, Cout, do_norm, fuse_pool, out_dtype):
    Wo = W // 2

    def kernel(*refs):
        if do_norm:
            top_ref, mid_ref, bot_ref, w_ref, b_ref, scale_ref, shift_ref = refs[:7]
            rest = refs[7:]
        else:
            top_ref, mid_ref, bot_ref, w_ref, b_ref = refs[:5]
            rest = refs[5:]
        if fuse_pool:
            o_ref, pool_ref = rest
        else:
            (o_ref,) = rest

        i = pl.program_id(1)
        ng = pl.num_programs(1)

        xt = top_ref[0, 0]          # (W, Cin)  halo row above the tile (clamped)
        xm = mid_ref[0]             # (TH, W, Cin)
        xb = bot_ref[0, 0]          # (W, Cin)  halo row below the tile (clamped)

        if do_norm:                 # conv1: (x*0.5 - mean)/std fused prologue
            sc = scale_ref[0]
            sh = shift_ref[0]
            xt = xt * sc + sh
            xm = xm * sc + sh
            xb = xb * sc + sh

        # zero halo rows that fall outside the image (SAME zero padding in H)
        xt = xt * (i > 0).astype(xt.dtype)
        xb = xb * (i < ng - 1).astype(xb.dtype)

        x = jnp.concatenate([xt[None], xm, xb[None]], axis=0)   # (TH+2, W, Cin)
        x = x.astype(jnp.bfloat16)

        # merged-dx window: win[., w, :] = [x[., w-1, :], x[., w, :], x[., w+1, :]]
        # (zero columns at the W edges implement SAME padding in W)
        zcol = jnp.zeros((TH + 2, 1, Cin), jnp.bfloat16)
        xl = jnp.concatenate([zcol, x[:, :W - 1, :]], axis=1)
        xr = jnp.concatenate([x[:, 1:, :], zcol], axis=1)
        win = jnp.concatenate([xl, x, xr], axis=-1)              # (TH+2, W, 3*Cin)

        # three fat matmuls (one per dy), K = 3*Cin, f32 accumulation
        acc = jnp.zeros((TH * W, Cout), jnp.float32)
        for dy in range(3):
            lhs = win[dy:dy + TH].reshape(TH * W, 3 * Cin)
            acc = acc + jnp.dot(lhs, w_ref[dy],
                                preferred_element_type=jnp.float32)

        acc = jnp.maximum(acc + b_ref[0], 0.0)                   # bias + ReLU (f32)

        if fuse_pool:
            # 2x2 / stride-2 maxpool fused into the epilogue.
            y = acc.reshape(TH // 2, 2, W, Cout)
            pool_ref[...] = jnp.maximum(y[:, 0], y[:, 1])        # pool along H
            even = pool_ref[:, pl.ds(0, Wo, 2), :]               # pool along W
            odd = pool_ref[:, pl.ds(1, Wo, 2), :]
            o_ref[0] = jnp.maximum(even, odd).astype(out_dtype)
        else:
            o_ref[0] = acc.reshape(TH, W, Cout).astype(out_dtype)

    return kernel


def _pick_tile_rows(H, W, Cin, Cout, need_even, budget_bytes=4 << 20):
    """Largest divisor of H whose per-step VMEM footprint fits the budget."""
    per_row = W * (2 * 2 * Cin        # bf16 input tile, double buffered
                   + 3 * 3 * 2 * Cin  # shifted copies + merged (.,W,3Cin) window
                   + 4 * Cout         # f32 accumulator
                   + 2 * 2 * Cout)    # bf16 output tile, double buffered
    cap = max(1, budget_bytes // per_row)
    best = None
    for th in range(1, H + 1):
        if H % th:
            continue
        if need_even and th % 2:
            continue
        if th <= cap:
            best = th
    if best is None:
        best = 2 if need_even else 1
    return best


def conv3x3_relu(x, wk, b, *, normalize=None, fuse_pool=False,
                 out_dtype=jnp.bfloat16, tile_rows=None):
    """3x3 conv (stride 1, SAME zero padding) + bias + ReLU.

    x:  (N, H, W, Cin)    activations (f32 for conv1, bf16 afterwards)
    wk: (3, 3*Cin, Cout)  bf16, wk[dy, dx*Cin + ci, co] = w_torch[co, ci, dy, dx]
    b:  (Cout,)           f32
    normalize: optional (scale, shift), each (Cin,), fused into the prologue
    fuse_pool: fuse a trailing 2x2 / stride-2 maxpool into the epilogue
    """
    N, H, W, Cin = x.shape
    Cout = wk.shape[-1]
    if fuse_pool:
        assert H % 2 == 0 and W % 2 == 0, (H, W)
    TH = tile_rows if tile_rows is not None else _pick_tile_rows(
        H, W, Cin, Cout, need_even=fuse_pool)
    assert H % TH == 0 and (not fuse_pool or TH % 2 == 0), (H, TH)
    G = H // TH
    Ho, Wo = (TH // 2, W // 2) if fuse_pool else (TH, W)
    out_h, out_w = (H // 2, W // 2) if fuse_pool else (H, W)

    kernel = _make_conv_kernel(TH, W, Cin, Cout, normalize is not None,
                               fuse_pool, out_dtype)

    in_specs = [
        # halo row above the tile (clamped to row 0; zeroed in-kernel at i==0)
        pl.BlockSpec((1, 1, W, Cin),
                     lambda n, i: (n, jnp.maximum(i * TH - 1, 0), 0, 0)),
        # the TH body rows of the tile
        pl.BlockSpec((1, TH, W, Cin), lambda n, i: (n, i, 0, 0)),
        # halo row below the tile (clamped to H-1; zeroed in-kernel at i==G-1)
        pl.BlockSpec((1, 1, W, Cin),
                     lambda n, i: (n, jnp.minimum(i * TH + TH, H - 1), 0, 0)),
        pl.BlockSpec((3, 3 * Cin, Cout), lambda n, i: (0, 0, 0)),
        pl.BlockSpec((1, Cout), lambda n, i: (0, 0)),
    ]
    args = [x, x, x, wk, b.reshape(1, Cout)]
    if normalize is not None:
        scale, shift = normalize
        in_specs += [pl.BlockSpec((1, Cin), lambda n, i: (0, 0)),
                     pl.BlockSpec((1, Cin), lambda n, i: (0, 0))]
        args += [scale.reshape(1, Cin).astype(jnp.float32),
                 shift.reshape(1, Cin).astype(jnp.float32)]

    scratch_shapes = ([pltpu.VMEM((TH // 2, W, Cout), jnp.float32)]
                      if fuse_pool else [])

    return pl.pallas_call(
        kernel,
        out_shape=jax.ShapeDtypeStruct((N, out_h, out_w, Cout), out_dtype),
        grid=(N, G),
        in_specs=in_specs,
        out_specs=pl.BlockSpec((1, Ho, Wo, Cout), lambda n, i: (n, i, 0, 0)),
        scratch_shapes=scratch_shapes,
        compiler_params=pltpu.CompilerParams(
            dimension_semantics=("parallel", "parallel"),
            vmem_limit_bytes=32 * 1024 * 1024),
    )(*args)


# ---------------------------------------------------------------------------
# Parameters (deterministic synthetic init — no checkpoint load)
# ---------------------------------------------------------------------------

def init_params(key):
    # TODO(synk): real NetF loads pretrained VGG16 weights from disk; here we
    # init deterministically with the same shapes (kaiming-normal-ish).
    cfgs = [(3, 64), (64, 64), (64, 128), (128, 128)]
    params = []
    for li, (cin, cout) in enumerate(cfgs):
        kw, kb = jax.random.split(jax.random.fold_in(key, li))
        std = np.sqrt(2.0 / (cin * 9))
        w = jax.random.normal(kw, (cout, cin, 3, 3), jnp.float32) * std  # OIHW
        b = jax.random.normal(kb, (cout,), jnp.float32) * 0.01
        # kernel layout: wk[dy, dx*Cin + ci, co] = w[co, ci, dy, dx]
        wk = jnp.transpose(w, (2, 3, 1, 0)).reshape(3, 3 * cin, cout)
        params.append((w, wk.astype(jnp.bfloat16), b))
    return params


def netf_forward(images_nchw, params, scale, shift, tile_rows=None):
    """Pallas forward. images_nchw: (N, 3, H, W) f32 (PyTorch interface)."""
    x = jnp.transpose(images_nchw, (0, 2, 3, 1))                          # NHWC
    x = conv3x3_relu(x, params[0][1], params[0][2],
                     normalize=(scale, shift), tile_rows=tile_rows)       # 3   -> 64
    x = conv3x3_relu(x, params[1][1], params[1][2],
                     fuse_pool=True, tile_rows=tile_rows)                 # 64  -> 64, /2
    x = conv3x3_relu(x, params[2][1], params[2][2], tile_rows=tile_rows)  # 64  -> 128
    x = conv3x3_relu(x, params[3][1], params[3][2],
                     out_dtype=jnp.float32, tile_rows=tile_rows)          # 128 -> 128
    return jnp.transpose(x, (0, 3, 1, 2))                                 # NCHW


# ---------------------------------------------------------------------------
# Pure-JAX reference (same bf16-storage / f32-accumulate policy)
# ---------------------------------------------------------------------------

def _conv_ref(x, w_oihw, b):
    y = lax.conv_general_dilated(
        x.astype(jnp.bfloat16), w_oihw.astype(jnp.bfloat16), (1, 1), 'SAME',
        dimension_numbers=('NHWC', 'OIHW', 'NHWC'),
        preferred_element_type=jnp.float32)
    return jnp.maximum(y + b.reshape(1, 1, 1, -1), 0.0)


def netf_ref(images_nchw, params, scale, shift):
    x = jnp.transpose(images_nchw, (0, 2, 3, 1))
    x = x * scale.reshape(1, 1, 1, 3) + shift.reshape(1, 1, 1, 3)
    x = _conv_ref(x, params[0][0], params[0][2])
    x = _conv_ref(x, params[1][0], params[1][2])
    N, H, W, C = x.shape
    x = x.reshape(N, H // 2, 2, W // 2, 2, C).max(axis=(2, 4))
    x = _conv_ref(x, params[2][0], params[2][2])
    x = _conv_ref(x, params[3][0], params[3][2])
    return jnp.transpose(x, (0, 3, 1, 2))


# ---------------------------------------------------------------------------

if __name__ == "__main__":
    key = jax.random.PRNGKey(0)
    k_img, k_par = jax.random.split(key)

    # small shapes consistent with the module: NCHW, 3 input channels
    N, C, H, W = 2, 3, 16, 16
    images = jax.random.uniform(k_img, (N, C, H, W), jnp.float32)  # "images"

    params = init_params(k_par)

    # registered buffers: mean / std; forward is (x*0.5 - mean)/std
    mean = jnp.array([0.485 - 0.5, 0.456 - 0.5, 0.406 - 0.5], jnp.float32)
    std = jnp.array([0.229, 0.224, 0.225], jnp.float32)
    scale = 0.5 / std
    shift = -mean / std

    ref = jax.block_until_ready(netf_ref(images, params, scale, shift))

    # 1) auto-chosen tile sizes (single H-tile per image at this resolution)
    out = jax.block_until_ready(jax.jit(netf_forward)(images, params, scale, shift))
    assert out.shape == (N, 128, H // 2, W // 2), out.shape
    np.testing.assert_allclose(np.asarray(out).astype(np.float32),
                               np.asarray(ref).astype(np.float32),
                               rtol=1e-2, atol=1e-2)

    # 2) forced small tiles so the H-halo path (multiple row tiles) is exercised
    out_tiled = jax.block_until_ready(
        jax.jit(functools.partial(netf_forward, tile_rows=4))(
            images, params, scale, shift))
    np.testing.assert_allclose(np.asarray(out_tiled).astype(np.float32),
                               np.asarray(ref).astype(np.float32),
                               rtol=1e-2, atol=1e-2)

    print("KERNEL_OK")
</pallas_src>

<mosaic_0001>
module attributes {stable_mosaic.version = 11 : i64} {
  func.func @kernel(%arg0: i32, %arg1: i32, %arg2: memref<1x1x16x3xf32, #tpu.memory_space<vmem>>, %arg3: memref<1x16x16x3xf32, #tpu.memory_space<vmem>>, %arg4: memref<1x1x16x3xf32, #tpu.memory_space<vmem>>, %arg5: memref<3x9x64xbf16, #tpu.memory_space<vmem>>, %arg6: memref<1x64xf32, #tpu.memory_space<vmem>>, %arg7: memref<1x3xf32, #tpu.memory_space<vmem>>, %arg8: memref<1x3xf32, #tpu.memory_space<vmem>>, %arg9: memref<1x16x16x64xbf16, #tpu.memory_space<vmem>>) attributes {dimension_semantics = [#tpu.dimension_semantics<parallel>, #tpu.dimension_semantics<parallel>], iteration_bounds = array<i64: 2, 1>, scalar_prefetch = 0 : i64, scratch_operands = 0 : i64, tpu.core_type = #tpu.core_type<tc>, window_params = [{transform_indices = @transform_0, window_bounds = array<i64: 1, 1, 16, 3>}, {transform_indices = @transform_1, window_bounds = array<i64: 1, 16, 16, 3>}, {transform_indices = @transform_2, window_bounds = array<i64: 1, 1, 16, 3>}, {pipeline_mode = #tpu.pipeline_mode<synchronous>, transform_indices = @transform_3, window_bounds = array<i64: 3, 9, 64>}, {pipeline_mode = #tpu.pipeline_mode<synchronous>, transform_indices = @transform_4, window_bounds = array<i64: 1, 64>}, {pipeline_mode = #tpu.pipeline_mode<synchronous>, transform_indices = @transform_5, window_bounds = array<i64: 1, 3>}, {pipeline_mode = #tpu.pipeline_mode<synchronous>, transform_indices = @transform_6, window_bounds = array<i64: 1, 3>}, {transform_indices = @transform_7, window_bounds = array<i64: 1, 16, 16, 64>}]} {
    %c0 = arith.constant 0 : index
    %c0_0 = arith.constant 0 : index
    %c0_1 = arith.constant 0 : index
    %c0_2 = arith.constant 0 : index
    %0 = vector.load %arg2[%c0, %c0_0, %c0_1, %c0_2] : memref<1x1x16x3xf32, #tpu.memory_space<vmem>>, vector<1x1x16x3xf32>
    %1 = vector.shape_cast %0 : vector<1x1x16x3xf32> to vector<16x3xf32>
    %c0_3 = arith.constant 0 : index
    %c0_4 = arith.constant 0 : index
    %c0_5 = arith.constant 0 : index
    %c0_6 = arith.constant 0 : index
    %2 = vector.load %arg3[%c0_3, %c0_4, %c0_5, %c0_6] : memref<1x16x16x3xf32, #tpu.memory_space<vmem>>, vector<1x16x16x3xf32>
    %3 = vector.shape_cast %2 : vector<1x16x16x3xf32> to vector<16x16x3xf32>
    %c0_7 = arith.constant 0 : index
    %c0_8 = arith.constant 0 : index
    %c0_9 = arith.constant 0 : index
    %c0_10 = arith.constant 0 : index
    %4 = vector.load %arg4[%c0_7, %c0_8, %c0_9, %c0_10] : memref<1x1x16x3xf32, #tpu.memory_space<vmem>>, vector<1x1x16x3xf32>
    %5 = vector.shape_cast %4 : vector<1x1x16x3xf32> to vector<16x3xf32>
    %c0_11 = arith.constant 0 : index
    %c0_12 = arith.constant 0 : index
    %6 = vector.load %arg7[%c0_11, %c0_12] : memref<1x3xf32, #tpu.memory_space<vmem>>, vector<1x3xf32>
    %7 = vector.shape_cast %6 : vector<1x3xf32> to vector<3xf32>
    %c0_13 = arith.constant 0 : index
    %c0_14 = arith.constant 0 : index
    %8 = vector.load %arg8[%c0_13, %c0_14] : memref<1x3xf32, #tpu.memory_space<vmem>>, vector<1x3xf32>
    %9 = vector.shape_cast %8 : vector<1x3xf32> to vector<3xf32>
    %10 = vector.shape_cast %7 : vector<3xf32> to vector<1x3xf32>
    %11 = vector.broadcast %10 : vector<1x3xf32> to vector<16x3xf32>
    %12 = arith.mulf %1, %11 : vector<16x3xf32>
    %13 = vector.shape_cast %9 : vector<3xf32> to vector<1x3xf32>
    %14 = vector.broadcast %13 : vector<1x3xf32> to vector<16x3xf32>
    %15 = arith.addf %12, %14 : vector<16x3xf32>
    %16 = vector.shape_cast %7 : vector<3xf32> to vector<1x1x3xf32>
    %17 = vector.broadcast %16 : vector<1x1x3xf32> to vector<16x16x3xf32>
    %18 = arith.mulf %3, %17 : vector<16x16x3xf32>
    %19 = vector.shape_cast %9 : vector<3xf32> to vector<1x1x3xf32>
    %20 = vector.broadcast %19 : vector<1x1x3xf32> to vector<16x16x3xf32>
    %21 = arith.addf %18, %20 : vector<16x16x3xf32>
    %22 = vector.shape_cast %7 : vector<3xf32> to vector<1x3xf32>
    %23 = vector.broadcast %22 : vector<1x3xf32> to vector<16x3xf32>
    %24 = arith.mulf %5, %23 : vector<16x3xf32>
    %25 = vector.shape_cast %9 : vector<3xf32> to vector<1x3xf32>
    %26 = vector.broadcast %25 : vector<1x3xf32> to vector<16x3xf32>
    %27 = arith.addf %24, %26 : vector<16x3xf32>
    %c0_i32 = arith.constant 0 : i32
    %28 = arith.cmpi sgt, %arg1, %c0_i32 : i32
    %29 = arith.extui %28 : i1 to i32
    %30 = arith.sitofp %29 : i32 to f32
    %31 = vector.broadcast %30 : f32 to vector<16x3xf32>
    %32 = arith.mulf %15, %31 : vector<16x3xf32>
    %c0_i32_15 = arith.constant 0 : i32
    %33 = arith.cmpi slt, %arg1, %c0_i32_15 : i32
    %34 = arith.extui %33 : i1 to i32
    %35 = arith.sitofp %34 : i32 to f32
    %36 = vector.broadcast %35 : f32 to vector<16x3xf32>
    %37 = arith.mulf %27, %36 : vector<16x3xf32>
    %38 = vector.shape_cast %32 : vector<16x3xf32> to vector<1x16x3xf32>
    %39 = vector.shape_cast %37 : vector<16x3xf32> to vector<1x16x3xf32>
    %40 = tpu.concatenate %38, %21, %39 in 0 : vector<1x16x3xf32>, vector<16x16x3xf32>, vector<1x16x3xf32> -> vector<18x16x3xf32>
    %41 = arith.truncf %40 : vector<18x16x3xf32> to vector<18x16x3xbf16>
    %cst = arith.constant 0.000000e+00 : bf16
    %42 = vector.broadcast %cst : bf16 to vector<18x1x3xbf16>
    %43 = vector.extract_strided_slice %41 {offsets = [0, 0, 0], sizes = [18, 15, 3], strides = [1, 1, 1]} : vector<18x16x3xbf16> to vector<18x15x3xbf16>
    %44 = tpu.concatenate %42, %43 in 1 : vector<18x1x3xbf16>, vector<18x15x3xbf16> -> vector<18x16x3xbf16>
    %45 = vector.extract_strided_slice %41 {offsets = [0, 1, 0], sizes = [18, 15, 3], strides = [1, 1, 1]} : vector<18x16x3xbf16> to vector<18x15x3xbf16>
    %46 = tpu.concatenate %45, %42 in 1 : vector<18x15x3xbf16>, vector<18x1x3xbf16> -> vector<18x16x3xbf16>
    %47 = tpu.concatenate %44, %41, %46 in 2 : vector<18x16x3xbf16>, vector<18x16x3xbf16>, vector<18x16x3xbf16> -> vector<18x16x9xbf16>
    %cst_16 = arith.constant 0.000000e+00 : f32
    %48 = vector.broadcast %cst_16 : f32 to vector<256x64xf32>
    %49 = vector.extract_strided_slice %47 {offsets = [0, 0, 0], sizes = [16, 16, 9], strides = [1, 1, 1]} : vector<18x16x9xbf16> to vector<16x16x9xbf16>
    %50 = vector.shape_cast %49 : vector<16x16x9xbf16> to vector<256x9xbf16>
    %c0_17 = arith.constant 0 : index
    %c0_18 = arith.constant 0 : index
    %c0_19 = arith.constant 0 : index
    %51 = vector.load %arg5[%c0_17, %c0_18, %c0_19] : memref<3x9x64xbf16, #tpu.memory_space<vmem>>, vector<1x9x64xbf16>
    %52 = vector.shape_cast %51 : vector<1x9x64xbf16> to vector<9x64xbf16>
    %cst_20 = arith.constant dense<0.000000e+00> : vector<256x64xf32>
    %53 = tpu.matmul %50, %52, %cst_20 {dimension_numbers = #tpu.dot_dimension_numbers<[1], [0], [0], [1], [0, 0, 1, 1], [], []>} : vector<256x9xbf16>, vector<9x64xbf16>, vector<256x64xf32> -> vector<256x64xf32>
    %54 = arith.addf %48, %53 : vector<256x64xf32>
    %55 = vector.extract_strided_slice %47 {offsets = [1, 0, 0], sizes = [16, 16, 9], strides = [1, 1, 1]} : vector<18x16x9xbf16> to vector<16x16x9xbf16>
    %56 = vector.shape_cast %55 : vector<16x16x9xbf16> to vector<256x9xbf16>
    %c1 = arith.constant 1 : index
    %c0_21 = arith.constant 0 : index
    %c0_22 = arith.constant 0 : index
    %57 = vector.load %arg5[%c1, %c0_21, %c0_22] : memref<3x9x64xbf16, #tpu.memory_space<vmem>>, vector<1x9x64xbf16>
    %58 = vector.shape_cast %57 : vector<1x9x64xbf16> to vector<9x64xbf16>
    %cst_23 = arith.constant dense<0.000000e+00> : vector<256x64xf32>
    %59 = tpu.matmul %56, %58, %cst_23 {dimension_numbers = #tpu.dot_dimension_numbers<[1], [0], [0], [1], [0, 0, 1, 1], [], []>} : vector<256x9xbf16>, vector<9x64xbf16>, vector<256x64xf32> -> vector<256x64xf32>
    %60 = arith.addf %54, %59 : vector<256x64xf32>
    %61 = vector.extract_strided_slice %47 {offsets = [2, 0, 0], sizes = [16, 16, 9], strides = [1, 1, 1]} : vector<18x16x9xbf16> to vector<16x16x9xbf16>
    %62 = vector.shape_cast %61 : vector<16x16x9xbf16> to vector<256x9xbf16>
    %c2 = arith.constant 2 : index
    %c0_24 = arith.constant 0 : index
    %c0_25 = arith.constant 0 : index
    %63 = vector.load %arg5[%c2, %c0_24, %c0_25] : memref<3x9x64xbf16, #tpu.memory_space<vmem>>, vector<1x9x64xbf16>
    %64 = vector.shape_cast %63 : vector<1x9x64xbf16> to vector<9x64xbf16>
    %cst_26 = arith.constant dense<0.000000e+00> : vector<256x64xf32>
    %65 = tpu.matmul %62, %64, %cst_26 {dimension_numbers = #tpu.dot_dimension_numbers<[1], [0], [0], [1], [0, 0, 1, 1], [], []>} : vector<256x9xbf16>, vector<9x64xbf16>, vector<256x64xf32> -> vector<256x64xf32>
    %66 = arith.addf %60, %65 : vector<256x64xf32>
    %c0_27 = arith.constant 0 : index
    %c0_28 = arith.constant 0 : index
    %67 = vector.load %arg6[%c0_27, %c0_28] : memref<1x64xf32, #tpu.memory_space<vmem>>, vector<1x64xf32>
    %68 = vector.shape_cast %67 : vector<1x64xf32> to vector<64xf32>
    %69 = vector.shape_cast %68 : vector<64xf32> to vector<1x64xf32>
    %70 = vector.broadcast %69 : vector<1x64xf32> to vector<256x64xf32>
    %71 = arith.addf %66, %70 : vector<256x64xf32>
    %cst_29 = arith.constant 0.000000e+00 : f32
    %72 = vector.broadcast %cst_29 : f32 to vector<256x64xf32>
    %73 = arith.maximumf %71, %72 : vector<256x64xf32>
    %74 = vector.shape_cast %73 : vector<256x64xf32> to vector<16x16x64xf32>
    %75 = arith.truncf %74 : vector<16x16x64xf32> to vector<16x16x64xbf16>
    %c0_30 = arith.constant 0 : index
    %c0_31 = arith.constant 0 : index
    %c0_32 = arith.constant 0 : index
    %c0_33 = arith.constant 0 : index
    %76 = vector.load %arg9[%c0_30, %c0_31, %c0_32, %c0_33] : memref<1x16x16x64xbf16, #tpu.memory_space<vmem>>, vector<1x16x16x64xbf16>
    %77 = vector.shape_cast %76 : vector<1x16x16x64xbf16> to vector<16x16x64xbf16>
    %78 = vector.shape_cast %75 : vector<16x16x64xbf16> to vector<1x16x16x64xbf16>
    tpu.vector_store %arg9[%c0_30, %c0_31, %c0_32, %c0_33], %78 {strides = array<i32>} : memref<1x16x16x64xbf16, #tpu.memory_space<vmem>>, vector<1x16x16x64xbf16>,
    return
  }
  func.func @transform_0(%arg0: i32, %arg1: i32) -> (i32, i32, i32, i32) {
    %c16_i32 = arith.constant 16 : i32
    %0 = arith.muli %arg1, %c16_i32 : i32
    %c1_i32 = arith.constant 1 : i32
    %1 = arith.subi %0, %c1_i32 : i32
    %c0_i32 = arith.constant 0 : i32
    %2 = arith.maxsi %1, %c0_i32 : i32
    %c0_i32_0 = arith.constant 0 : i32
    %c0_i32_1 = arith.constant 0 : i32
    %c0_i32_2 = arith.constant 0 : i32
    return %arg0, %2, %c0_i32_0, %c0_i32_1 : i32, i32, i32, i32
  }
  func.func @transform_1(%arg0: i32, %arg1: i32) -> (i32, i32, i32, i32) {
    %c0_i32 = arith.constant 0 : i32
    %c0_i32_0 = arith.constant 0 : i32
    %c0_i32_1 = arith.constant 0 : i32
    return %arg0, %arg1, %c0_i32, %c0_i32_0 : i32, i32, i32, i32
  }
  func.func @transform_2(%arg0: i32, %arg1: i32) -> (i32, i32, i32, i32) {
    %c16_i32 = arith.constant 16 : i32
    %0 = arith.muli %arg1, %c16_i32 : i32
    %c16_i32_0 = arith.constant 16 : i32
    %1 = arith.addi %0, %c16_i32_0 : i32
    %c15_i32 = arith.constant 15 : i32
    %2 = arith.minsi %1, %c15_i32 : i32
    %c0_i32 = arith.constant 0 : i32
    %c0_i32_1 = arith.constant 0 : i32
    %c0_i32_2 = arith.constant 0 : i32
    return %arg0, %2, %c0_i32, %c0_i32_1 : i32, i32, i32, i32
  }
  func.func @transform_3(%arg0: i32, %arg1: i32) -> (i32, i32, i32) {
    %c0_i32 = arith.constant 0 : i32
    %c0_i32_0 = arith.constant 0 : i32
    %c0_i32_1 = arith.constant 0 : i32
    %c0_i32_2 = arith.constant 0 : i32
    return %c0_i32, %c0_i32_0, %c0_i32_1 : i32, i32, i32
  }
  func.func @transform_4(%arg0: i32, %arg1: i32) -> (i32, i32) {
    %c0_i32 = arith.constant 0 : i32
    %c0_i32_0 = arith.constant 0 : i32
    %c0_i32_1 = arith.constant 0 : i32
    return %c0_i32, %c0_i32_0 : i32, i32
  }
  func.func @transform_5(%arg0: i32, %arg1: i32) -> (i32, i32) {
    %c0_i32 = arith.constant 0 : i32
    %c0_i32_0 = arith.constant 0 : i32
    %c0_i32_1 = arith.constant 0 : i32
    return %c0_i32, %c0_i32_0 : i32, i32
  }
  func.func @transform_6(%arg0: i32, %arg1: i32) -> (i32, i32) {
    %c0_i32 = arith.constant 0 : i32
    %c0_i32_0 = arith.constant 0 : i32
    %c0_i32_1 = arith.constant 0 : i32
    return %c0_i32, %c0_i32_0 : i32, i32
  }
  func.func @transform_7(%arg0: i32, %arg1: i32) -> (i32, i32, i32, i32) {
    %c0_i32 = arith.constant 0 : i32
    %c0_i32_0 = arith.constant 0 : i32
    %c0_i32_1 = arith.constant 0 : i32
    return %arg0, %arg1, %c0_i32, %c0_i32_0 : i32, i32, i32, i32
  }
}

module attributes {stable_mosaic.version = 11 : i64} {
  func.func @kernel(%arg0: i32, %arg1: i32, %arg2: memref<1x1x8x64xbf16, #tpu.memory_space<vmem>>, %arg3: memref<1x8x8x64xbf16, #tpu.memory_space<vmem>>, %arg4: memref<1x1x8x64xbf16, #tpu.memory_space<vmem>>, %arg5: memref<3x192x128xbf16, #tpu.memory_space<vmem>>, %arg6: memref<1x128xf32, #tpu.memory_space<vmem>>, %arg7: memref<1x8x8x128xbf16, #tpu.memory_space<vmem>>) attributes {dimension_semantics = [#tpu.dimension_semantics<parallel>, #tpu.dimension_semantics<parallel>], iteration_bounds = array<i64: 2, 1>, scalar_prefetch = 0 : i64, scratch_operands = 0 : i64, tpu.core_type = #tpu.core_type<tc>, window_params = [{transform_indices = @transform_0, window_bounds = array<i64: 1, 1, 8, 64>}, {transform_indices = @transform_1, window_bounds = array<i64: 1, 8, 8, 64>}, {transform_indices = @transform_2, window_bounds = array<i64: 1, 1, 8, 64>}, {pipeline_mode = #tpu.pipeline_mode<synchronous>, transform_indices = @transform_3, window_bounds = array<i64: 3, 192, 128>}, {pipeline_mode = #tpu.pipeline_mode<synchronous>, transform_indices = @transform_4, window_bounds = array<i64: 1, 128>}, {transform_indices = @transform_5, window_bounds = array<i64: 1, 8, 8, 128>}]} {
    %c0 = arith.constant 0 : index
    %c0_0 = arith.constant 0 : index
    %c0_1 = arith.constant 0 : index
    %c0_2 = arith.constant 0 : index
    %0 = vector.load %arg2[%c0, %c0_0, %c0_1, %c0_2] : memref<1x1x8x64xbf16, #tpu.memory_space<vmem>>, vector<1x1x8x64xbf16>
    %1 = vector.shape_cast %0 : vector<1x1x8x64xbf16> to vector<8x64xbf16>
    %c0_3 = arith.constant 0 : index
    %c0_4 = arith.constant 0 : index
    %c0_5 = arith.constant 0 : index
    %c0_6 = arith.constant 0 : index
    %2 = vector.load %arg3[%c0_3, %c0_4, %c0_5, %c0_6] : memref<1x8x8x64xbf16, #tpu.memory_space<vmem>>, vector<1x8x8x64xbf16>
    %3 = vector.shape_cast %2 : vector<1x8x8x64xbf16> to vector<8x8x64xbf16>
    %c0_7 = arith.constant 0 : index
    %c0_8 = arith.constant 0 : index
    %c0_9 = arith.constant 0 : index
    %c0_10 = arith.constant 0 : index
    %4 = vector.load %arg4[%c0_7, %c0_8, %c0_9, %c0_10] : memref<1x1x8x64xbf16, #tpu.memory_space<vmem>>, vector<1x1x8x64xbf16>
    %5 = vector.shape_cast %4 : vector<1x1x8x64xbf16> to vector<8x64xbf16>
    %c0_i32 = arith.constant 0 : i32
    %6 = arith.cmpi sgt, %arg1, %c0_i32 : i32
    %7 = arith.extui %6 : i1 to i32
    %8 = arith.sitofp %7 : i32 to f32
    %9 = arith.truncf %8 : f32 to bf16
    %10 = vector.broadcast %9 : bf16 to vector<8x64xbf16>
    %11 = arith.mulf %1, %10 : vector<8x64xbf16>
    %c0_i32_11 = arith.constant 0 : i32
    %12 = arith.cmpi slt, %arg1, %c0_i32_11 : i32
    %13 = arith.extui %12 : i1 to i32
    %14 = arith.sitofp %13 : i32 to f32
    %15 = arith.truncf %14 : f32 to bf16
    %16 = vector.broadcast %15 : bf16 to vector<8x64xbf16>
    %17 = arith.mulf %5, %16 : vector<8x64xbf16>
    %18 = vector.shape_cast %11 : vector<8x64xbf16> to vector<1x8x64xbf16>
    %19 = vector.shape_cast %17 : vector<8x64xbf16> to vector<1x8x64xbf16>
    %20 = tpu.concatenate %18, %3, %19 in 0 : vector<1x8x64xbf16>, vector<8x8x64xbf16>, vector<1x8x64xbf16> -> vector<10x8x64xbf16>
    %cst = arith.constant 0.000000e+00 : bf16
    %21 = vector.broadcast %cst : bf16 to vector<10x1x64xbf16>
    %22 = vector.extract_strided_slice %20 {offsets = [0, 0, 0], sizes = [10, 7, 64], strides = [1, 1, 1]} : vector<10x8x64xbf16> to vector<10x7x64xbf16>
    %23 = tpu.concatenate %21, %22 in 1 : vector<10x1x64xbf16>, vector<10x7x64xbf16> -> vector<10x8x64xbf16>
    %24 = vector.extract_strided_slice %20 {offsets = [0, 1, 0], sizes = [10, 7, 64], strides = [1, 1, 1]} : vector<10x8x64xbf16> to vector<10x7x64xbf16>
    %25 = tpu.concatenate %24, %21 in 1 : vector<10x7x64xbf16>, vector<10x1x64xbf16> -> vector<10x8x64xbf16>
    %26 = tpu.concatenate %23, %20, %25 in 2 : vector<10x8x64xbf16>, vector<10x8x64xbf16>, vector<10x8x64xbf16> -> vector<10x8x192xbf16>
    %cst_12 = arith.constant 0.000000e+00 : f32
    %27 = vector.broadcast %cst_12 : f32 to vector<64x128xf32>
    %28 = vector.extract_strided_slice %26 {offsets = [0, 0, 0], sizes = [8, 8, 192], strides = [1, 1, 1]} : vector<10x8x192xbf16> to vector<8x8x192xbf16>
    %29 = vector.shape_cast %28 : vector<8x8x192xbf16> to vector<64x192xbf16>
    %c0_13 = arith.constant 0 : index
    %c0_14 = arith.constant 0 : index
    %c0_15 = arith.constant 0 : index
    %30 = vector.load %arg5[%c0_13, %c0_14, %c0_15] : memref<3x192x128xbf16, #tpu.memory_space<vmem>>, vector<1x192x128xbf16>
    %31 = vector.shape_cast %30 : vector<1x192x128xbf16> to vector<192x128xbf16>
    %cst_16 = arith.constant dense<0.000000e+00> : vector<64x128xf32>
    %32 = tpu.matmul %29, %31, %cst_16 {dimension_numbers = #tpu.dot_dimension_numbers<[1], [0], [0], [1], [0, 0, 1, 1], [], []>} : vector<64x192xbf16>, vector<192x128xbf16>, vector<64x128xf32> -> vector<64x128xf32>
    %33 = arith.addf %27, %32 : vector<64x128xf32>
    %34 = vector.extract_strided_slice %26 {offsets = [1, 0, 0], sizes = [8, 8, 192], strides = [1, 1, 1]} : vector<10x8x192xbf16> to vector<8x8x192xbf16>
    %35 = vector.shape_cast %34 : vector<8x8x192xbf16> to vector<64x192xbf16>
    %c1 = arith.constant 1 : index
    %c0_17 = arith.constant 0 : index
    %c0_18 = arith.constant 0 : index
    %36 = vector.load %arg5[%c1, %c0_17, %c0_18] : memref<3x192x128xbf16, #tpu.memory_space<vmem>>, vector<1x192x128xbf16>
    %37 = vector.shape_cast %36 : vector<1x192x128xbf16> to vector<192x128xbf16>
    %cst_19 = arith.constant dense<0.000000e+00> : vector<64x128xf32>
    %38 = tpu.matmul %35, %37, %cst_19 {dimension_numbers = #tpu.dot_dimension_numbers<[1], [0], [0], [1], [0, 0, 1, 1], [], []>} : vector<64x192xbf16>, vector<192x128xbf16>, vector<64x128xf32> -> vector<64x128xf32>
    %39 = arith.addf %33, %38 : vector<64x128xf32>
    %40 = vector.extract_strided_slice %26 {offsets = [2, 0, 0], sizes = [8, 8, 192], strides = [1, 1, 1]} : vector<10x8x192xbf16> to vector<8x8x192xbf16>
    %41 = vector.shape_cast %40 : vector<8x8x192xbf16> to vector<64x192xbf16>
    %c2 = arith.constant 2 : index
    %c0_20 = arith.constant 0 : index
    %c0_21 = arith.constant 0 : index
    %42 = vector.load %arg5[%c2, %c0_20, %c0_21] : memref<3x192x128xbf16, #tpu.memory_space<vmem>>, vector<1x192x128xbf16>
    %43 = vector.shape_cast %42 : vector<1x192x128xbf16> to vector<192x128xbf16>
    %cst_22 = arith.constant dense<0.000000e+00> : vector<64x128xf32>
    %44 = tpu.matmul %41, %43, %cst_22 {dimension_numbers = #tpu.dot_dimension_numbers<[1], [0], [0], [1], [0, 0, 1, 1], [], []>} : vector<64x192xbf16>, vector<192x128xbf16>, vector<64x128xf32> -> vector<64x128xf32>
    %45 = arith.addf %39, %44 : vector<64x128xf32>
    %c0_23 = arith.constant 0 : index
    %c0_24 = arith.constant 0 : index
    %46 = vector.load %arg6[%c0_23, %c0_24] : memref<1x128xf32, #tpu.memory_space<vmem>>, vector<1x128xf32>
    %47 = vector.shape_cast %46 : vector<1x128xf32> to vector<128xf32>
    %48 = vector.shape_cast %47 : vector<128xf32> to vector<1x128xf32>
    %49 = vector.broadcast %48 : vector<1x128xf32> to vector<64x128xf32>
    %50 = arith.addf %45, %49 : vector<64x128xf32>
    %cst_25 = arith.constant 0.000000e+00 : f32
    %51 = vector.broadcast %cst_25 : f32 to vector<64x128xf32>
    %52 = arith.maximumf %50, %51 : vector<64x128xf32>
    %53 = vector.shape_cast %52 : vector<64x128xf32> to vector<8x8x128xf32>
    %54 = arith.truncf %53 : vector<8x8x128xf32> to vector<8x8x128xbf16>
    %c0_26 = arith.constant 0 : index
    %c0_27 = arith.constant 0 : index
    %c0_28 = arith.constant 0 : index
    %c0_29 = arith.constant 0 : index
    %55 = vector.load %arg7[%c0_26, %c0_27, %c0_28, %c0_29] : memref<1x8x8x128xbf16, #tpu.memory_space<vmem>>, vector<1x8x8x128xbf16>
    %56 = vector.shape_cast %55 : vector<1x8x8x128xbf16> to vector<8x8x128xbf16>
    %57 = vector.shape_cast %54 : vector<8x8x128xbf16> to vector<1x8x8x128xbf16>
    tpu.vector_store %arg7[%c0_26, %c0_27, %c0_28, %c0_29], %57 {strides = array<i32>} : memref<1x8x8x128xbf16, #tpu.memory_space<vmem>>, vector<1x8x8x128xbf16>,
    return
  }
  func.func @transform_0(%arg0: i32, %arg1: i32) -> (i32, i32, i32, i32) {
    %c8_i32 = arith.constant 8 : i32
    %0 = arith.muli %arg1, %c8_i32 : i32
    %c1_i32 = arith.constant 1 : i32
    %1 = arith.subi %0, %c1_i32 : i32
    %c0_i32 = arith.constant 0 : i32
    %2 = arith.maxsi %1, %c0_i32 : i32
    %c0_i32_0 = arith.constant 0 : i32
    %c0_i32_1 = arith.constant 0 : i32
    %c0_i32_2 = arith.constant 0 : i32
    return %arg0, %2, %c0_i32_0, %c0_i32_1 : i32, i32, i32, i32
  }
  func.func @transform_1(%arg0: i32, %arg1: i32) -> (i32, i32, i32, i32) {
    %c0_i32 = arith.constant 0 : i32
    %c0_i32_0 = arith.constant 0 : i32
    %c0_i32_1 = arith.constant 0 : i32
    return %arg0, %arg1, %c0_i32, %c0_i32_0 : i32, i32, i32, i32
  }
  func.func @transform_2(%arg0: i32, %arg1: i32) -> (i32, i32, i32, i32) {
    %c8_i32 = arith.constant 8 : i32
    %0 = arith.muli %arg1, %c8_i32 : i32
    %c8_i32_0 = arith.constant 8 : i32
    %1 = arith.addi %0, %c8_i32_0 : i32
    %c7_i32 = arith.constant 7 : i32
    %2 = arith.minsi %1, %c7_i32 : i32
    %c0_i32 = arith.constant 0 : i32
    %c0_i32_1 = arith.constant 0 : i32
    %c0_i32_2 = arith.constant 0 : i32
    return %arg0, %2, %c0_i32, %c0_i32_1 : i32, i32, i32, i32
  }
  func.func @transform_3(%arg0: i32, %arg1: i32) -> (i32, i32, i32) {
    %c0_i32 = arith.constant 0 : i32
    %c0_i32_0 = arith.constant 0 : i32
    %c0_i32_1 = arith.constant 0 : i32
    %c0_i32_2 = arith.constant 0 : i32
    return %c0_i32, %c0_i32_0, %c0_i32_1 : i32, i32, i32
  }
  func.func @transform_4(%arg0: i32, %arg1: i32) -> (i32, i32) {
    %c0_i32 = arith.constant 0 : i32
    %c0_i32_0 = arith.constant 0 : i32
    %c0_i32_1 = arith.constant 0 : i32
    return %c0_i32, %c0_i32_0 : i32, i32
  }
  func.func @transform_5(%arg0: i32, %arg1: i32) -> (i32, i32, i32, i32) {
    %c0_i32 = arith.constant 0 : i32
    %c0_i32_0 = arith.constant 0 : i32
    %c0_i32_1 = arith.constant 0 : i32
    return %arg0, %arg1, %c0_i32, %c0_i32_0 : i32, i32, i32, i32
  }
}

module attributes {stable_mosaic.version = 11 : i64} {
  func.func @kernel(%arg0: i32, %arg1: i32, %arg2: memref<1x1x8x128xbf16, #tpu.memory_space<vmem>>, %arg3: memref<1x8x8x128xbf16, #tpu.memory_space<vmem>>, %arg4: memref<1x1x8x128xbf16, #tpu.memory_space<vmem>>, %arg5: memref<3x384x128xbf16, #tpu.memory_space<vmem>>, %arg6: memref<1x128xf32, #tpu.memory_space<vmem>>, %arg7: memref<1x8x8x128xf32, #tpu.memory_space<vmem>>) attributes {dimension_semantics = [#tpu.dimension_semantics<parallel>, #tpu.dimension_semantics<parallel>], iteration_bounds = array<i64: 2, 1>, scalar_prefetch = 0 : i64, scratch_operands = 0 : i64, tpu.core_type = #tpu.core_type<tc>, window_params = [{transform_indices = @transform_0, window_bounds = array<i64: 1, 1, 8, 128>}, {transform_indices = @transform_1, window_bounds = array<i64: 1, 8, 8, 128>}, {transform_indices = @transform_2, window_bounds = array<i64: 1, 1, 8, 128>}, {pipeline_mode = #tpu.pipeline_mode<synchronous>, transform_indices = @transform_3, window_bounds = array<i64: 3, 384, 128>}, {pipeline_mode = #tpu.pipeline_mode<synchronous>, transform_indices = @transform_4, window_bounds = array<i64: 1, 128>}, {transform_indices = @transform_5, window_bounds = array<i64: 1, 8, 8, 128>}]} {
    %c0 = arith.constant 0 : index
    %c0_0 = arith.constant 0 : index
    %c0_1 = arith.constant 0 : index
    %c0_2 = arith.constant 0 : index
    %0 = vector.load %arg2[%c0, %c0_0, %c0_1, %c0_2] : memref<1x1x8x128xbf16, #tpu.memory_space<vmem>>, vector<1x1x8x128xbf16>
    %1 = vector.shape_cast %0 : vector<1x1x8x128xbf16> to vector<8x128xbf16>
    %c0_3 = arith.constant 0 : index
    %c0_4 = arith.constant 0 : index
    %c0_5 = arith.constant 0 : index
    %c0_6 = arith.constant 0 : index
    %2 = vector.load %arg3[%c0_3, %c0_4, %c0_5, %c0_6] : memref<1x8x8x128xbf16, #tpu.memory_space<vmem>>, vector<1x8x8x128xbf16>
    %3 = vector.shape_cast %2 : vector<1x8x8x128xbf16> to vector<8x8x128xbf16>
    %c0_7 = arith.constant 0 : index
    %c0_8 = arith.constant 0 : index
    %c0_9 = arith.constant 0 : index
    %c0_10 = arith.constant 0 : index
    %4 = vector.load %arg4[%c0_7, %c0_8, %c0_9, %c0_10] : memref<1x1x8x128xbf16, #tpu.memory_space<vmem>>, vector<1x1x8x128xbf16>
    %5 = vector.shape_cast %4 : vector<1x1x8x128xbf16> to vector<8x128xbf16>
    %c0_i32 = arith.constant 0 : i32
    %6 = arith.cmpi sgt, %arg1, %c0_i32 : i32
    %7 = arith.extui %6 : i1 to i32
    %8 = arith.sitofp %7 : i32 to f32
    %9 = arith.truncf %8 : f32 to bf16
    %10 = vector.broadcast %9 : bf16 to vector<8x128xbf16>
    %11 = arith.mulf %1, %10 : vector<8x128xbf16>
    %c0_i32_11 = arith.constant 0 : i32
    %12 = arith.cmpi slt, %arg1, %c0_i32_11 : i32
    %13 = arith.extui %12 : i1 to i32
    %14 = arith.sitofp %13 : i32 to f32
    %15 = arith.truncf %14 : f32 to bf16
    %16 = vector.broadcast %15 : bf16 to vector<8x128xbf16>
    %17 = arith.mulf %5, %16 : vector<8x128xbf16>
    %18 = vector.shape_cast %11 : vector<8x128xbf16> to vector<1x8x128xbf16>
    %19 = vector.shape_cast %17 : vector<8x128xbf16> to vector<1x8x128xbf16>
    %20 = tpu.concatenate %18, %3, %19 in 0 : vector<1x8x128xbf16>, vector<8x8x128xbf16>, vector<1x8x128xbf16> -> vector<10x8x128xbf16>
    %cst = arith.constant 0.000000e+00 : bf16
    %21 = vector.broadcast %cst : bf16 to vector<10x1x128xbf16>
    %22 = vector.extract_strided_slice %20 {offsets = [0, 0, 0], sizes = [10, 7, 128], strides = [1, 1, 1]} : vector<10x8x128xbf16> to vector<10x7x128xbf16>
    %23 = tpu.concatenate %21, %22 in 1 : vector<10x1x128xbf16>, vector<10x7x128xbf16> -> vector<10x8x128xbf16>
    %24 = vector.extract_strided_slice %20 {offsets = [0, 1, 0], sizes = [10, 7, 128], strides = [1, 1, 1]} : vector<10x8x128xbf16> to vector<10x7x128xbf16>
    %25 = tpu.concatenate %24, %21 in 1 : vector<10x7x128xbf16>, vector<10x1x128xbf16> -> vector<10x8x128xbf16>
    %26 = tpu.concatenate %23, %20, %25 in 2 : vector<10x8x128xbf16>, vector<10x8x128xbf16>, vector<10x8x128xbf16> -> vector<10x8x384xbf16>
    %cst_12 = arith.constant 0.000000e+00 : f32
    %27 = vector.broadcast %cst_12 : f32 to vector<64x128xf32>
    %28 = vector.extract_strided_slice %26 {offsets = [0, 0, 0], sizes = [8, 8, 384], strides = [1, 1, 1]} : vector<10x8x384xbf16> to vector<8x8x384xbf16>
    %29 = vector.shape_cast %28 : vector<8x8x384xbf16> to vector<64x384xbf16>
    %c0_13 = arith.constant 0 : index
    %c0_14 = arith.constant 0 : index
    %c0_15 = arith.constant 0 : index
    %30 = vector.load %arg5[%c0_13, %c0_14, %c0_15] : memref<3x384x128xbf16, #tpu.memory_space<vmem>>, vector<1x384x128xbf16>
    %31 = vector.shape_cast %30 : vector<1x384x128xbf16> to vector<384x128xbf16>
    %cst_16 = arith.constant dense<0.000000e+00> : vector<64x128xf32>
    %32 = tpu.matmul %29, %31, %cst_16 {dimension_numbers = #tpu.dot_dimension_numbers<[1], [0], [0], [1], [0, 0, 1, 1], [], []>} : vector<64x384xbf16>, vector<384x128xbf16>, vector<64x128xf32> -> vector<64x128xf32>
    %33 = arith.addf %27, %32 : vector<64x128xf32>
    %34 = vector.extract_strided_slice %26 {offsets = [1, 0, 0], sizes = [8, 8, 384], strides = [1, 1, 1]} : vector<10x8x384xbf16> to vector<8x8x384xbf16>
    %35 = vector.shape_cast %34 : vector<8x8x384xbf16> to vector<64x384xbf16>
    %c1 = arith.constant 1 : index
    %c0_17 = arith.constant 0 : index
    %c0_18 = arith.constant 0 : index
    %36 = vector.load %arg5[%c1, %c0_17, %c0_18] : memref<3x384x128xbf16, #tpu.memory_space<vmem>>, vector<1x384x128xbf16>
    %37 = vector.shape_cast %36 : vector<1x384x128xbf16> to vector<384x128xbf16>
    %cst_19 = arith.constant dense<0.000000e+00> : vector<64x128xf32>
    %38 = tpu.matmul %35, %37, %cst_19 {dimension_numbers = #tpu.dot_dimension_numbers<[1], [0], [0], [1], [0, 0, 1, 1], [], []>} : vector<64x384xbf16>, vector<384x128xbf16>, vector<64x128xf32> -> vector<64x128xf32>
    %39 = arith.addf %33, %38 : vector<64x128xf32>
    %40 = vector.extract_strided_slice %26 {offsets = [2, 0, 0], sizes = [8, 8, 384], strides = [1, 1, 1]} : vector<10x8x384xbf16> to vector<8x8x384xbf16>
    %41 = vector.shape_cast %40 : vector<8x8x384xbf16> to vector<64x384xbf16>
    %c2 = arith.constant 2 : index
    %c0_20 = arith.constant 0 : index
    %c0_21 = arith.constant 0 : index
    %42 = vector.load %arg5[%c2, %c0_20, %c0_21] : memref<3x384x128xbf16, #tpu.memory_space<vmem>>, vector<1x384x128xbf16>
    %43 = vector.shape_cast %42 : vector<1x384x128xbf16> to vector<384x128xbf16>
    %cst_22 = arith.constant dense<0.000000e+00> : vector<64x128xf32>
    %44 = tpu.matmul %41, %43, %cst_22 {dimension_numbers = #tpu.dot_dimension_numbers<[1], [0], [0], [1], [0, 0, 1, 1], [], []>} : vector<64x384xbf16>, vector<384x128xbf16>, vector<64x128xf32> -> vector<64x128xf32>
    %45 = arith.addf %39, %44 : vector<64x128xf32>
    %c0_23 = arith.constant 0 : index
    %c0_24 = arith.constant 0 : index
    %46 = vector.load %arg6[%c0_23, %c0_24] : memref<1x128xf32, #tpu.memory_space<vmem>>, vector<1x128xf32>
    %47 = vector.shape_cast %46 : vector<1x128xf32> to vector<128xf32>
    %48 = vector.shape_cast %47 : vector<128xf32> to vector<1x128xf32>
    %49 = vector.broadcast %48 : vector<1x128xf32> to vector<64x128xf32>
    %50 = arith.addf %45, %49 : vector<64x128xf32>
    %cst_25 = arith.constant 0.000000e+00 : f32
    %51 = vector.broadcast %cst_25 : f32 to vector<64x128xf32>
    %52 = arith.maximumf %50, %51 : vector<64x128xf32>
    %53 = vector.shape_cast %52 : vector<64x128xf32> to vector<8x8x128xf32>
    %c0_26 = arith.constant 0 : index
    %c0_27 = arith.constant 0 : index
    %c0_28 = arith.constant 0 : index
    %c0_29 = arith.constant 0 : index
    %54 = vector.load %arg7[%c0_26, %c0_27, %c0_28, %c0_29] : memref<1x8x8x128xf32, #tpu.memory_space<vmem>>, vector<1x8x8x128xf32>
    %55 = vector.shape_cast %54 : vector<1x8x8x128xf32> to vector<8x8x128xf32>
    %56 = vector.shape_cast %53 : vector<8x8x128xf32> to vector<1x8x8x128xf32>
    tpu.vector_store %arg7[%c0_26, %c0_27, %c0_28, %c0_29], %56 {strides = array<i32>} : memref<1x8x8x128xf32, #tpu.memory_space<vmem>>, vector<1x8x8x128xf32>,
    return
  }
  func.func @transform_0(%arg0: i32, %arg1: i32) -> (i32, i32, i32, i32) {
    %c8_i32 = arith.constant 8 : i32
    %0 = arith.muli %arg1, %c8_i32 : i32
    %c1_i32 = arith.constant 1 : i32
    %1 = arith.subi %0, %c1_i32 : i32
    %c0_i32 = arith.constant 0 : i32
    %2 = arith.maxsi %1, %c0_i32 : i32
    %c0_i32_0 = arith.constant 0 : i32
    %c0_i32_1 = arith.constant 0 : i32
    %c0_i32_2 = arith.constant 0 : i32
    return %arg0, %2, %c0_i32_0, %c0_i32_1 : i32, i32, i32, i32
  }
  func.func @transform_1(%arg0: i32, %arg1: i32) -> (i32, i32, i32, i32) {
    %c0_i32 = arith.constant 0 : i32
    %c0_i32_0 = arith.constant 0 : i32
    %c0_i32_1 = arith.constant 0 : i32
    return %arg0, %arg1, %c0_i32, %c0_i32_0 : i32, i32, i32, i32
  }
  func.func @transform_2(%arg0: i32, %arg1: i32) -> (i32, i32, i32, i32) {
    %c8_i32 = arith.constant 8 : i32
    %0 = arith.muli %arg1, %c8_i32 : i32
    %c8_i32_0 = arith.constant 8 : i32
    %1 = arith.addi %0, %c8_i32_0 : i32
    %c7_i32 = arith.constant 7 : i32
    %2 = arith.minsi %1, %c7_i32 : i32
    %c0_i32 = arith.constant 0 : i32
    %c0_i32_1 = arith.constant 0 : i32
    %c0_i32_2 = arith.constant 0 : i32
    return %arg0, %2, %c0_i32, %c0_i32_1 : i32, i32, i32, i32
  }
  func.func @transform_3(%arg0: i32, %arg1: i32) -> (i32, i32, i32) {
    %c0_i32 = arith.constant 0 : i32
    %c0_i32_0 = arith.constant 0 : i32
    %c0_i32_1 = arith.constant 0 : i32
    %c0_i32_2 = arith.constant 0 : i32
    return %c0_i32, %c0_i32_0, %c0_i32_1 : i32, i32, i32
  }
  func.func @transform_4(%arg0: i32, %arg1: i32) -> (i32, i32) {
    %c0_i32 = arith.constant 0 : i32
    %c0_i32_0 = arith.constant 0 : i32
    %c0_i32_1 = arith.constant 0 : i32
    return %c0_i32, %c0_i32_0 : i32, i32
  }
  func.func @transform_5(%arg0: i32, %arg1: i32) -> (i32, i32, i32, i32) {
    %c0_i32 = arith.constant 0 : i32
    %c0_i32_0 = arith.constant 0 : i32
    %c0_i32_1 = arith.constant 0 : i32
    return %arg0, %arg1, %c0_i32, %c0_i32_0 : i32, i32, i32, i32
  }
}

module attributes {stable_mosaic.version = 11 : i64} {
  func.func @kernel(%arg0: i32, %arg1: i32, %arg2: memref<1x1x16x64xbf16, #tpu.memory_space<vmem>>, %arg3: memref<1x16x16x64xbf16, #tpu.memory_space<vmem>>, %arg4: memref<1x1x16x64xbf16, #tpu.memory_space<vmem>>, %arg5: memref<3x192x64xbf16, #tpu.memory_space<vmem>>, %arg6: memref<1x64xf32, #tpu.memory_space<vmem>>, %arg7: memref<1x8x8x64xbf16, #tpu.memory_space<vmem>>, %arg8: memref<8x16x64xf32, #tpu.memory_space<vmem>>) attributes {dimension_semantics = [#tpu.dimension_semantics<parallel>, #tpu.dimension_semantics<parallel>], iteration_bounds = array<i64: 2, 1>, scalar_prefetch = 0 : i64, scratch_operands = 1 : i64, tpu.core_type = #tpu.core_type<tc>, window_params = [{transform_indices = @transform_0, window_bounds = array<i64: 1, 1, 16, 64>}, {transform_indices = @transform_1, window_bounds = array<i64: 1, 16, 16, 64>}, {transform_indices = @transform_2, window_bounds = array<i64: 1, 1, 16, 64>}, {pipeline_mode = #tpu.pipeline_mode<synchronous>, transform_indices = @transform_3, window_bounds = array<i64: 3, 192, 64>}, {pipeline_mode = #tpu.pipeline_mode<synchronous>, transform_indices = @transform_4, window_bounds = array<i64: 1, 64>}, {transform_indices = @transform_5, window_bounds = array<i64: 1, 8, 8, 64>}]} {
    %c0 = arith.constant 0 : index
    %c0_0 = arith.constant 0 : index
    %c0_1 = arith.constant 0 : index
    %c0_2 = arith.constant 0 : index
    %0 = vector.load %arg2[%c0, %c0_0, %c0_1, %c0_2] : memref<1x1x16x64xbf16, #tpu.memory_space<vmem>>, vector<1x1x16x64xbf16>
    %1 = vector.shape_cast %0 : vector<1x1x16x64xbf16> to vector<16x64xbf16>
    %c0_3 = arith.constant 0 : index
    %c0_4 = arith.constant 0 : index
    %c0_5 = arith.constant 0 : index
    %c0_6 = arith.constant 0 : index
    %2 = vector.load %arg3[%c0_3, %c0_4, %c0_5, %c0_6] : memref<1x16x16x64xbf16, #tpu.memory_space<vmem>>, vector<1x16x16x64xbf16>
    %3 = vector.shape_cast %2 : vector<1x16x16x64xbf16> to vector<16x16x64xbf16>
    %c0_7 = arith.constant 0 : index
    %c0_8 = arith.constant 0 : index
    %c0_9 = arith.constant 0 : index
    %c0_10 = arith.constant 0 : index
    %4 = vector.load %arg4[%c0_7, %c0_8, %c0_9, %c0_10] : memref<1x1x16x64xbf16, #tpu.memory_space<vmem>>, vector<1x1x16x64xbf16>
    %5 = vector.shape_cast %4 : vector<1x1x16x64xbf16> to vector<16x64xbf16>
    %c0_i32 = arith.constant 0 : i32
    %6 = arith.cmpi sgt, %arg1, %c0_i32 : i32
    %7 = arith.extui %6 : i1 to i32
    %8 = arith.sitofp %7 : i32 to f32
    %9 = arith.truncf %8 : f32 to bf16
    %10 = vector.broadcast %9 : bf16 to vector<16x64xbf16>
    %11 = arith.mulf %1, %10 : vector<16x64xbf16>
    %c0_i32_11 = arith.constant 0 : i32
    %12 = arith.cmpi slt, %arg1, %c0_i32_11 : i32
    %13 = arith.extui %12 : i1 to i32
    %14 = arith.sitofp %13 : i32 to f32
    %15 = arith.truncf %14 : f32 to bf16
    %16 = vector.broadcast %15 : bf16 to vector<16x64xbf16>
    %17 = arith.mulf %5, %16 : vector<16x64xbf16>
    %18 = vector.shape_cast %11 : vector<16x64xbf16> to vector<1x16x64xbf16>
    %19 = vector.shape_cast %17 : vector<16x64xbf16> to vector<1x16x64xbf16>
    %20 = tpu.concatenate %18, %3, %19 in 0 : vector<1x16x64xbf16>, vector<16x16x64xbf16>, vector<1x16x64xbf16> -> vector<18x16x64xbf16>
    %cst = arith.constant 0.000000e+00 : bf16
    %21 = vector.broadcast %cst : bf16 to vector<18x1x64xbf16>
    %22 = vector.extract_strided_slice %20 {offsets = [0, 0, 0], sizes = [18, 15, 64], strides = [1, 1, 1]} : vector<18x16x64xbf16> to vector<18x15x64xbf16>
    %23 = tpu.concatenate %21, %22 in 1 : vector<18x1x64xbf16>, vector<18x15x64xbf16> -> vector<18x16x64xbf16>
    %24 = vector.extract_strided_slice %20 {offsets = [0, 1, 0], sizes = [18, 15, 64], strides = [1, 1, 1]} : vector<18x16x64xbf16> to vector<18x15x64xbf16>
    %25 = tpu.concatenate %24, %21 in 1 : vector<18x15x64xbf16>, vector<18x1x64xbf16> -> vector<18x16x64xbf16>
    %26 = tpu.concatenate %23, %20, %25 in 2 : vector<18x16x64xbf16>, vector<18x16x64xbf16>, vector<18x16x64xbf16> -> vector<18x16x192xbf16>
    %cst_12 = arith.constant 0.000000e+00 : f32
    %27 = vector.broadcast %cst_12 : f32 to vector<256x64xf32>
    %28 = vector.extract_strided_slice %26 {offsets = [0, 0, 0], sizes = [16, 16, 192], strides = [1, 1, 1]} : vector<18x16x192xbf16> to vector<16x16x192xbf16>
    %29 = vector.shape_cast %28 : vector<16x16x192xbf16> to vector<256x192xbf16>
    %c0_13 = arith.constant 0 : index
    %c0_14 = arith.constant 0 : index
    %c0_15 = arith.constant 0 : index
    %30 = vector.load %arg5[%c0_13, %c0_14, %c0_15] : memref<3x192x64xbf16, #tpu.memory_space<vmem>>, vector<1x192x64xbf16>
    %31 = vector.shape_cast %30 : vector<1x192x64xbf16> to vector<192x64xbf16>
    %cst_16 = arith.constant dense<0.000000e+00> : vector<256x64xf32>
    %32 = tpu.matmul %29, %31, %cst_16 {dimension_numbers = #tpu.dot_dimension_numbers<[1], [0], [0], [1], [0, 0, 1, 1], [], []>} : vector<256x192xbf16>, vector<192x64xbf16>, vector<256x64xf32> -> vector<256x64xf32>
    %33 = arith.addf %27, %32 : vector<256x64xf32>
    %34 = vector.extract_strided_slice %26 {offsets = [1, 0, 0], sizes = [16, 16, 192], strides = [1, 1, 1]} : vector<18x16x192xbf16> to vector<16x16x192xbf16>
    %35 = vector.shape_cast %34 : vector<16x16x192xbf16> to vector<256x192xbf16>
    %c1 = arith.constant 1 : index
    %c0_17 = arith.constant 0 : index
    %c0_18 = arith.constant 0 : index
    %36 = vector.load %arg5[%c1, %c0_17, %c0_18] : memref<3x192x64xbf16, #tpu.memory_space<vmem>>, vector<1x192x64xbf16>
    %37 = vector.shape_cast %36 : vector<1x192x64xbf16> to vector<192x64xbf16>
    %cst_19 = arith.constant dense<0.000000e+00> : vector<256x64xf32>
    %38 = tpu.matmul %35, %37, %cst_19 {dimension_numbers = #tpu.dot_dimension_numbers<[1], [0], [0], [1], [0, 0, 1, 1], [], []>} : vector<256x192xbf16>, vector<192x64xbf16>, vector<256x64xf32> -> vector<256x64xf32>
    %39 = arith.addf %33, %38 : vector<256x64xf32>
    %40 = vector.extract_strided_slice %26 {offsets = [2, 0, 0], sizes = [16, 16, 192], strides = [1, 1, 1]} : vector<18x16x192xbf16> to vector<16x16x192xbf16>
    %41 = vector.shape_cast %40 : vector<16x16x192xbf16> to vector<256x192xbf16>
    %c2 = arith.constant 2 : index
    %c0_20 = arith.constant 0 : index
    %c0_21 = arith.constant 0 : index
    %42 = vector.load %arg5[%c2, %c0_20, %c0_21] : memref<3x192x64xbf16, #tpu.memory_space<vmem>>, vector<1x192x64xbf16>
    %43 = vector.shape_cast %42 : vector<1x192x64xbf16> to vector<192x64xbf16>
    %cst_22 = arith.constant dense<0.000000e+00> : vector<256x64xf32>
    %44 = tpu.matmul %41, %43, %cst_22 {dimension_numbers = #tpu.dot_dimension_numbers<[1], [0], [0], [1], [0, 0, 1, 1], [], []>} : vector<256x192xbf16>, vector<192x64xbf16>, vector<256x64xf32> -> vector<256x64xf32>
    %45 = arith.addf %39, %44 : vector<256x64xf32>
    %c0_23 = arith.constant 0 : index
    %c0_24 = arith.constant 0 : index
    %46 = vector.load %arg6[%c0_23, %c0_24] : memref<1x64xf32, #tpu.memory_space<vmem>>, vector<1x64xf32>
    %47 = vector.shape_cast %46 : vector<1x64xf32> to vector<64xf32>
    %48 = vector.shape_cast %47 : vector<64xf32> to vector<1x64xf32>
    %49 = vector.broadcast %48 : vector<1x64xf32> to vector<256x64xf32>
    %50 = arith.addf %45, %49 : vector<256x64xf32>
    %cst_25 = arith.constant 0.000000e+00 : f32
    %51 = vector.broadcast %cst_25 : f32 to vector<256x64xf32>
    %52 = arith.maximumf %50, %51 : vector<256x64xf32>
    %53 = vector.shape_cast %52 : vector<256x64xf32> to vector<8x2x16x64xf32>
    %54 = vector.extract_strided_slice %53 {offsets = [0, 0, 0, 0], sizes = [8, 1, 16, 64], strides = [1, 1, 1, 1]} : vector<8x2x16x64xf32> to vector<8x1x16x64xf32>
    %55 = vector.shape_cast %54 : vector<8x1x16x64xf32> to vector<8x16x64xf32>
    %56 = vector.extract_strided_slice %53 {offsets = [0, 1, 0, 0], sizes = [8, 1, 16, 64], strides = [1, 1, 1, 1]} : vector<8x2x16x64xf32> to vector<8x1x16x64xf32>
    %57 = vector.shape_cast %56 : vector<8x1x16x64xf32> to vector<8x16x64xf32>
    %58 = arith.maximumf %55, %57 : vector<8x16x64xf32>
    %c0_26 = arith.constant 0 : index
    %c0_27 = arith.constant 0 : index
    %c0_28 = arith.constant 0 : index
    %59 = vector.load %arg8[%c0_26, %c0_27, %c0_28] : memref<8x16x64xf32, #tpu.memory_space<vmem>>, vector<8x16x64xf32>
    tpu.vector_store %arg8[%c0_26, %c0_27, %c0_28], %58 {strides = array<i32>} : memref<8x16x64xf32, #tpu.memory_space<vmem>>, vector<8x16x64xf32>,
    %c0_29 = arith.constant 0 : index
    %c0_30 = arith.constant 0 : index
    %c0_31 = arith.constant 0 : index
    %60 = tpu.strided_load %arg8[%c0_29, %c0_30, %c0_31] {strides = array<i32: 1, 2, 1>} : memref<8x16x64xf32, #tpu.memory_space<vmem>>, vector<8x8x64xf32>
    %c0_32 = arith.constant 0 : index
    %c1_33 = arith.constant 1 : index
    %c0_34 = arith.constant 0 : index
    %61 = tpu.strided_load %arg8[%c0_32, %c1_33, %c0_34] {strides = array<i32: 1, 2, 1>} : memref<8x16x64xf32, #tpu.memory_space<vmem>>, vector<8x8x64xf32>
    %62 = arith.maximumf %60, %61 : vector<8x8x64xf32>
    %63 = arith.truncf %62 : vector<8x8x64xf32> to vector<8x8x64xbf16>
    %c0_35 = arith.constant 0 : index
    %c0_36 = arith.constant 0 : index
    %c0_37 = arith.constant 0 : index
    %c0_38 = arith.constant 0 : index
    %64 = vector.load %arg7[%c0_35, %c0_36, %c0_37, %c0_38] : memref<1x8x8x64xbf16, #tpu.memory_space<vmem>>, vector<1x8x8x64xbf16>
    %65 = vector.shape_cast %64 : vector<1x8x8x64xbf16> to vector<8x8x64xbf16>
    %66 = vector.shape_cast %63 : vector<8x8x64xbf16> to vector<1x8x8x64xbf16>
    tpu.vector_store %arg7[%c0_35, %c0_36, %c0_37, %c0_38], %66 {strides = array<i32>} : memref<1x8x8x64xbf16, #tpu.memory_space<vmem>>, vector<1x8x8x64xbf16>,
    return
  }
  func.func @transform_0(%arg0: i32, %arg1: i32) -> (i32, i32, i32, i32) {
    %c16_i32 = arith.constant 16 : i32
    %0 = arith.muli %arg1, %c16_i32 : i32
    %c1_i32 = arith.constant 1 : i32
    %1 = arith.subi %0, %c1_i32 : i32
    %c0_i32 = arith.constant 0 : i32
    %2 = arith.maxsi %1, %c0_i32 : i32
    %c0_i32_0 = arith.constant 0 : i32
    %c0_i32_1 = arith.constant 0 : i32
    %c0_i32_2 = arith.constant 0 : i32
    return %arg0, %2, %c0_i32_0, %c0_i32_1 : i32, i32, i32, i32
  }
  func.func @transform_1(%arg0: i32, %arg1: i32) -> (i32, i32, i32, i32) {
    %c0_i32 = arith.constant 0 : i32
    %c0_i32_0 = arith.constant 0 : i32
    %c0_i32_1 = arith.constant 0 : i32
    return %arg0, %arg1, %c0_i32, %c0_i32_0 : i32, i32, i32, i32
  }
  func.func @transform_2(%arg0: i32, %arg1: i32) -> (i32, i32, i32, i32) {
    %c16_i32 = arith.constant 16 : i32
    %0 = arith.muli %arg1, %c16_i32 : i32
    %c16_i32_0 = arith.constant 16 : i32
    %1 = arith.addi %0, %c16_i32_0 : i32
    %c15_i32 = arith.constant 15 : i32
    %2 = arith.minsi %1, %c15_i32 : i32
    %c0_i32 = arith.constant 0 : i32
    %c0_i32_1 = arith.constant 0 : i32
    %c0_i32_2 = arith.constant 0 : i32
    return %arg0, %2, %c0_i32, %c0_i32_1 : i32, i32, i32, i32
  }
  func.func @transform_3(%arg0: i32, %arg1: i32) -> (i32, i32, i32) {
    %c0_i32 = arith.constant 0 : i32
    %c0_i32_0 = arith.constant 0 : i32
    %c0_i32_1 = arith.constant 0 : i32
    %c0_i32_2 = arith.constant 0 : i32
    return %c0_i32, %c0_i32_0, %c0_i32_1 : i32, i32, i32
  }
  func.func @transform_4(%arg0: i32, %arg1: i32) -> (i32, i32) {
    %c0_i32 = arith.constant 0 : i32
    %c0_i32_0 = arith.constant 0 : i32
    %c0_i32_1 = arith.constant 0 : i32
    return %c0_i32, %c0_i32_0 : i32, i32
  }
  func.func @transform_5(%arg0: i32, %arg1: i32) -> (i32, i32, i32, i32) {
    %c0_i32 = arith.constant 0 : i32
    %c0_i32_0 = arith.constant 0 : i32
    %c0_i32_1 = arith.constant 0 : i32
    return %arg0, %arg1, %c0_i32, %c0_i32_0 : i32, i32, i32, i32
  }
}

</mosaic_0001>

<llo_original>
// kernel: netf_forward.4
$region0: #{netf_forward.4}
  #allocation0 [shape = 'u32[]', space=smem, size = 0x4, offset = 0x4, fixed_abs, tag = 'smem constant byte address 0x4 - core index']
  #allocation1 [shape = 'u32[72,128]{1,0:T(1,128)}', space=vmem, size = 0x9000, scoped, tag = 'internal scratch']
  %s0 = inlined_call_operand.vmem [shape: f32[2,16,16,3], index: 0, kind: input, shape index: {}, may-alias: {0,1,2}]
  %s1 = inlined_call_operand.vmem [shape: f32[2,16,16,3], index: 1, kind: input, shape index: {}, may-alias: {0,1,2}]
  %s2 = inlined_call_operand.vmem [shape: f32[2,16,16,3], index: 2, kind: input, shape index: {}, may-alias: {0,1,2}]
  %s3 = inlined_call_operand.vmem [shape: bf16[3,9,64], index: 3, kind: input, shape index: {}]
  %s4 = inlined_call_operand.vmem [shape: f32[1,64], index: 4, kind: input, shape index: {}]
  %s5 = inlined_call_operand.vmem [shape: f32[1,3], index: 5, kind: input, shape index: {}]
  %s6 = inlined_call_operand.hbm [shape: f32[1,3], index: 6, kind: input, shape index: {}]
  %s7 = inlined_call_operand.vmem [shape: bf16[2,16,16,64], index: 7, kind: output, shape index: {}]
  %s8 = sld [smem:[#allocation0]]
  $region65: #{netf_forward.4} parent=0
    _
  %s10 = ssub.s32 1, %s8
  %s11 = scalar_select 0, %s10, %s8
  $region1: #{netf_forward.4} parent=0
    #allocation2 [shape = 'u8[512]{0}', space=vmem, size = 0x400, scoped, tag = 'input window, operand 6, single buffered']
    #allocation3 [shape = 's32[2]{0}', space=sflag, size = 0x8, scoped, tag = 'scoped memory for netf_forward.4']
    %12 = vsyncpa [#allocation3], 0
    loop: start=0, step=1, limit=4
    $region2: #{netf_forward.4} parent=1 // loop_pre_header
      _
    $region3: #{netf_forward.4} parent=1 // loop_header
      %s14 = sphi 0, %s18
      %p15 = scmp.ge.s32.totalorder %s14, 4
      %s21 = sphi 0, %s33
      %s22 = sphi 0, %s29
      %s23 = sphi 0, %s21
      %s24 = sphi 0, %s22
      %s25 = sphi 0, %s23
      %s26 = sphi 0, %s24
      %s46 = sphi 0, %s48
      %s49 = sphi 0, %s46
      %s50 = sphi 0, %s49
      %s66 = sphi 0, %s50
      %s74 = sphi 0, %s76
      %s77 = sphi 0, %s74
      %s78 = sphi 0, %s77
      %s94 = sphi 0, %s78
      %s110 = sphi 0, %s112
      %s113 = sphi 0, %s110
      %s114 = sphi 0, %s113
      %s130 = sphi 0, %s114
      %s134 = sphi 0, %s134
      %s136 = sphi 0, %s134
      %s137 = sphi 0, %s136
      %s151 = sphi 0, %s137
      %s155 = sphi 0, %s155
      %s157 = sphi 0, %s155
      %s158 = sphi 0, %s157
      %s172 = sphi 0, %s158
      %s176 = sphi 0, %s176
      %s178 = sphi 0, %s176
      %s179 = sphi 0, %s178
      %s193 = sphi 0, %s179
      %s197 = sphi 0, %s197
      %s199 = sphi 0, %s197
      %s200 = sphi 0, %s199
      %s214 = sphi 0, %s200
      %s222 = sphi 0, %s224
      %s225 = sphi 0, %s222
      %s226 = sphi 0, %s225
      %s242 = sphi 0, %s226
    $region4: #{netf_forward.4} parent=1 // loop_header_branch
      %17 = sbr.rel (%p15) target = $region8
    $region5: #{netf_forward.4} parent=1 // loop_body
      %s19 = ssub.s32 %s14, 1
      %s20 = ssub.s32 %s14, 2
      %s27 = sadd.s32 1, %s22
      %p28 = scmp.ge.s32.totalorder %s27, 1
      %s29 = scalar_select %p28, 0, %s27
      %s30 = sadd.s32 1, %s21
      %s31 = scalar_select %p28, %s30, %s21
      %p32 = scmp.ge.s32.totalorder %s31, 2
      %s33 = scalar_select %p32, 0, %s31
      %s34 = smul.u32 %s22, 16
      %s35 = ssub.s32 %s34, 1
      %p36 = scmp.gt.s32.totalorder %s35, 0
      %s37 = scalar_select %p36, %s35, 0
      %s38 = smul.u32 %s29, 16
      %s39 = ssub.s32 %s38, 1
      %p40 = scmp.gt.s32.totalorder %s39, 0
      %s41 = scalar_select %p40, %s39, 0
      %s42 = ssub.s32 %s21, %s33
      %s43 = ssub.s32 %s37, %s41
      %s44 = sor.u32 %s42, %s43
      %p45 = scmp.eq.s32.totalorder %s44, 0
      %s47 = sadd.s32 %s46, 1
      %s48 = scalar_select %p45, %s46, %s47
      %p51 = pneg %p45
      %p52 = scmp.eq.s32.totalorder %s14, 1
      %p53 = por %p51, %p52
      %p54 = scmp.ne.s32.totalorder %s46, %s49
      %p55 = scmp.eq.s32.totalorder %s14, 0
      %p56 = por %p54, %p55
      %p57 = scmp.ne.s32.totalorder %s46, %s49
      %p58 = scmp.eq.s32.totalorder %s19, 1
      %p59 = por %p57, %p58
      %p60 = scmp.ne.s32.totalorder %s49, %s50
      %p61 = scmp.eq.s32.totalorder %s19, 0
      %p62 = por %p60, %p61
      %p63 = scmp.ne.s32.totalorder %s49, %s50
      %p64 = scmp.eq.s32.totalorder %s20, 1
      %p65 = por %p63, %p64
      %p67 = scmp.ne.s32.totalorder %s50, %s66
      %p68 = scmp.eq.s32.totalorder %s20, 0
      %p69 = por %p67, %p68
      %s70 = ssub.s32 %s21, %s33
      %s71 = ssub.s32 %s22, %s29
      %s72 = sor.u32 %s70, %s71
      %p73 = scmp.eq.s32.totalorder %s72, 0
      %s75 = sadd.s32 %s74, 1
      %s76 = scalar_select %p73, %s74, %s75
      %p79 = pneg %p73
      %p80 = scmp.eq.s32.totalorder %s14, 1
      %p81 = por %p79, %p80
      %p82 = scmp.ne.s32.totalorder %s74, %s77
      %p83 = scmp.eq.s32.totalorder %s14, 0
      %p84 = por %p82, %p83
      %p85 = scmp.ne.s32.totalorder %s74, %s77
      %p86 = scmp.eq.s32.totalorder %s19, 1
      %p87 = por %p85, %p86
      %p88 = scmp.ne.s32.totalorder %s77, %s78
      %p89 = scmp.eq.s32.totalorder %s19, 0
      %p90 = por %p88, %p89
      %p91 = scmp.ne.s32.totalorder %s77, %s78
      %p92 = scmp.eq.s32.totalorder %s20, 1
      %p93 = por %p91, %p92
      %p95 = scmp.ne.s32.totalorder %s78, %s94
      %p96 = scmp.eq.s32.totalorder %s20, 0
      %p97 = por %p95, %p96
      %s98 = smul.u32 %s22, 16
      %s99 = sadd.s32 %s98, 16
      %p100 = scmp.lt.s32.totalorder %s99, 15
      %s101 = scalar_select %p100, %s99, 15
      %s102 = smul.u32 %s29, 16
      %s103 = sadd.s32 %s102, 16
      %p104 = scmp.lt.s32.totalorder %s103, 15
      %s105 = scalar_select %p104, %s103, 15
      %s106 = ssub.s32 %s21, %s33
      %s107 = ssub.s32 %s101, %s105
      %s108 = sor.u32 %s106, %s107
      %p109 = scmp.eq.s32.totalorder %s108, 0
      %s111 = sadd.s32 %s110, 1
      %s112 = scalar_select %p109, %s110, %s111
      %p115 = pneg %p109
      %p116 = scmp.eq.s32.totalorder %s14, 1
      %p117 = por %p115, %p116
      %p118 = scmp.ne.s32.totalorder %s110, %s113
      %p119 = scmp.eq.s32.totalorder %s14, 0
      %p120 = por %p118, %p119
      %p121 = scmp.ne.s32.totalorder %s110, %s113
      %p122 = scmp.eq.s32.totalorder %s19, 1
      %p123 = por %p121, %p122
      %p124 = scmp.ne.s32.totalorder %s113, %s114
      %p125 = scmp.eq.s32.totalorder %s19, 0
      %p126 = por %p124, %p125
      %p127 = scmp.ne.s32.totalorder %s113, %s114
      %p128 = scmp.eq.s32.totalorder %s20, 1
      %p129 = por %p127, %p128
      %p131 = scmp.ne.s32.totalorder %s114, %s130
      %p132 = scmp.eq.s32.totalorder %s20, 0
      %p133 = por %p131, %p132
      %s135 = sadd.s32 %s134, 1
      %p138 = scmp.eq.s32.totalorder %s14, 1
      %p139 = scmp.ne.s32.totalorder %s134, %s136
      %p140 = scmp.eq.s32.totalorder %s14, 0
      %p141 = por %p139, %p140
      %p142 = scmp.ne.s32.totalorder %s134, %s136
      %p143 = scmp.eq.s32.totalorder %s19, 1
      %p144 = por %p142, %p143
      %p145 = scmp.ne.s32.totalorder %s136, %s137
      %p146 = scmp.eq.s32.totalorder %s19, 0
      %p147 = por %p145, %p146
      %p148 = scmp.ne.s32.totalorder %s136, %s137
      %p149 = scmp.eq.s32.totalorder %s20, 1
      %p150 = por %p148, %p149
      %p152 = scmp.ne.s32.totalorder %s137, %s151
      %p153 = scmp.eq.s32.totalorder %s20, 0
      %p154 = por %p152, %p153
      %s156 = sadd.s32 %s155, 1
      %p159 = scmp.eq.s32.totalorder %s14, 1
      %p160 = scmp.ne.s32.totalorder %s155, %s157
      %p161 = scmp.eq.s32.totalorder %s14, 0
      %p162 = por %p160, %p161
      %p163 = scmp.ne.s32.totalorder %s155, %s157
      %p164 = scmp.eq.s32.totalorder %s19, 1
      %p165 = por %p163, %p164
      %p166 = scmp.ne.s32.totalorder %s157, %s158
      %p167 = scmp.eq.s32.totalorder %s19, 0
      %p168 = por %p166, %p167
      %p169 = scmp.ne.s32.totalorder %s157, %s158
      %p170 = scmp.eq.s32.totalorder %s20, 1
      %p171 = por %p169, %p170
      %p173 = scmp.ne.s32.totalorder %s158, %s172
      %p174 = scmp.eq.s32.totalorder %s20, 0
      %p175 = por %p173, %p174
      %s177 = sadd.s32 %s176, 1
      %p180 = scmp.eq.s32.totalorder %s14, 1
      %p181 = scmp.ne.s32.totalorder %s176, %s178
      %p182 = scmp.eq.s32.totalorder %s14, 0
      %p183 = por %p181, %p182
      %p184 = scmp.ne.s32.totalorder %s176, %s178
      %p185 = scmp.eq.s32.totalorder %s19, 1
      %p186 = por %p184, %p185
      %p187 = scmp.ne.s32.totalorder %s178, %s179
      %p188 = scmp.eq.s32.totalorder %s19, 0
      %p189 = por %p187, %p188
      %p190 = scmp.ne.s32.totalorder %s178, %s179
      %p191 = scmp.eq.s32.totalorder %s20, 1
      %p192 = por %p190, %p191
      %p194 = scmp.ne.s32.totalorder %s179, %s193
      %p195 = scmp.eq.s32.totalorder %s20, 0
      %p196 = por %p194, %p195
      %s198 = sadd.s32 %s197, 1
      %p201 = scmp.eq.s32.totalorder %s14, 1
      %p202 = scmp.ne.s32.totalorder %s197, %s199
      %p203 = scmp.eq.s32.totalorder %s14, 0
      %p204 = por %p202, %p203
      %p205 = scmp.ne.s32.totalorder %s197, %s199
      %p206 = scmp.eq.s32.totalorder %s19, 1
      %p207 = por %p205, %p206
      %p208 = scmp.ne.s32.totalorder %s199, %s200
      %p209 = scmp.eq.s32.totalorder %s19, 0
      %p210 = por %p208, %p209
      %p211 = scmp.ne.s32.totalorder %s199, %s200
      %p212 = scmp.eq.s32.totalorder %s20, 1
      %p213 = por %p211, %p212
      %p215 = scmp.ne.s32.totalorder %s200, %s214
      %p216 = scmp.eq.s32.totalorder %s20, 0
      %p217 = por %p215, %p216
      %s218 = ssub.s32 %s21, %s33
      %s219 = ssub.s32 %s22, %s29
      %s220 = sor.u32 %s218, %s219
      %p221 = scmp.eq.s32.totalorder %s220, 0
      %s223 = sadd.s32 %s222, 1
      %s224 = scalar_select %p221, %s222, %s223
      %p227 = pneg %p221
      %p228 = scmp.eq.s32.totalorder %s14, 1
      %p229 = por %p227, %p228
      %p230 = scmp.ne.s32.totalorder %s222, %s225
      %p231 = scmp.eq.s32.totalorder %s14, 0
      %p232 = por %p230, %p231
      %p233 = scmp.ne.s32.totalorder %s222, %s225
      %p234 = scmp.eq.s32.totalorder %s19, 1
      %p235 = por %p233, %p234
      %p236 = scmp.ne.s32.totalorder %s225, %s226
      %p237 = scmp.eq.s32.totalorder %s19, 0
      %p238 = por %p236, %p237
      %p239 = scmp.ne.s32.totalorder %s225, %s226
      %p240 = scmp.eq.s32.totalorder %s20, 1
      %p241 = por %p239, %p240
      %p243 = scmp.ne.s32.totalorder %s226, %s242
      %p244 = scmp.eq.s32.totalorder %s20, 0
      %p245 = por %p243, %p244
      %p246 = scmp.le.s32.totalorder 1, %s14
      %p247 = scmp.lt.s32.totalorder %s14, 3
      %p248 = pnand %p246, %p247
      %p249 = pneg %p248
      // Predicated region
      $region9: #{netf_forward.4} parent=5 // pred_check
        _
      $region10: #{netf_forward.4} parent=5 // pred_check_branch
        %251 = sbr.rel (%p248) target = $region12
      $region11: #{netf_forward.4} parent=5 // pred_region
        %s252 = ssub.s32 %s14, 1
        // Predicated region
        $region13: #{netf_forward.4} parent=11 // pred_check
          %p253 = pneg %p147
        $region14: #{netf_forward.4} parent=11 // pred_check_branch
          %255 = sbr.rel (%p253) target = $region16
        $region15: #{netf_forward.4} parent=11 // pred_region
          _
        $region16: #{netf_forward.4} parent=11 // pred_fallthru
          _
        // Predicated region
        $region17: #{netf_forward.4} parent=11 // pred_check
          %p256 = pneg %p168
        $region18: #{netf_forward.4} parent=11 // pred_check_branch
          %258 = sbr.rel (%p256) target = $region20
        $region19: #{netf_forward.4} parent=11 // pred_region
          _
        $region20: #{netf_forward.4} parent=11 // pred_fallthru
          _
        // Predicated region
        $region21: #{netf_forward.4} parent=11 // pred_check
          %p259 = pneg %p189
        $region22: #{netf_forward.4} parent=11 // pred_check_branch
          %261 = sbr.rel (%p259) target = $region24
        $region23: #{netf_forward.4} parent=11 // pred_region
          _
        $region24: #{netf_forward.4} parent=11 // pred_fallthru
          _
        // Predicated region
        $region25: #{netf_forward.4} parent=11 // pred_check
          %p262 = pneg %p210
        $region26: #{netf_forward.4} parent=11 // pred_check_branch
          %264 = sbr.rel (%p262) target = $region28
        $region27: #{netf_forward.4} parent=11 // pred_region
          %266 = vsyncadd [#allocation3], 0
          %s268 = sshll.u32 %s6, 4
          %s269 = int_to_ptr.hbm [resolvable:$true] %s268
          %s270 = sshll.u32 [#allocation2], 4
          %s271 = int_to_ptr.vmem [resolvable:$true] %s270
          %273 = dma.hbm_to_vmem [thread:$0]  %s269, 16, %s271, [#allocation3]
        $region28: #{netf_forward.4} parent=11 // pred_fallthru
          _
      $region12: #{netf_forward.4} parent=5 // pred_fallthru
        _
      %p274 = scmp.lt.s32.totalorder %s14, 2
      // Predicated region
      $region29: #{netf_forward.4} parent=5 // pred_check
        %p275 = pneg %p274
      $region30: #{netf_forward.4} parent=5 // pred_check_branch
        %277 = sbr.rel (%p275) target = $region32
      $region31: #{netf_forward.4} parent=5 // pred_region
        // Predicated region
        $region33: #{netf_forward.4} parent=31 // pred_check
          %p278 = pneg %p56
        $region34: #{netf_forward.4} parent=31 // pred_check_branch
          %280 = sbr.rel (%p278) target = $region36
        $region35: #{netf_forward.4} parent=31 // pred_region
          %s281 = smul.u32 %s22, 16
          %s282 = ssub.s32 %s281, 1
          %p283 = scmp.gt.s32.totalorder %s282, 0
          %s284 = scalar_select %p283, %s282, 0
          %p285 = scmp.lt.s32.totalorder %s21, 1
          %s286 = scalar_select %p285, %s21, 1
          %p287 = scmp.lt.s32.totalorder %s284, 15
          %s288 = scalar_select %p287, %s284, 15
          %s289 = smul.addr %s288, 2
          %s290 = smul.addr %s286, 32
          %s291 = sadd.s32 %s289, %s290
          %s292 = smul.addr %s291, 8
          %s293 = scalar_lea.vmem %s0, %s292
          %s294 = smul.u32 %s22, 16
          %s295 = ssub.s32 %s294, 1
          %p296 = scmp.gt.s32.totalorder %s295, 0
          %s297 = scalar_select %p296, %s295, 0
        $region36: #{netf_forward.4} parent=31 // pred_fallthru
          _
        // Predicated region
        $region37: #{netf_forward.4} parent=31 // pred_check
          %p298 = pneg %p84
        $region38: #{netf_forward.4} parent=31 // pred_check_branch
          %300 = sbr.rel (%p298) target = $region40
        $region39: #{netf_forward.4} parent=31 // pred_region
          %s301 = smul.u32 16, %s22
          %p302 = scmp.lt.s32.totalorder %s21, 1
          %s303 = scalar_select %p302, %s21, 1
          %p304 = scmp.lt.s32.totalorder %s301, 15
          %s305 = scalar_select %p304, %s301, 15
          %s306 = smul.addr %s305, 2
          %s307 = smul.addr %s303, 32
          %s308 = sadd.s32 %s306, %s307
          %s309 = smul.addr %s308, 8
          %s310 = scalar_lea.vmem %s1, %s309
          %s311 = smul.u32 16, %s22
        $region40: #{netf_forward.4} parent=31 // pred_fallthru
          _
        // Predicated region
        $region41: #{netf_forward.4} parent=31 // pred_check
          %p312 = pneg %p120
        $region42: #{netf_forward.4} parent=31 // pred_check_branch
          %314 = sbr.rel (%p312) target = $region44
        $region43: #{netf_forward.4} parent=31 // pred_region
          %s315 = smul.u32 %s22, 16
          %s316 = sadd.s32 %s315, 16
          %p317 = scmp.lt.s32.totalorder %s316, 15
          %s318 = scalar_select %p317, %s316, 15
          %p319 = scmp.lt.s32.totalorder %s21, 1
          %s320 = scalar_select %p319, %s21, 1
          %p321 = scmp.lt.s32.totalorder %s318, 15
          %s322 = scalar_select %p321, %s318, 15
          %s323 = smul.addr %s322, 2
          %s324 = smul.addr %s320, 32
          %s325 = sadd.s32 %s323, %s324
          %s326 = smul.addr %s325, 8
          %s327 = scalar_lea.vmem %s2, %s326
          %s328 = smul.u32 %s22, 16
          %s329 = sadd.s32 %s328, 16
          %p330 = scmp.lt.s32.totalorder %s329, 15
          %s331 = scalar_select %p330, %s329, 15
        $region44: #{netf_forward.4} parent=31 // pred_fallthru
          _
      $region32: #{netf_forward.4} parent=5 // pred_fallthru
        _
      %p332 = scmp.le.s32.totalorder 1, %s14
      %p333 = scmp.lt.s32.totalorder %s14, 3
      %p334 = pnand %p332, %p333
      %p335 = pneg %p334
      // Predicated region
      $region45: #{netf_forward.4} parent=5 // pred_check
        _
      $region46: #{netf_forward.4} parent=5 // pred_check_branch
        %337 = sbr.rel (%p334) target = $region48
      $region47: #{netf_forward.4} parent=5 // pred_region
        %s338 = ssub.s32 %s14, 1
        // Predicated region
        $region49: #{netf_forward.4} parent=47 // pred_check
          %p339 = pneg %p210
        $region50: #{netf_forward.4} parent=47 // pred_check_branch
          %341 = sbr.rel (%p339) target = $region52
        $region51: #{netf_forward.4} parent=47 // pred_region
          %343 = dma.done [#allocation3], 16
        $region52: #{netf_forward.4} parent=47 // pred_fallthru
          _
        %s344 = smul.u32 %s24, 16
        %s345 = ssub.s32 %s344, 1
        %p346 = scmp.gt.s32.totalorder %s345, 0
        %s347 = scalar_select %p346, %s345, 0
        %p348 = scmp.lt.s32.totalorder %s23, 1
        %s349 = scalar_select %p348, %s23, 1
        %p350 = scmp.lt.s32.totalorder %s347, 15
        %s351 = scalar_select %p350, %s347, 15
        %s352 = smul.addr %s351, 2
        %s353 = smul.addr %s349, 32
        %s354 = sadd.s32 %s352, %s353
        %s355 = smul.addr %s354, 8
        %s356 = scalar_lea.vmem %s0, %s355
        %p357 = pneg %p62
        %p358 = pneg %p59
        %s359 = smul.u32 16, %s24
        %p360 = scmp.lt.s32.totalorder %s23, 1
        %s361 = scalar_select %p360, %s23, 1
        %p362 = scmp.lt.s32.totalorder %s359, 15
        %s363 = scalar_select %p362, %s359, 15
        %s364 = smul.addr %s363, 2
        %s365 = smul.addr %s361, 32
        %s366 = sadd.s32 %s364, %s365
        %s367 = smul.addr %s366, 8
        %s368 = scalar_lea.vmem %s1, %s367
        %p369 = pneg %p90
        %p370 = pneg %p87
        %s371 = smul.u32 %s24, 16
        %s372 = sadd.s32 %s371, 16
        %p373 = scmp.lt.s32.totalorder %s372, 15
        %s374 = scalar_select %p373, %s372, 15
        %p375 = scmp.lt.s32.totalorder %s23, 1
        %s376 = scalar_select %p375, %s23, 1
        %p377 = scmp.lt.s32.totalorder %s374, 15
        %s378 = scalar_select %p377, %s374, 15
        %s379 = smul.addr %s378, 2
        %s380 = smul.addr %s376, 32
        %s381 = sadd.s32 %s379, %s380
        %s382 = smul.addr %s381, 8
        %s383 = scalar_lea.vmem %s2, %s382
        %p384 = pneg %p126
        %p385 = pneg %p123
        %p386 = pneg %p147
        %p387 = pneg %p144
        %p388 = pneg %p168
        %p389 = pneg %p165
        %p390 = pneg %p189
        %p391 = pneg %p186
        %p392 = pneg %p210
        %p393 = pneg %p207
        %p394 = pneg %p238
        %p395 = pneg %p235
        %s396 = smul.u32 16, %s24
        %p397 = scmp.lt.s32.totalorder %s23, 1
        %s398 = scalar_select %p397, %s23, 1
        %p399 = scmp.lt.s32.totalorder %s396, 15
        %s400 = scalar_select %p399, %s396, 15
        %s401 = smul.addr %s400, 2
        %s402 = smul.addr %s398, 32
        %s403 = sadd.s32 %s401, %s402
        %s404 = smul.addr %s403, 4
        %s405 = scalar_lea.vmem %s7, %s404
        %s406 = smul.u32 %s24, 16
        %s407 = ssub.s32 %s406, 1
        %p408 = scmp.gt.s32.totalorder %s407, 0
        %s409 = scalar_select %p408, %s407, 0
        %p410 = scmp.lt.s32.totalorder %s23, 1
        %s411 = scalar_select %p410, %s23, 1
        %p412 = scmp.lt.s32.totalorder %s409, 15
        %s413 = scalar_select %p412, %s409, 15
        %s414 = smul.addr %s413, 2
        %s415 = smul.addr %s411, 32
        %s416 = sadd.s32 %s414, %s415
        %s417 = smul.addr %s416, 8
        %s418 = scalar_lea.vmem %s0, %s417
        %s419 = smul.u32 %s24, 16
        %s420 = ssub.s32 %s419, 1
        %p421 = scmp.gt.s32.totalorder %s420, 0
        %s422 = scalar_select %p421, %s420, 0
        %s423 = smul.u32 16, %s24
        %p424 = scmp.lt.s32.totalorder %s23, 1
        %s425 = scalar_select %p424, %s23, 1
        %p426 = scmp.lt.s32.totalorder %s423, 15
        %s427 = scalar_select %p426, %s423, 15
        %s428 = smul.addr %s427, 2
        %s429 = smul.addr %s425, 32
        %s430 = sadd.s32 %s428, %s429
        %s431 = smul.addr %s430, 8
        %s432 = scalar_lea.vmem %s1, %s431
        %s433 = smul.u32 16, %s24
        %s434 = smul.u32 %s24, 16
        %s435 = sadd.s32 %s434, 16
        %p436 = scmp.lt.s32.totalorder %s435, 15
        %s437 = scalar_select %p436, %s435, 15
        %p438 = scmp.lt.s32.totalorder %s23, 1
        %s439 = scalar_select %p438, %s23, 1
        %p440 = scmp.lt.s32.totalorder %s437, 15
        %s441 = scalar_select %p440, %s437, 15
        %s442 = smul.addr %s441, 2
        %s443 = smul.addr %s439, 32
        %s444 = sadd.s32 %s442, %s443
        %s445 = smul.addr %s444, 8
        %s446 = scalar_lea.vmem %s2, %s445
        %s447 = smul.u32 %s24, 16
        %s448 = sadd.s32 %s447, 16
        %p449 = scmp.lt.s32.totalorder %s448, 15
        %s450 = scalar_select %p449, %s448, 15
        %s451 = smul.u32 16, %s24
        %p452 = scmp.lt.s32.totalorder %s23, 1
        %s453 = scalar_select %p452, %s23, 1
        %p454 = scmp.lt.s32.totalorder %s451, 15
        %s455 = scalar_select %p454, %s451, 15
        %s456 = smul.addr %s455, 2
        %s457 = smul.addr %s453, 32
        %s458 = sadd.s32 %s456, %s457
        %s459 = smul.addr %s458, 4
        %s460 = scalar_lea.vmem %s7, %s459
        %s461 = smul.u32 16, %s24
        %v463 = vld [vmem:[%s418] sm:$0xff]
        %v464 = vld [vmem:[%s418 + $0x8] sm:$0xff]
        %v465 = vld [vmem:[%s432] sm:$0xff]
        %v466 = vld [vmem:[%s432 + $0x8] sm:$0xff]
        %v467 = vld [vmem:[%s432 + $0x10] sm:$0xff]
        %v468 = vld [vmem:[%s432 + $0x18] sm:$0xff]
        %v469 = vld [vmem:[%s432 + $0x20] sm:$0xff]
        %v470 = vld [vmem:[%s432 + $0x28] sm:$0xff]
        %v471 = vld [vmem:[%s432 + $0x30] sm:$0xff]
        %v472 = vld [vmem:[%s432 + $0x38] sm:$0xff]
        %v473 = vld [vmem:[%s432 + $0x40] sm:$0xff]
        %v474 = vld [vmem:[%s432 + $0x48] sm:$0xff]
        %v475 = vld [vmem:[%s432 + $0x50] sm:$0xff]
        %v476 = vld [vmem:[%s432 + $0x58] sm:$0xff]
        %v477 = vld [vmem:[%s432 + $0x60] sm:$0xff]
        %v478 = vld [vmem:[%s432 + $0x68] sm:$0xff]
        %v479 = vld [vmem:[%s432 + $0x70] sm:$0xff]
        %v480 = vld [vmem:[%s432 + $0x78] sm:$0xff]
        %v481 = vld [vmem:[%s432 + $0x80] sm:$0xff]
        %v482 = vld [vmem:[%s432 + $0x88] sm:$0xff]
        %v483 = vld [vmem:[%s432 + $0x90] sm:$0xff]
        %v484 = vld [vmem:[%s432 + $0x98] sm:$0xff]
        %v485 = vld [vmem:[%s432 + $0xa0] sm:$0xff]
        %v486 = vld [vmem:[%s432 + $0xa8] sm:$0xff]
        %v487 = vld [vmem:[%s432 + $0xb0] sm:$0xff]
        %v488 = vld [vmem:[%s432 + $0xb8] sm:$0xff]
        %v489 = vld [vmem:[%s432 + $0xc0] sm:$0xff]
        %v490 = vld [vmem:[%s432 + $0xc8] sm:$0xff]
        %v491 = vld [vmem:[%s432 + $0xd0] sm:$0xff]
        %v492 = vld [vmem:[%s432 + $0xd8] sm:$0xff]
        %v493 = vld [vmem:[%s432 + $0xe0] sm:$0xff]
        %v494 = vld [vmem:[%s432 + $0xe8] sm:$0xff]
        %v495 = vld [vmem:[%s432 + $0xf0] sm:$0xff]
        %v496 = vld [vmem:[%s432 + $0xf8] sm:$0xff]
        %v497 = vld [vmem:[%s446] sm:$0xff]
        %v498 = vld [vmem:[%s446 + $0x8] sm:$0xff]
        %v499 = vld [vmem:[%s5] sm:$0x1]
        %v500 = vld [vmem:[#allocation2] sm:$0x1]
        %v502 = vperm.slane %v499, 0
        %v504 = vmul.f32 %v463, %v502
        %v505 = vmul.f32 %v464, %v502
        %v507 = vperm.slane %v500, 0
        %v509 = vadd.f32 %v504, %v507
        %v510 = vadd.f32 %v505, %v507
        %v511 = vmul.f32 %v465, %v502
        %v512 = vmul.f32 %v466, %v502
        %v513 = vmul.f32 %v467, %v502
        %v514 = vmul.f32 %v468, %v502
        %v515 = vmul.f32 %v469, %v502
        %v516 = vmul.f32 %v470, %v502
        %v517 = vmul.f32 %v471, %v502
        %v518 = vmul.f32 %v472, %v502
        %v519 = vmul.f32 %v473, %v502
        %v520 = vmul.f32 %v474, %v502
        %v521 = vmul.f32 %v475, %v502
        %v522 = vmul.f32 %v476, %v502
        %v523 = vmul.f32 %v477, %v502
        %v524 = vmul.f32 %v478, %v502
        %v525 = vmul.f32 %v479, %v502
        %v526 = vmul.f32 %v480, %v502
        %v527 = vmul.f32 %v481, %v502
        %v528 = vmul.f32 %v482, %v502
        %v529 = vmul.f32 %v483, %v502
        %v530 = vmul.f32 %v484, %v502
        %v531 = vmul.f32 %v485, %v502
        %v532 = vmul.f32 %v486, %v502
        %v533 = vmul.f32 %v487, %v502
        %v534 = vmul.f32 %v488, %v502
        %v535 = vmul.f32 %v489, %v502
        %v536 = vmul.f32 %v490, %v502
        %v537 = vmul.f32 %v491, %v502
        %v538 = vmul.f32 %v492, %v502
        %v539 = vmul.f32 %v493, %v502
        %v540 = vmul.f32 %v494, %v502
        %v541 = vmul.f32 %v495, %v502
        %v542 = vmul.f32 %v496, %v502
        %v543 = vadd.f32 %v511, %v507
        %v544 = vadd.f32 %v512, %v507
        %v545 = vadd.f32 %v513, %v507
        %v546 = vadd.f32 %v514, %v507
        %v547 = vadd.f32 %v515, %v507
        %v548 = vadd.f32 %v516, %v507
        %v549 = vadd.f32 %v517, %v507
        %v550 = vadd.f32 %v518, %v507
        %v551 = vadd.f32 %v519, %v507
        %v552 = vadd.f32 %v520, %v507
        %v553 = vadd.f32 %v521, %v507
        %v554 = vadd.f32 %v522, %v507
        %v555 = vadd.f32 %v523, %v507
        %v556 = vadd.f32 %v524, %v507
        %v557 = vadd.f32 %v525, %v507
        %v558 = vadd.f32 %v526, %v507
        %v559 = vadd.f32 %v527, %v507
        %v560 = vadd.f32 %v528, %v507
        %v561 = vadd.f32 %v529, %v507
        %v562 = vadd.f32 %v530, %v507
        %v563 = vadd.f32 %v531, %v507
        %v564 = vadd.f32 %v532, %v507
        %v565 = vadd.f32 %v533, %v507
        %v566 = vadd.f32 %v534, %v507
        %v567 = vadd.f32 %v535, %v507
        %v568 = vadd.f32 %v536, %v507
        %v569 = vadd.f32 %v537, %v507
        %v570 = vadd.f32 %v538, %v507
        %v571 = vadd.f32 %v539, %v507
        %v572 = vadd.f32 %v540, %v507
        %v573 = vadd.f32 %v541, %v507
        %v574 = vadd.f32 %v542, %v507
        %v575 = vmul.f32 %v497, %v502
        %v576 = vmul.f32 %v498, %v502
        %v577 = vadd.f32 %v575, %v507
        %v578 = vadd.f32 %v576, %v507
        %p579 = scmp.gt.s32.totalorder %s24, 0
        %s580 = scalar_select %p579, 1, 0
        %s581 = scvt.s32.f32 %s580
        %v582 = vstv %s581
        %v583 = vmul.f32 %v509, %v582
        %v584 = vmul.f32 %v510, %v582
        %p585 = scmp.lt.s32.totalorder %s24, 0
        %s586 = scalar_select %p585, 1, 0
        %s587 = scvt.s32.f32 %s586
        %v588 = vstv %s587
        %v589 = vmul.f32 %v577, %v588
        %v590 = vmul.f32 %v578, %v588
        %v591 = vpack.c.bf16 %v583, %v583
        %v592 = vpack.c.bf16 %v584, %v584
        %v593 = vpack.c.bf16 %v543, %v543
        %v594 = vpack.c.bf16 %v544, %v544
        %v595 = vpack.c.bf16 %v545, %v545
        %v596 = vpack.c.bf16 %v546, %v546
        %v597 = vpack.c.bf16 %v547, %v547
        %v598 = vpack.c.bf16 %v548, %v548
        %v599 = vpack.c.bf16 %v549, %v549
        %v600 = vpack.c.bf16 %v550, %v550
        %v601 = vpack.c.bf16 %v551, %v551
        %v602 = vpack.c.bf16 %v552, %v552
        %v603 = vpack.c.bf16 %v553, %v553
        %v604 = vpack.c.bf16 %v554, %v554
        %v605 = vpack.c.bf16 %v555, %v555
        %v606 = vpack.c.bf16 %v556, %v556
        %v607 = vpack.c.bf16 %v557, %v557
        %v608 = vpack.c.bf16 %v558, %v558
        %v609 = vpack.c.bf16 %v559, %v559
        %v610 = vpack.c.bf16 %v560, %v560
        %v611 = vpack.c.bf16 %v561, %v561
        %v612 = vpack.c.bf16 %v562, %v562
        %v613 = vpack.c.bf16 %v563, %v563
        %v614 = vpack.c.bf16 %v564, %v564
        %v615 = vpack.c.bf16 %v565, %v565
        %v616 = vpack.c.bf16 %v566, %v566
        %v617 = vpack.c.bf16 %v567, %v567
        %v618 = vpack.c.bf16 %v568, %v568
        %v619 = vpack.c.bf16 %v569, %v569
        %v620 = vpack.c.bf16 %v570, %v570
        %v621 = vpack.c.bf16 %v571, %v571
        %v622 = vpack.c.bf16 %v572, %v572
        %v623 = vpack.c.bf16 %v573, %v573
        %v624 = vpack.c.bf16 %v574, %v574
        %v625 = vpack.c.bf16 %v589, %v589
        %v626 = vpack.c.bf16 %v590, %v590
        %v663 = vunpack.c.l.b16 %v591
        %v664 = vunpack.c.l.b16 %v592
        %v665 = vunpack.c.l.b16 %v593
        %v666 = vunpack.c.l.b16 %v594
        %v667 = vunpack.c.l.b16 %v595
        %v668 = vunpack.c.l.b16 %v596
        %v669 = vunpack.c.l.b16 %v597
        %v670 = vunpack.c.l.b16 %v598
        %v671 = vunpack.c.l.b16 %v599
        %v672 = vunpack.c.l.b16 %v600
        %v673 = vunpack.c.l.b16 %v601
        %v674 = vunpack.c.l.b16 %v602
        %v675 = vunpack.c.l.b16 %v603
        %v676 = vunpack.c.l.b16 %v604
        %v677 = vunpack.c.l.b16 %v605
        %v678 = vunpack.c.l.b16 %v606
        %v679 = vunpack.c.l.b16 %v607
        %v680 = vunpack.c.l.b16 %v608
        %v681 = vunpack.c.l.b16 %v609
        %v682 = vunpack.c.l.b16 %v610
        %v683 = vunpack.c.l.b16 %v611
        %v684 = vunpack.c.l.b16 %v612
        %v685 = vunpack.c.l.b16 %v613
        %v686 = vunpack.c.l.b16 %v614
        %v687 = vunpack.c.l.b16 %v615
        %v688 = vunpack.c.l.b16 %v616
        %v689 = vunpack.c.l.b16 %v617
        %v690 = vunpack.c.l.b16 %v618
        %v691 = vunpack.c.l.b16 %v619
        %v692 = vunpack.c.l.b16 %v620
        %v693 = vunpack.c.l.b16 %v621
        %v694 = vunpack.c.l.b16 %v622
        %v695 = vunpack.c.l.b16 %v623
        %v696 = vunpack.c.l.b16 %v624
        %v697 = vunpack.c.l.b16 %v625
        %v698 = vunpack.c.l.b16 %v626
        %v699 = vpack.c.b16 %v664, %v663
        %v700 = vpack.c.b16 %v666, %v665
        %v701 = vpack.c.b16 %v668, %v667
        %v702 = vpack.c.b16 %v670, %v669
        %v703 = vpack.c.b16 %v672, %v671
        %v704 = vpack.c.b16 %v674, %v673
        %v705 = vpack.c.b16 %v676, %v675
        %v706 = vpack.c.b16 %v678, %v677
        %v707 = vpack.c.b16 %v680, %v679
        %v708 = vpack.c.b16 %v682, %v681
        %v709 = vpack.c.b16 %v684, %v683
        %v710 = vpack.c.b16 %v686, %v685
        %v711 = vpack.c.b16 %v688, %v687
        %v712 = vpack.c.b16 %v690, %v689
        %v713 = vpack.c.b16 %v692, %v691
        %v714 = vpack.c.b16 %v694, %v693
        %v715 = vpack.c.b16 %v696, %v695
        %v716 = vpack.c.b16 %v698, %v697
        %v718 = vshrl.u32 %v699, 16
        %v720 = vrot.slane %v718, 7
        %v721 = vshll.u32 %v699, 16
        %v723 = vor.u32 %v720, %v721
        %v725 = vshrl.u32 %v700, 16
        %v727 = vrot.slane %v725, 7
        %v728 = vshll.u32 %v700, 16
        %v730 = vor.u32 %v727, %v728
        %v732 = vshrl.u32 %v701, 16
        %v734 = vrot.slane %v732, 7
        %v735 = vshll.u32 %v701, 16
        %v737 = vor.u32 %v734, %v735
        %v739 = vshrl.u32 %v702, 16
        %v741 = vrot.slane %v739, 7
        %v742 = vshll.u32 %v702, 16
        %v744 = vor.u32 %v741, %v742
        %v746 = vshrl.u32 %v703, 16
        %v748 = vrot.slane %v746, 7
        %v749 = vshll.u32 %v703, 16
        %v751 = vor.u32 %v748, %v749
        %v753 = vshrl.u32 %v704, 16
        %v755 = vrot.slane %v753, 7
        %v756 = vshll.u32 %v704, 16
        %v758 = vor.u32 %v755, %v756
        %v760 = vshrl.u32 %v705, 16
        %v762 = vrot.slane %v760, 7
        %v763 = vshll.u32 %v705, 16
        %v765 = vor.u32 %v762, %v763
        %v767 = vshrl.u32 %v706, 16
        %v769 = vrot.slane %v767, 7
        %v770 = vshll.u32 %v706, 16
        %v772 = vor.u32 %v769, %v770
        %v774 = vshrl.u32 %v707, 16
        %v776 = vrot.slane %v774, 7
        %v777 = vshll.u32 %v707, 16
        %v779 = vor.u32 %v776, %v777
        %v781 = vshrl.u32 %v708, 16
        %v783 = vrot.slane %v781, 7
        %v784 = vshll.u32 %v708, 16
        %v786 = vor.u32 %v783, %v784
        %v788 = vshrl.u32 %v709, 16
        %v790 = vrot.slane %v788, 7
        %v791 = vshll.u32 %v709, 16
        %v793 = vor.u32 %v790, %v791
        %v795 = vshrl.u32 %v710, 16
        %v797 = vrot.slane %v795, 7
        %v798 = vshll.u32 %v710, 16
        %v800 = vor.u32 %v797, %v798
        %v802 = vshrl.u32 %v711, 16
        %v804 = vrot.slane %v802, 7
        %v805 = vshll.u32 %v711, 16
        %v807 = vor.u32 %v804, %v805
        %v809 = vshrl.u32 %v712, 16
        %v811 = vrot.slane %v809, 7
        %v812 = vshll.u32 %v712, 16
        %v814 = vor.u32 %v811, %v812
        %v816 = vshrl.u32 %v713, 16
        %v818 = vrot.slane %v816, 7
        %v819 = vshll.u32 %v713, 16
        %v821 = vor.u32 %v818, %v819
        %v823 = vshrl.u32 %v714, 16
        %v825 = vrot.slane %v823, 7
        %v826 = vshll.u32 %v714, 16
        %v828 = vor.u32 %v825, %v826
        %v830 = vshrl.u32 %v715, 16
        %v832 = vrot.slane %v830, 7
        %v833 = vshll.u32 %v715, 16
        %v835 = vor.u32 %v832, %v833
        %v837 = vshrl.u32 %v716, 16
        %v839 = vrot.slane %v837, 7
        %v840 = vshll.u32 %v716, 16
        %v842 = vor.u32 %v839, %v840
        %vm861 = vcmask 1040384
        %vm862 = vsmask.f32 256
        %vm863 = vmand %vm861, %vm862
        %v864 = vsel %vm863, 0, %v723
        %v865 = vsel %vm863, 0, %v730
        %v866 = vsel %vm863, 0, %v737
        %v867 = vsel %vm863, 0, %v744
        %v868 = vsel %vm863, 0, %v751
        %v869 = vsel %vm863, 0, %v758
        %v870 = vsel %vm863, 0, %v765
        %v871 = vsel %vm863, 0, %v772
        %v872 = vsel %vm863, 0, %v779
        %v873 = vsel %vm863, 0, %v786
        %v874 = vsel %vm863, 0, %v793
        %v875 = vsel %vm863, 0, %v800
        %v876 = vsel %vm863, 0, %v807
        %v877 = vsel %vm863, 0, %v814
        %v878 = vsel %vm863, 0, %v821
        %v879 = vsel %vm863, 0, %v828
        %v880 = vsel %vm863, 0, %v835
        %v881 = vsel %vm863, 0, %v842
        %v882 = vrot.slane %v721, 1
        %v883 = vor.u32 %v718, %v882
        %v884 = vrot.slane %v728, 1
        %v885 = vor.u32 %v725, %v884
        %v886 = vrot.slane %v735, 1
        %v887 = vor.u32 %v732, %v886
        %v888 = vrot.slane %v742, 1
        %v889 = vor.u32 %v739, %v888
        %v890 = vrot.slane %v749, 1
        %v891 = vor.u32 %v746, %v890
        %v892 = vrot.slane %v756, 1
        %v893 = vor.u32 %v753, %v892
        %v894 = vrot.slane %v763, 1
        %v895 = vor.u32 %v760, %v894
        %v896 = vrot.slane %v770, 1
        %v897 = vor.u32 %v767, %v896
        %v898 = vrot.slane %v777, 1
        %v899 = vor.u32 %v774, %v898
        %v900 = vrot.slane %v784, 1
        %v901 = vor.u32 %v781, %v900
        %v902 = vrot.slane %v791, 1
        %v903 = vor.u32 %v788, %v902
        %v904 = vrot.slane %v798, 1
        %v905 = vor.u32 %v795, %v904
        %v906 = vrot.slane %v805, 1
        %v907 = vor.u32 %v802, %v906
        %v908 = vrot.slane %v812, 1
        %v909 = vor.u32 %v809, %v908
        %v910 = vrot.slane %v819, 1
        %v911 = vor.u32 %v816, %v910
        %v912 = vrot.slane %v826, 1
        %v913 = vor.u32 %v823, %v912
        %v914 = vrot.slane %v833, 1
        %v915 = vor.u32 %v830, %v914
        %v916 = vrot.slane %v840, 1
        %v917 = vor.u32 %v837, %v916
        %vm936 = vcmask 1047552
        %vm937 = vsmask.f32 7424
        %vm938 = vmand %vm936, %vm937
        %v939 = vsel %vm938, %v883, 0
        %v940 = vsel %vm938, %v885, 0
        %v941 = vsel %vm938, %v887, 0
        %v942 = vsel %vm938, %v889, 0
        %v943 = vsel %vm938, %v891, 0
        %v944 = vsel %vm938, %v893, 0
        %v945 = vsel %vm938, %v895, 0
        %v946 = vsel %vm938, %v897, 0
        %v947 = vsel %vm938, %v899, 0
        %v948 = vsel %vm938, %v901, 0
        %v949 = vsel %vm938, %v903, 0
        %v950 = vsel %vm938, %v905, 0
        %v951 = vsel %vm938, %v907, 0
        %v952 = vsel %vm938, %v909, 0
        %v953 = vsel %vm938, %v911, 0
        %v954 = vsel %vm938, %v913, 0
        %v955 = vsel %vm938, %v915, 0
        %v956 = vsel %vm938, %v917, 0
        %957 = vrot.lane.b32.xlu0 %v699, 3
        %v958 = vpop.permute.xlu0 %957
        %959 = vrot.lane.b32.xlu0 %v700, 3
        %v960 = vpop.permute.xlu0 %959
        %961 = vrot.lane.b32.xlu0 %v701, 3
        %v962 = vpop.permute.xlu0 %961
        %963 = vrot.lane.b32.xlu0 %v702, 3
        %v964 = vpop.permute.xlu0 %963
        %965 = vrot.lane.b32.xlu0 %v703, 3
        %v966 = vpop.permute.xlu0 %965
        %967 = vrot.lane.b32.xlu0 %v704, 3
        %v968 = vpop.permute.xlu0 %967
        %969 = vrot.lane.b32.xlu0 %v705, 3
        %v970 = vpop.permute.xlu0 %969
        %971 = vrot.lane.b32.xlu0 %v706, 3
        %v972 = vpop.permute.xlu0 %971
        %973 = vrot.lane.b32.xlu0 %v707, 3
        %v974 = vpop.permute.xlu0 %973
        %975 = vrot.lane.b32.xlu0 %v708, 3
        %v976 = vpop.permute.xlu0 %975
        %977 = vrot.lane.b32.xlu0 %v709, 3
        %v978 = vpop.permute.xlu0 %977
        %979 = vrot.lane.b32.xlu0 %v710, 3
        %v980 = vpop.permute.xlu0 %979
        %981 = vrot.lane.b32.xlu0 %v711, 3
        %v982 = vpop.permute.xlu0 %981
        %983 = vrot.lane.b32.xlu0 %v712, 3
        %v984 = vpop.permute.xlu0 %983
        %985 = vrot.lane.b32.xlu0 %v713, 3
        %v986 = vpop.permute.xlu0 %985
        %987 = vrot.lane.b32.xlu0 %v714, 3
        %v988 = vpop.permute.xlu0 %987
        %989 = vrot.lane.b32.xlu0 %v715, 3
        %v990 = vpop.permute.xlu0 %989
        %991 = vrot.lane.b32.xlu0 %v716, 3
        %v992 = vpop.permute.xlu0 %991
        %1011 = vrot.lane.b32.xlu0 %v939, 6
        %v1012 = vpop.permute.xlu0 %1011
        %1013 = vrot.lane.b32.xlu0 %v940, 6
        %v1014 = vpop.permute.xlu0 %1013
        %1015 = vrot.lane.b32.xlu0 %v941, 6
        %v1016 = vpop.permute.xlu0 %1015
        %1017 = vrot.lane.b32.xlu0 %v942, 6
        %v1018 = vpop.permute.xlu0 %1017
        %1019 = vrot.lane.b32.xlu0 %v943, 6
        %v1020 = vpop.permute.xlu0 %1019
        %1021 = vrot.lane.b32.xlu0 %v944, 6
        %v1022 = vpop.permute.xlu0 %1021
        %1023 = vrot.lane.b32.xlu0 %v945, 6
        %v1024 = vpop.permute.xlu0 %1023
        %1025 = vrot.lane.b32.xlu0 %v946, 6
        %v1026 = vpop.permute.xlu0 %1025
        %1027 = vrot.lane.b32.xlu0 %v947, 6
        %v1028 = vpop.permute.xlu0 %1027
        %1029 = vrot.lane.b32.xlu0 %v948, 6
        %v1030 = vpop.permute.xlu0 %1029
        %1031 = vrot.lane.b32.xlu0 %v949, 6
        %v1032 = vpop.permute.xlu0 %1031
        %1033 = vrot.lane.b32.xlu0 %v950, 6
        %v1034 = vpop.permute.xlu0 %1033
        %1035 = vrot.lane.b32.xlu0 %v951, 6
        %v1036 = vpop.permute.xlu0 %1035
        %1037 = vrot.lane.b32.xlu0 %v952, 6
        %v1038 = vpop.permute.xlu0 %1037
        %1039 = vrot.lane.b32.xlu0 %v953, 6
        %v1040 = vpop.permute.xlu0 %1039
        %1041 = vrot.lane.b32.xlu0 %v954, 6
        %v1042 = vpop.permute.xlu0 %1041
        %1043 = vrot.lane.b32.xlu0 %v955, 6
        %v1044 = vpop.permute.xlu0 %1043
        %1045 = vrot.lane.b32.xlu0 %v956, 6
        %v1046 = vpop.permute.xlu0 %1045
        %vm1047 = vcmask 23552
        %v1050 = vsel %vm1047, %v864, %v958
        %v1053 = vsel %vm1047, %v865, %v960
        %v1056 = vsel %vm1047, %v866, %v962
        %v1059 = vsel %vm1047, %v867, %v964
        %v1062 = vsel %vm1047, %v868, %v966
        %v1065 = vsel %vm1047, %v869, %v968
        %v1068 = vsel %vm1047, %v870, %v970
        %v1071 = vsel %vm1047, %v871, %v972
        %v1074 = vsel %vm1047, %v872, %v974
        %v1077 = vsel %vm1047, %v873, %v976
        %v1080 = vsel %vm1047, %v874, %v978
        %v1083 = vsel %vm1047, %v875, %v980
        %v1086 = vsel %vm1047, %v876, %v982
        %v1089 = vsel %vm1047, %v877, %v984
        %v1092 = vsel %vm1047, %v878, %v986
        %v1095 = vsel %vm1047, %v879, %v988
        %v1098 = vsel %vm1047, %v880, %v990
        %v1101 = vsel %vm1047, %v881, %v992
        %vm1102 = vcmask 48128
        %v1104 = vsel %vm1102, %v1050, %v1012
        %v1106 = vsel %vm1102, %v1053, %v1014
        %v1108 = vsel %vm1102, %v1056, %v1016
        %v1110 = vsel %vm1102, %v1059, %v1018
        %v1112 = vsel %vm1102, %v1062, %v1020
        %v1114 = vsel %vm1102, %v1065, %v1022
        %v1116 = vsel %vm1102, %v1068, %v1024
        %v1118 = vsel %vm1102, %v1071, %v1026
        %v1120 = vsel %vm1102, %v1074, %v1028
        %v1122 = vsel %vm1102, %v1077, %v1030
        %v1124 = vsel %vm1102, %v1080, %v1032
        %v1126 = vsel %vm1102, %v1083, %v1034
        %v1128 = vsel %vm1102, %v1086, %v1036
        %v1130 = vsel %vm1102, %v1089, %v1038
        %v1132 = vsel %vm1102, %v1092, %v1040
        %v1134 = vsel %vm1102, %v1095, %v1042
        %v1136 = vsel %vm1102, %v1098, %v1044
        %v1138 = vsel %vm1102, %v1101, %v1046
        %v1139 = vld [vmem:[%s3] sm:$0xf]
        %v1140 = vld [vmem:[%s3 + $0x4] sm:$0x1]
        %s1141 = scalar_lea.vmem %s3, 8
        %v1142 = vld [vmem:[%s1141] sm:$0xf]
        %v1143 = vld [vmem:[%s1141 + $0x4] sm:$0x1]
        %v1146 = vunpack.c.l.b16 %v1142
        %v1147 = vunpack.c.l.b16 %v1143
        %v1148 = vpack.c.b16 %v1147, %v1146
        %vm1149 = vcmask 72704
        %v1150 = vsel %vm1149, %v1106, 0
        %v1152 = vsel %vm1149, %v1108, 0
        %v1154 = vsel %vm1149, %v1110, 0
        %v1156 = vsel %vm1149, %v1112, 0
        %v1158 = vsel %vm1149, %v1114, 0
        %v1160 = vsel %vm1149, %v1116, 0
        %v1162 = vsel %vm1149, %v1118, 0
        %v1164 = vsel %vm1149, %v1120, 0
        %v1166 = vsel %vm1149, %v1122, 0
        %v1168 = vsel %vm1149, %v1124, 0
        %v1170 = vsel %vm1149, %v1126, 0
        %v1172 = vsel %vm1149, %v1128, 0
        %v1174 = vsel %vm1149, %v1130, 0
        %v1176 = vsel %vm1149, %v1132, 0
        %v1178 = vsel %vm1149, %v1134, 0
        %v1180 = vsel %vm1149, %v1136, 0
        %vm1182 = vcmask 1043456
        %vm1183 = vcmask 1044480
        %v1184 = vsel %vm1182, 4294967295, 65535
        %v1185 = vsel %vm1183, %v1184, 0
        %v1187 = vand.u32 %v1148, %v1185
        %1189 = vmatpush.bf16.msra.mxu0 0
        %1190 = vmatpush.bf16.msra.mxu0 0
        %1191 = vmatpush.bf16.msra.mxu0 0
        %1192 = vmatpush.bf16.msra.mxu0 0
        %1193 = vmatpush.bf16.msra.mxu0 0
        %1194 = vmatpush.bf16.msra.mxu0 0
        %1195 = vmatpush.bf16.msra.mxu0 0
        %1196 = vmatpush.bf16.msra.mxu0 %v1187
        %1197 = vmatmul.bf16.gmra.mxu0 %v1150
        %v1198 = vpop.f32.mrf.mxu0
        %v1199 = vadd.f32 0.0, %v1198
        %v1200 = vpop.f32.mrf.mxu0
        %v1201 = vadd.f32 0.0, %v1200
        %1202 = vmatmul.bf16.gmra.mxu0 %v1152
        %v1203 = vpop.f32.mrf.mxu0
        %v1204 = vadd.f32 0.0, %v1203
        %v1205 = vpop.f32.mrf.mxu0
        %v1206 = vadd.f32 0.0, %v1205
        %1207 = vmatmul.bf16.gmra.mxu0 %v1154
        %v1208 = vpop.f32.mrf.mxu0
        %v1209 = vadd.f32 0.0, %v1208
        %v1210 = vpop.f32.mrf.mxu0
        %v1211 = vadd.f32 0.0, %v1210
        %1212 = vmatmul.bf16.gmra.mxu0 %v1156
        %v1213 = vpop.f32.mrf.mxu0
        %v1214 = vadd.f32 0.0, %v1213
        %v1215 = vpop.f32.mrf.mxu0
        %v1216 = vadd.f32 0.0, %v1215
        %1217 = vmatmul.bf16.gmra.mxu0 %v1158
        %v1218 = vpop.f32.mrf.mxu0
        %v1219 = vadd.f32 0.0, %v1218
        %v1220 = vpop.f32.mrf.mxu0
        %v1221 = vadd.f32 0.0, %v1220
        %1222 = vmatmul.bf16.gmra.mxu0 %v1160
        %v1223 = vpop.f32.mrf.mxu0
        %v1224 = vadd.f32 0.0, %v1223
        %v1225 = vpop.f32.mrf.mxu0
        %v1226 = vadd.f32 0.0, %v1225
        %1227 = vmatmul.bf16.gmra.mxu0 %v1162
        %v1228 = vpop.f32.mrf.mxu0
        %v1229 = vadd.f32 0.0, %v1228
        %v1230 = vpop.f32.mrf.mxu0
        %v1231 = vadd.f32 0.0, %v1230
        %1232 = vmatmul.bf16.gmra.mxu0 %v1164
        %v1233 = vpop.f32.mrf.mxu0
        %v1234 = vadd.f32 0.0, %v1233
        %v1235 = vpop.f32.mrf.mxu0
        %v1236 = vadd.f32 0.0, %v1235
        %1237 = vmatmul.bf16.gmra.mxu0 %v1166
        %v1238 = vpop.f32.mrf.mxu0
        %v1239 = vadd.f32 0.0, %v1238
        %v1240 = vpop.f32.mrf.mxu0
        %v1241 = vadd.f32 0.0, %v1240
        %1242 = vmatmul.bf16.gmra.mxu0 %v1168
        %v1243 = vpop.f32.mrf.mxu0
        %v1244 = vadd.f32 0.0, %v1243
        %v1245 = vpop.f32.mrf.mxu0
        %v1246 = vadd.f32 0.0, %v1245
        %1247 = vmatmul.bf16.gmra.mxu0 %v1170
        %v1248 = vpop.f32.mrf.mxu0
        %v1249 = vadd.f32 0.0, %v1248
        %v1250 = vpop.f32.mrf.mxu0
        %v1251 = vadd.f32 0.0, %v1250
        %1252 = vmatmul.bf16.gmra.mxu0 %v1172
        %v1253 = vpop.f32.mrf.mxu0
        %v1254 = vadd.f32 0.0, %v1253
        %v1255 = vpop.f32.mrf.mxu0
        %v1256 = vadd.f32 0.0, %v1255
        %1257 = vmatmul.bf16.gmra.mxu0 %v1174
        %v1258 = vpop.f32.mrf.mxu0
        %v1259 = vadd.f32 0.0, %v1258
        %v1260 = vpop.f32.mrf.mxu0
        %v1261 = vadd.f32 0.0, %v1260
        %1262 = vmatmul.bf16.gmra.mxu0 %v1176
        %v1263 = vpop.f32.mrf.mxu0
        %v1264 = vadd.f32 0.0, %v1263
        %v1265 = vpop.f32.mrf.mxu0
        %v1266 = vadd.f32 0.0, %v1265
        %1267 = vmatmul.bf16.gmra.mxu0 %v1178
        %v1268 = vpop.f32.mrf.mxu0
        %v1269 = vadd.f32 0.0, %v1268
        %v1270 = vpop.f32.mrf.mxu0
        %v1271 = vadd.f32 0.0, %v1270
        %1272 = vmatmul.bf16.gmra.mxu0 %v1180
        %v1273 = vpop.f32.mrf.mxu0
        %v1274 = vadd.f32 0.0, %v1273
        %v1275 = vpop.f32.mrf.mxu0
        %v1276 = vadd.f32 0.0, %v1275
        %1277 = vdwg.mxu0
        %v1280 = vunpack.c.l.b16 %v1139
        %v1281 = vunpack.c.l.b16 %v1140
        %v1282 = vpack.c.b16 %v1281, %v1280
        %v1283 = vsel %vm1149, %v1104, 0
        %v1286 = vand.u32 %v1282, %v1185
        %1288 = vmatpush.bf16.msra.mxu0 0
        %1289 = vmatpush.bf16.msra.mxu0 0
        %1290 = vmatpush.bf16.msra.mxu0 0
        %1291 = vmatpush.bf16.msra.mxu0 0
        %1292 = vmatpush.bf16.msra.mxu0 0
        %1293 = vmatpush.bf16.msra.mxu0 0
        %1294 = vmatpush.bf16.msra.mxu0 0
        %1295 = vmatpush.bf16.msra.mxu0 %v1286
        %1296 = vmatmul.bf16.gmra.mxu0 %v1283
        %v1297 = vpop.f32.mrf.mxu0
        %v1298 = vadd.f32 %v1199, %v1297
        %v1299 = vpop.f32.mrf.mxu0
        %v1300 = vadd.f32 %v1201, %v1299
        %1301 = vmatmul.bf16.gmra.mxu0 %v1150
        %v1302 = vpop.f32.mrf.mxu0
        %v1303 = vadd.f32 %v1204, %v1302
        %v1304 = vpop.f32.mrf.mxu0
        %v1305 = vadd.f32 %v1206, %v1304
        %1306 = vmatmul.bf16.gmra.mxu0 %v1152
        %v1307 = vpop.f32.mrf.mxu0
        %v1308 = vadd.f32 %v1209, %v1307
        %v1309 = vpop.f32.mrf.mxu0
        %v1310 = vadd.f32 %v1211, %v1309
        %1311 = vmatmul.bf16.gmra.mxu0 %v1154
        %v1312 = vpop.f32.mrf.mxu0
        %v1313 = vadd.f32 %v1214, %v1312
        %v1314 = vpop.f32.mrf.mxu0
        %v1315 = vadd.f32 %v1216, %v1314
        %1316 = vmatmul.bf16.gmra.mxu0 %v1156
        %v1317 = vpop.f32.mrf.mxu0
        %v1318 = vadd.f32 %v1219, %v1317
        %v1319 = vpop.f32.mrf.mxu0
        %v1320 = vadd.f32 %v1221, %v1319
        %1321 = vmatmul.bf16.gmra.mxu0 %v1158
        %v1322 = vpop.f32.mrf.mxu0
        %v1323 = vadd.f32 %v1224, %v1322
        %v1324 = vpop.f32.mrf.mxu0
        %v1325 = vadd.f32 %v1226, %v1324
        %1326 = vmatmul.bf16.gmra.mxu0 %v1160
        %v1327 = vpop.f32.mrf.mxu0
        %v1328 = vadd.f32 %v1229, %v1327
        %v1329 = vpop.f32.mrf.mxu0
        %v1330 = vadd.f32 %v1231, %v1329
        %1331 = vmatmul.bf16.gmra.mxu0 %v1162
        %v1332 = vpop.f32.mrf.mxu0
        %v1333 = vadd.f32 %v1234, %v1332
        %v1334 = vpop.f32.mrf.mxu0
        %v1335 = vadd.f32 %v1236, %v1334
        %1336 = vmatmul.bf16.gmra.mxu0 %v1164
        %v1337 = vpop.f32.mrf.mxu0
        %v1338 = vadd.f32 %v1239, %v1337
        %v1339 = vpop.f32.mrf.mxu0
        %v1340 = vadd.f32 %v1241, %v1339
        %1341 = vmatmul.bf16.gmra.mxu0 %v1166
        %v1342 = vpop.f32.mrf.mxu0
        %v1343 = vadd.f32 %v1244, %v1342
        %v1344 = vpop.f32.mrf.mxu0
        %v1345 = vadd.f32 %v1246, %v1344
        %1346 = vmatmul.bf16.gmra.mxu0 %v1168
        %v1347 = vpop.f32.mrf.mxu0
        %v1348 = vadd.f32 %v1249, %v1347
        %v1349 = vpop.f32.mrf.mxu0
        %v1350 = vadd.f32 %v1251, %v1349
        %1351 = vmatmul.bf16.gmra.mxu0 %v1170
        %v1352 = vpop.f32.mrf.mxu0
        %v1353 = vadd.f32 %v1254, %v1352
        %v1354 = vpop.f32.mrf.mxu0
        %v1355 = vadd.f32 %v1256, %v1354
        %1356 = vmatmul.bf16.gmra.mxu0 %v1172
        %v1357 = vpop.f32.mrf.mxu0
        %v1358 = vadd.f32 %v1259, %v1357
        %v1359 = vpop.f32.mrf.mxu0
        %v1360 = vadd.f32 %v1261, %v1359
        %1361 = vmatmul.bf16.gmra.mxu0 %v1174
        %v1362 = vpop.f32.mrf.mxu0
        %v1363 = vadd.f32 %v1264, %v1362
        %v1364 = vpop.f32.mrf.mxu0
        %v1365 = vadd.f32 %v1266, %v1364
        %1366 = vmatmul.bf16.gmra.mxu0 %v1176
        %v1367 = vpop.f32.mrf.mxu0
        %v1368 = vadd.f32 %v1269, %v1367
        %v1369 = vpop.f32.mrf.mxu0
        %v1370 = vadd.f32 %v1271, %v1369
        %1371 = vmatmul.bf16.gmra.mxu0 %v1178
        %v1372 = vpop.f32.mrf.mxu0
        %v1373 = vadd.f32 %v1274, %v1372
        %v1374 = vpop.f32.mrf.mxu0
        %v1375 = vadd.f32 %v1276, %v1374
        %1376 = vdwg.mxu0
        %s1377 = scalar_lea.vmem %s3, 16
        %v1378 = vld [vmem:[%s1377] sm:$0xf]
        %v1379 = vld [vmem:[%s1377 + $0x4] sm:$0x1]
        %v1382 = vunpack.c.l.b16 %v1378
        %v1383 = vunpack.c.l.b16 %v1379
        %v1384 = vpack.c.b16 %v1383, %v1382
        %v1385 = vsel %vm1149, %v1138, 0
        %v1388 = vand.u32 %v1384, %v1185
        %1390 = vmatpush.bf16.msra.mxu0 0
        %1391 = vmatpush.bf16.msra.mxu0 0
        %1392 = vmatpush.bf16.msra.mxu0 0
        %1393 = vmatpush.bf16.msra.mxu0 0
        %1394 = vmatpush.bf16.msra.mxu0 0
        %1395 = vmatpush.bf16.msra.mxu0 0
        %1396 = vmatpush.bf16.msra.mxu0 0
        %1397 = vmatpush.bf16.msra.mxu0 %v1388
        %1398 = vmatmul.bf16.gmra.mxu0 %v1152
        %v1399 = vpop.f32.mrf.mxu0
        %v1400 = vadd.f32 0.0, %v1399
        %v1401 = vpop.f32.mrf.mxu0
        %v1402 = vadd.f32 0.0, %v1401
        %1403 = vmatmul.bf16.gmra.mxu0 %v1154
        %v1404 = vpop.f32.mrf.mxu0
        %v1405 = vadd.f32 0.0, %v1404
        %v1406 = vpop.f32.mrf.mxu0
        %v1407 = vadd.f32 0.0, %v1406
        %1408 = vmatmul.bf16.gmra.mxu0 %v1156
        %v1409 = vpop.f32.mrf.mxu0
        %v1410 = vadd.f32 0.0, %v1409
        %v1411 = vpop.f32.mrf.mxu0
        %v1412 = vadd.f32 0.0, %v1411
        %1413 = vmatmul.bf16.gmra.mxu0 %v1158
        %v1414 = vpop.f32.mrf.mxu0
        %v1415 = vadd.f32 0.0, %v1414
        %v1416 = vpop.f32.mrf.mxu0
        %v1417 = vadd.f32 0.0, %v1416
        %1418 = vmatmul.bf16.gmra.mxu0 %v1160
        %v1419 = vpop.f32.mrf.mxu0
        %v1420 = vadd.f32 0.0, %v1419
        %v1421 = vpop.f32.mrf.mxu0
        %v1422 = vadd.f32 0.0, %v1421
        %1423 = vmatmul.bf16.gmra.mxu0 %v1162
        %v1424 = vpop.f32.mrf.mxu0
        %v1425 = vadd.f32 0.0, %v1424
        %v1426 = vpop.f32.mrf.mxu0
        %v1427 = vadd.f32 0.0, %v1426
        %1428 = vmatmul.bf16.gmra.mxu0 %v1164
        %v1429 = vpop.f32.mrf.mxu0
        %v1430 = vadd.f32 0.0, %v1429
        %v1431 = vpop.f32.mrf.mxu0
        %v1432 = vadd.f32 0.0, %v1431
        %1433 = vmatmul.bf16.gmra.mxu0 %v1166
        %v1434 = vpop.f32.mrf.mxu0
        %v1435 = vadd.f32 0.0, %v1434
        %v1436 = vpop.f32.mrf.mxu0
        %v1437 = vadd.f32 0.0, %v1436
        %1438 = vmatmul.bf16.gmra.mxu0 %v1168
        %v1439 = vpop.f32.mrf.mxu0
        %v1440 = vadd.f32 0.0, %v1439
        %v1441 = vpop.f32.mrf.mxu0
        %v1442 = vadd.f32 0.0, %v1441
        %1443 = vmatmul.bf16.gmra.mxu0 %v1170
        %v1444 = vpop.f32.mrf.mxu0
        %v1445 = vadd.f32 0.0, %v1444
        %v1446 = vpop.f32.mrf.mxu0
        %v1447 = vadd.f32 0.0, %v1446
        %1448 = vmatmul.bf16.gmra.mxu0 %v1172
        %v1449 = vpop.f32.mrf.mxu0
        %v1450 = vadd.f32 0.0, %v1449
        %v1451 = vpop.f32.mrf.mxu0
        %v1452 = vadd.f32 0.0, %v1451
        %1453 = vmatmul.bf16.gmra.mxu0 %v1174
        %v1454 = vpop.f32.mrf.mxu0
        %v1455 = vadd.f32 0.0, %v1454
        %v1456 = vpop.f32.mrf.mxu0
        %v1457 = vadd.f32 0.0, %v1456
        %1458 = vmatmul.bf16.gmra.mxu0 %v1176
        %v1459 = vpop.f32.mrf.mxu0
        %v1460 = vadd.f32 0.0, %v1459
        %v1461 = vpop.f32.mrf.mxu0
        %v1462 = vadd.f32 0.0, %v1461
        %1463 = vmatmul.bf16.gmra.mxu0 %v1178
        %v1464 = vpop.f32.mrf.mxu0
        %v1465 = vadd.f32 0.0, %v1464
        %v1466 = vpop.f32.mrf.mxu0
        %v1467 = vadd.f32 0.0, %v1466
        %1468 = vmatmul.bf16.gmra.mxu0 %v1180
        %v1469 = vpop.f32.mrf.mxu0
        %v1470 = vadd.f32 0.0, %v1469
        %v1471 = vpop.f32.mrf.mxu0
        %v1472 = vadd.f32 0.0, %v1471
        %1473 = vmatmul.bf16.gmra.mxu0 %v1385
        %v1474 = vpop.f32.mrf.mxu0
        %v1475 = vadd.f32 0.0, %v1474
        %v1476 = vpop.f32.mrf.mxu0
        %v1477 = vadd.f32 0.0, %v1476
        %1478 = vdwg.mxu0
        %v1479 = vadd.f32 %v1298, %v1400
        %v1480 = vadd.f32 %v1300, %v1402
        %v1481 = vadd.f32 %v1303, %v1405
        %v1482 = vadd.f32 %v1305, %v1407
        %v1483 = vadd.f32 %v1308, %v1410
        %v1484 = vadd.f32 %v1310, %v1412
        %v1485 = vadd.f32 %v1313, %v1415
        %v1486 = vadd.f32 %v1315, %v1417
        %v1487 = vadd.f32 %v1318, %v1420
        %v1488 = vadd.f32 %v1320, %v1422
        %v1489 = vadd.f32 %v1323, %v1425
        %v1490 = vadd.f32 %v1325, %v1427
        %v1491 = vadd.f32 %v1328, %v1430
        %v1492 = vadd.f32 %v1330, %v1432
        %v1493 = vadd.f32 %v1333, %v1435
        %v1494 = vadd.f32 %v1335, %v1437
        %v1495 = vadd.f32 %v1338, %v1440
        %v1496 = vadd.f32 %v1340, %v1442
        %v1497 = vadd.f32 %v1343, %v1445
        %v1498 = vadd.f32 %v1345, %v1447
        %v1499 = vadd.f32 %v1348, %v1450
        %v1500 = vadd.f32 %v1350, %v1452
        %v1501 = vadd.f32 %v1353, %v1455
        %v1502 = vadd.f32 %v1355, %v1457
        %v1503 = vadd.f32 %v1358, %v1460
        %v1504 = vadd.f32 %v1360, %v1462
        %v1505 = vadd.f32 %v1363, %v1465
        %v1506 = vadd.f32 %v1365, %v1467
        %v1507 = vadd.f32 %v1368, %v1470
        %v1508 = vadd.f32 %v1370, %v1472
        %v1509 = vadd.f32 %v1373, %v1475
        %v1510 = vadd.f32 %v1375, %v1477
        %v1511 = vld [vmem:[%s4] sm:$0x1]
        %v1513 = vperm.slane %v1511, 0
        %v1515 = vadd.f32 %v1479, %v1513
        %v1516 = vadd.f32 %v1480, %v1513
        %v1517 = vadd.f32 %v1481, %v1513
        %v1518 = vadd.f32 %v1482, %v1513
        %v1519 = vadd.f32 %v1483, %v1513
        %v1520 = vadd.f32 %v1484, %v1513
        %v1521 = vadd.f32 %v1485, %v1513
        %v1522 = vadd.f32 %v1486, %v1513
        %v1523 = vadd.f32 %v1487, %v1513
        %v1524 = vadd.f32 %v1488, %v1513
        %v1525 = vadd.f32 %v1489, %v1513
        %v1526 = vadd.f32 %v1490, %v1513
        %v1527 = vadd.f32 %v1491, %v1513
        %v1528 = vadd.f32 %v1492, %v1513
        %v1529 = vadd.f32 %v1493, %v1513
        %v1530 = vadd.f32 %v1494, %v1513
        %v1531 = vadd.f32 %v1495, %v1513
        %v1532 = vadd.f32 %v1496, %v1513
        %v1533 = vadd.f32 %v1497, %v1513
        %v1534 = vadd.f32 %v1498, %v1513
        %v1535 = vadd.f32 %v1499, %v1513
        %v1536 = vadd.f32 %v1500, %v1513
        %v1537 = vadd.f32 %v1501, %v1513
        %v1538 = vadd.f32 %v1502, %v1513
        %v1539 = vadd.f32 %v1503, %v1513
        %v1540 = vadd.f32 %v1504, %v1513
        %v1541 = vadd.f32 %v1505, %v1513
        %v1542 = vadd.f32 %v1506, %v1513
        %v1543 = vadd.f32 %v1507, %v1513
        %v1544 = vadd.f32 %v1508, %v1513
        %v1545 = vadd.f32 %v1509, %v1513
        %v1546 = vadd.f32 %v1510, %v1513
        %v1547 = vmax.f32 %v1515, 0.0
        %v1548 = vmax.f32 %v1516, 0.0
        %v1549 = vmax.f32 %v1517, 0.0
        %v1550 = vmax.f32 %v1518, 0.0
        %v1551 = vmax.f32 %v1519, 0.0
        %v1552 = vmax.f32 %v1520, 0.0
        %v1553 = vmax.f32 %v1521, 0.0
        %v1554 = vmax.f32 %v1522, 0.0
        %v1555 = vmax.f32 %v1523, 0.0
        %v1556 = vmax.f32 %v1524, 0.0
        %v1557 = vmax.f32 %v1525, 0.0
        %v1558 = vmax.f32 %v1526, 0.0
        %v1559 = vmax.f32 %v1527, 0.0
        %v1560 = vmax.f32 %v1528, 0.0
        %v1561 = vmax.f32 %v1529, 0.0
        %v1562 = vmax.f32 %v1530, 0.0
        %v1563 = vmax.f32 %v1531, 0.0
        %v1564 = vmax.f32 %v1532, 0.0
        %v1565 = vmax.f32 %v1533, 0.0
        %v1566 = vmax.f32 %v1534, 0.0
        %v1567 = vmax.f32 %v1535, 0.0
        %v1568 = vmax.f32 %v1536, 0.0
        %v1569 = vmax.f32 %v1537, 0.0
        %v1570 = vmax.f32 %v1538, 0.0
        %v1571 = vmax.f32 %v1539, 0.0
        %v1572 = vmax.f32 %v1540, 0.0
        %v1573 = vmax.f32 %v1541, 0.0
        %v1574 = vmax.f32 %v1542, 0.0
        %v1575 = vmax.f32 %v1543, 0.0
        %v1576 = vmax.f32 %v1544, 0.0
        %v1577 = vmax.f32 %v1545, 0.0
        %v1578 = vmax.f32 %v1546, 0.0
        %v1579 = vpack.c.bf16 %v1547, %v1547
        %v1580 = vpack.c.bf16 %v1548, %v1548
        %v1581 = vpack.c.bf16 %v1549, %v1549
        %v1582 = vpack.c.bf16 %v1550, %v1550
        %v1583 = vpack.c.bf16 %v1551, %v1551
        %v1584 = vpack.c.bf16 %v1552, %v1552
        %v1585 = vpack.c.bf16 %v1553, %v1553
        %v1586 = vpack.c.bf16 %v1554, %v1554
        %v1587 = vpack.c.bf16 %v1555, %v1555
        %v1588 = vpack.c.bf16 %v1556, %v1556
        %v1589 = vpack.c.bf16 %v1557, %v1557
        %v1590 = vpack.c.bf16 %v1558, %v1558
        %v1591 = vpack.c.bf16 %v1559, %v1559
        %v1592 = vpack.c.bf16 %v1560, %v1560
        %v1593 = vpack.c.bf16 %v1561, %v1561
        %v1594 = vpack.c.bf16 %v1562, %v1562
        %v1595 = vpack.c.bf16 %v1563, %v1563
        %v1596 = vpack.c.bf16 %v1564, %v1564
        %v1597 = vpack.c.bf16 %v1565, %v1565
        %v1598 = vpack.c.bf16 %v1566, %v1566
        %v1599 = vpack.c.bf16 %v1567, %v1567
        %v1600 = vpack.c.bf16 %v1568, %v1568
        %v1601 = vpack.c.bf16 %v1569, %v1569
        %v1602 = vpack.c.bf16 %v1570, %v1570
        %v1603 = vpack.c.bf16 %v1571, %v1571
        %v1604 = vpack.c.bf16 %v1572, %v1572
        %v1605 = vpack.c.bf16 %v1573, %v1573
        %v1606 = vpack.c.bf16 %v1574, %v1574
        %v1607 = vpack.c.bf16 %v1575, %v1575
        %v1608 = vpack.c.bf16 %v1576, %v1576
        %v1609 = vpack.c.bf16 %v1577, %v1577
        %v1610 = vpack.c.bf16 %v1578, %v1578
        %vm1611 = vcmask 519168
        %1612 = vst.msk [vmem:[%s460] sm:$0xf] %vm1611, %v1579
        %1613 = vst.msk [vmem:[%s460 + $0x4] sm:$0xf] %vm1611, %v1580
        %1614 = vst.msk [vmem:[%s460 + $0x8] sm:$0xf] %vm1611, %v1581
        %1615 = vst.msk [vmem:[%s460 + $0xc] sm:$0xf] %vm1611, %v1582
        %1616 = vst.msk [vmem:[%s460 + $0x10] sm:$0xf] %vm1611, %v1583
        %1617 = vst.msk [vmem:[%s460 + $0x14] sm:$0xf] %vm1611, %v1584
        %1618 = vst.msk [vmem:[%s460 + $0x18] sm:$0xf] %vm1611, %v1585
        %1619 = vst.msk [vmem:[%s460 + $0x1c] sm:$0xf] %vm1611, %v1586
        %1620 = vst.msk [vmem:[%s460 + $0x20] sm:$0xf] %vm1611, %v1587
        %1621 = vst.msk [vmem:[%s460 + $0x24] sm:$0xf] %vm1611, %v1588
        %1622 = vst.msk [vmem:[%s460 + $0x28] sm:$0xf] %vm1611, %v1589
        %1623 = vst.msk [vmem:[%s460 + $0x2c] sm:$0xf] %vm1611, %v1590
        %1624 = vst.msk [vmem:[%s460 + $0x30] sm:$0xf] %vm1611, %v1591
        %1625 = vst.msk [vmem:[%s460 + $0x34] sm:$0xf] %vm1611, %v1592
        %1626 = vst.msk [vmem:[%s460 + $0x38] sm:$0xf] %vm1611, %v1593
        %1627 = vst.msk [vmem:[%s460 + $0x3c] sm:$0xf] %vm1611, %v1594
        %1628 = vst.msk [vmem:[%s460 + $0x40] sm:$0xf] %vm1611, %v1595
        %1629 = vst.msk [vmem:[%s460 + $0x44] sm:$0xf] %vm1611, %v1596
        %1630 = vst.msk [vmem:[%s460 + $0x48] sm:$0xf] %vm1611, %v1597
        %1631 = vst.msk [vmem:[%s460 + $0x4c] sm:$0xf] %vm1611, %v1598
        %1632 = vst.msk [vmem:[%s460 + $0x50] sm:$0xf] %vm1611, %v1599
        %1633 = vst.msk [vmem:[%s460 + $0x54] sm:$0xf] %vm1611, %v1600
        %1634 = vst.msk [vmem:[%s460 + $0x58] sm:$0xf] %vm1611, %v1601
        %1635 = vst.msk [vmem:[%s460 + $0x5c] sm:$0xf] %vm1611, %v1602
        %1636 = vst.msk [vmem:[%s460 + $0x60] sm:$0xf] %vm1611, %v1603
        %1637 = vst.msk [vmem:[%s460 + $0x64] sm:$0xf] %vm1611, %v1604
        %1638 = vst.msk [vmem:[%s460 + $0x68] sm:$0xf] %vm1611, %v1605
        %1639 = vst.msk [vmem:[%s460 + $0x6c] sm:$0xf] %vm1611, %v1606
        %1640 = vst.msk [vmem:[%s460 + $0x70] sm:$0xf] %vm1611, %v1607
        %1641 = vst.msk [vmem:[%s460 + $0x74] sm:$0xf] %vm1611, %v1608
        %1642 = vst.msk [vmem:[%s460 + $0x78] sm:$0xf] %vm1611, %v1609
        %1643 = vst.msk [vmem:[%s460 + $0x7c] sm:$0xf] %vm1611, %v1610
        %s1644 = smul.u32 16, %s24
        %p1645 = scmp.lt.s32.totalorder %s23, 1
        %s1646 = scalar_select %p1645, %s23, 1
        %p1647 = scmp.lt.s32.totalorder %s1644, 15
        %s1648 = scalar_select %p1647, %s1644, 15
        %s1649 = smul.addr %s1648, 2
        %s1650 = smul.addr %s1646, 32
        %s1651 = sadd.s32 %s1649, %s1650
        %s1652 = smul.addr %s1651, 4
        %s1653 = scalar_lea.vmem %s7, %s1652
        // Predicated region
        $region53: #{netf_forward.4} parent=47 // pred_check
          %p1654 = pneg %p235
        $region54: #{netf_forward.4} parent=47 // pred_check_branch
          %1656 = sbr.rel (%p1654) target = $region56
        $region55: #{netf_forward.4} parent=47 // pred_region
          %s1657 = smul.u32 16, %s24
        $region56: #{netf_forward.4} parent=47 // pred_fallthru
          _
      $region48: #{netf_forward.4} parent=5 // pred_fallthru
        _
      %p1658 = scmp.le.s32.totalorder 2, %s14
      // Predicated region
      $region57: #{netf_forward.4} parent=5 // pred_check
        %p1659 = pneg %p1658
      $region58: #{netf_forward.4} parent=5 // pred_check_branch
        %1661 = sbr.rel (%p1659) target = $region60
      $region59: #{netf_forward.4} parent=5 // pred_region
        %s1662 = ssub.s32 %s14, 2
        // Predicated region
        $region61: #{netf_forward.4} parent=59 // pred_check
          %p1663 = pneg %p241
        $region62: #{netf_forward.4} parent=59 // pred_check_branch
          %1665 = sbr.rel (%p1663) target = $region64
        $region63: #{netf_forward.4} parent=59 // pred_region
          %s1666 = smul.u32 16, %s26
          %p1667 = scmp.lt.s32.totalorder %s25, 1
          %s1668 = scalar_select %p1667, %s25, 1
          %p1669 = scmp.lt.s32.totalorder %s1666, 15
          %s1670 = scalar_select %p1669, %s1666, 15
          %s1671 = smul.addr %s1670, 2
          %s1672 = smul.addr %s1668, 32
          %s1673 = sadd.s32 %s1671, %s1672
          %s1674 = smul.addr %s1673, 4
          %s1675 = scalar_lea.vmem %s7, %s1674
        $region64: #{netf_forward.4} parent=59 // pred_fallthru
          _
      $region60: #{netf_forward.4} parent=5 // pred_fallthru
        _
    $region6: #{netf_forward.4} parent=1 // loop_footer
      %s18 = sadd.s32 1, %s14
    $region7: #{netf_forward.4} parent=1 // loop_footer_branch
      %13 = sbr.rel target = $region3
    $region8: #{netf_forward.4} parent=1 // loop_exit
      _
    %1676 = vsyncpa [#allocation3], 1
    %s1677 = scalar_lea.sflag [#allocation3], 1
    %1678 = vsyncpa %s1677, 1

// kernel: netf_forward.6
$region0: #{netf_forward.6}
  #allocation0 [shape = 'u32[]', space=smem, size = 0x4, offset = 0x4, fixed_abs, tag = 'smem constant byte address 0x4 - core index']
  #allocation1 [shape = 'u32[72,128]{1,0:T(1,128)}', space=vmem, size = 0x9000, scoped, tag = 'internal scratch']
  %s0 = inlined_call_operand.vmem [shape: bf16[2,8,8,64], index: 0, kind: input, shape index: {}, may-alias: {0,1,2}]
  %s1 = inlined_call_operand.vmem [shape: bf16[2,8,8,64], index: 1, kind: input, shape index: {}, may-alias: {0,1,2}]
  %s2 = inlined_call_operand.vmem [shape: bf16[2,8,8,64], index: 2, kind: input, shape index: {}, may-alias: {0,1,2}]
  %s3 = inlined_call_operand.vmem [shape: bf16[3,192,128], index: 3, kind: input, shape index: {}]
  %s4 = inlined_call_operand.vmem [shape: f32[1,128], index: 4, kind: input, shape index: {}]
  %s5 = inlined_call_operand.vmem [shape: bf16[2,8,8,128], index: 5, kind: output, shape index: {}]
  %s6 = sld [smem:[#allocation0]]
  $region53: #{netf_forward.6} parent=0
    _
  %s8 = ssub.s32 1, %s6
  %s9 = scalar_select 0, %s8, %s6
  loop: start=0, step=1, limit=4
  $region2: #{netf_forward.6} parent=0 // loop_pre_header
    _
  $region3: #{netf_forward.6} parent=0 // loop_header
    %s11 = sphi 0, %s15
    %p12 = scmp.ge.s32.totalorder %s11, 4
    %s18 = sphi 0, %s30
    %s19 = sphi 0, %s26
    %s20 = sphi 0, %s18
    %s21 = sphi 0, %s19
    %s22 = sphi 0, %s20
    %s23 = sphi 0, %s21
    %s43 = sphi 0, %s45
    %s46 = sphi 0, %s43
    %s47 = sphi 0, %s46
    %s63 = sphi 0, %s47
    %s71 = sphi 0, %s73
    %s74 = sphi 0, %s71
    %s75 = sphi 0, %s74
    %s91 = sphi 0, %s75
    %s107 = sphi 0, %s109
    %s110 = sphi 0, %s107
    %s111 = sphi 0, %s110
    %s127 = sphi 0, %s111
    %s131 = sphi 0, %s131
    %s133 = sphi 0, %s131
    %s134 = sphi 0, %s133
    %s148 = sphi 0, %s134
    %s152 = sphi 0, %s152
    %s154 = sphi 0, %s152
    %s155 = sphi 0, %s154
    %s169 = sphi 0, %s155
    %s177 = sphi 0, %s179
    %s180 = sphi 0, %s177
    %s181 = sphi 0, %s180
    %s197 = sphi 0, %s181
  $region4: #{netf_forward.6} parent=0 // loop_header_branch
    %14 = sbr.rel (%p12) target = $region8
  $region5: #{netf_forward.6} parent=0 // loop_body
    %s16 = ssub.s32 %s11, 1
    %s17 = ssub.s32 %s11, 2
    %s24 = sadd.s32 1, %s19
    %p25 = scmp.ge.s32.totalorder %s24, 1
    %s26 = scalar_select %p25, 0, %s24
    %s27 = sadd.s32 1, %s18
    %s28 = scalar_select %p25, %s27, %s18
    %p29 = scmp.ge.s32.totalorder %s28, 2
    %s30 = scalar_select %p29, 0, %s28
    %s31 = smul.u32 %s19, 8
    %s32 = ssub.s32 %s31, 1
    %p33 = scmp.gt.s32.totalorder %s32, 0
    %s34 = scalar_select %p33, %s32, 0
    %s35 = smul.u32 %s26, 8
    %s36 = ssub.s32 %s35, 1
    %p37 = scmp.gt.s32.totalorder %s36, 0
    %s38 = scalar_select %p37, %s36, 0
    %s39 = ssub.s32 %s18, %s30
    %s40 = ssub.s32 %s34, %s38
    %s41 = sor.u32 %s39, %s40
    %p42 = scmp.eq.s32.totalorder %s41, 0
    %s44 = sadd.s32 %s43, 1
    %s45 = scalar_select %p42, %s43, %s44
    %p48 = pneg %p42
    %p49 = scmp.eq.s32.totalorder %s11, 1
    %p50 = por %p48, %p49
    %p51 = scmp.ne.s32.totalorder %s43, %s46
    %p52 = scmp.eq.s32.totalorder %s11, 0
    %p53 = por %p51, %p52
    %p54 = scmp.ne.s32.totalorder %s43, %s46
    %p55 = scmp.eq.s32.totalorder %s16, 1
    %p56 = por %p54, %p55
    %p57 = scmp.ne.s32.totalorder %s46, %s47
    %p58 = scmp.eq.s32.totalorder %s16, 0
    %p59 = por %p57, %p58
    %p60 = scmp.ne.s32.totalorder %s46, %s47
    %p61 = scmp.eq.s32.totalorder %s17, 1
    %p62 = por %p60, %p61
    %p64 = scmp.ne.s32.totalorder %s47, %s63
    %p65 = scmp.eq.s32.totalorder %s17, 0
    %p66 = por %p64, %p65
    %s67 = ssub.s32 %s18, %s30
    %s68 = ssub.s32 %s19, %s26
    %s69 = sor.u32 %s67, %s68
    %p70 = scmp.eq.s32.totalorder %s69, 0
    %s72 = sadd.s32 %s71, 1
    %s73 = scalar_select %p70, %s71, %s72
    %p76 = pneg %p70
    %p77 = scmp.eq.s32.totalorder %s11, 1
    %p78 = por %p76, %p77
    %p79 = scmp.ne.s32.totalorder %s71, %s74
    %p80 = scmp.eq.s32.totalorder %s11, 0
    %p81 = por %p79, %p80
    %p82 = scmp.ne.s32.totalorder %s71, %s74
    %p83 = scmp.eq.s32.totalorder %s16, 1
    %p84 = por %p82, %p83
    %p85 = scmp.ne.s32.totalorder %s74, %s75
    %p86 = scmp.eq.s32.totalorder %s16, 0
    %p87 = por %p85, %p86
    %p88 = scmp.ne.s32.totalorder %s74, %s75
    %p89 = scmp.eq.s32.totalorder %s17, 1
    %p90 = por %p88, %p89
    %p92 = scmp.ne.s32.totalorder %s75, %s91
    %p93 = scmp.eq.s32.totalorder %s17, 0
    %p94 = por %p92, %p93
    %s95 = smul.u32 %s19, 8
    %s96 = sadd.s32 %s95, 8
    %p97 = scmp.lt.s32.totalorder %s96, 7
    %s98 = scalar_select %p97, %s96, 7
    %s99 = smul.u32 %s26, 8
    %s100 = sadd.s32 %s99, 8
    %p101 = scmp.lt.s32.totalorder %s100, 7
    %s102 = scalar_select %p101, %s100, 7
    %s103 = ssub.s32 %s18, %s30
    %s104 = ssub.s32 %s98, %s102
    %s105 = sor.u32 %s103, %s104
    %p106 = scmp.eq.s32.totalorder %s105, 0
    %s108 = sadd.s32 %s107, 1
    %s109 = scalar_select %p106, %s107, %s108
    %p112 = pneg %p106
    %p113 = scmp.eq.s32.totalorder %s11, 1
    %p114 = por %p112, %p113
    %p115 = scmp.ne.s32.totalorder %s107, %s110
    %p116 = scmp.eq.s32.totalorder %s11, 0
    %p117 = por %p115, %p116
    %p118 = scmp.ne.s32.totalorder %s107, %s110
    %p119 = scmp.eq.s32.totalorder %s16, 1
    %p120 = por %p118, %p119
    %p121 = scmp.ne.s32.totalorder %s110, %s111
    %p122 = scmp.eq.s32.totalorder %s16, 0
    %p123 = por %p121, %p122
    %p124 = scmp.ne.s32.totalorder %s110, %s111
    %p125 = scmp.eq.s32.totalorder %s17, 1
    %p126 = por %p124, %p125
    %p128 = scmp.ne.s32.totalorder %s111, %s127
    %p129 = scmp.eq.s32.totalorder %s17, 0
    %p130 = por %p128, %p129
    %s132 = sadd.s32 %s131, 1
    %p135 = scmp.eq.s32.totalorder %s11, 1
    %p136 = scmp.ne.s32.totalorder %s131, %s133
    %p137 = scmp.eq.s32.totalorder %s11, 0
    %p138 = por %p136, %p137
    %p139 = scmp.ne.s32.totalorder %s131, %s133
    %p140 = scmp.eq.s32.totalorder %s16, 1
    %p141 = por %p139, %p140
    %p142 = scmp.ne.s32.totalorder %s133, %s134
    %p143 = scmp.eq.s32.totalorder %s16, 0
    %p144 = por %p142, %p143
    %p145 = scmp.ne.s32.totalorder %s133, %s134
    %p146 = scmp.eq.s32.totalorder %s17, 1
    %p147 = por %p145, %p146
    %p149 = scmp.ne.s32.totalorder %s134, %s148
    %p150 = scmp.eq.s32.totalorder %s17, 0
    %p151 = por %p149, %p150
    %s153 = sadd.s32 %s152, 1
    %p156 = scmp.eq.s32.totalorder %s11, 1
    %p157 = scmp.ne.s32.totalorder %s152, %s154
    %p158 = scmp.eq.s32.totalorder %s11, 0
    %p159 = por %p157, %p158
    %p160 = scmp.ne.s32.totalorder %s152, %s154
    %p161 = scmp.eq.s32.totalorder %s16, 1
    %p162 = por %p160, %p161
    %p163 = scmp.ne.s32.totalorder %s154, %s155
    %p164 = scmp.eq.s32.totalorder %s16, 0
    %p165 = por %p163, %p164
    %p166 = scmp.ne.s32.totalorder %s154, %s155
    %p167 = scmp.eq.s32.totalorder %s17, 1
    %p168 = por %p166, %p167
    %p170 = scmp.ne.s32.totalorder %s155, %s169
    %p171 = scmp.eq.s32.totalorder %s17, 0
    %p172 = por %p170, %p171
    %s173 = ssub.s32 %s18, %s30
    %s174 = ssub.s32 %s19, %s26
    %s175 = sor.u32 %s173, %s174
    %p176 = scmp.eq.s32.totalorder %s175, 0
    %s178 = sadd.s32 %s177, 1
    %s179 = scalar_select %p176, %s177, %s178
    %p182 = pneg %p176
    %p183 = scmp.eq.s32.totalorder %s11, 1
    %p184 = por %p182, %p183
    %p185 = scmp.ne.s32.totalorder %s177, %s180
    %p186 = scmp.eq.s32.totalorder %s11, 0
    %p187 = por %p185, %p186
    %p188 = scmp.ne.s32.totalorder %s177, %s180
    %p189 = scmp.eq.s32.totalorder %s16, 1
    %p190 = por %p188, %p189
    %p191 = scmp.ne.s32.totalorder %s180, %s181
    %p192 = scmp.eq.s32.totalorder %s16, 0
    %p193 = por %p191, %p192
    %p194 = scmp.ne.s32.totalorder %s180, %s181
    %p195 = scmp.eq.s32.totalorder %s17, 1
    %p196 = por %p194, %p195
    %p198 = scmp.ne.s32.totalorder %s181, %s197
    %p199 = scmp.eq.s32.totalorder %s17, 0
    %p200 = por %p198, %p199
    %p201 = scmp.le.s32.totalorder 1, %s11
    %p202 = scmp.lt.s32.totalorder %s11, 3
    %p203 = pnand %p201, %p202
    %p204 = pneg %p203
    // Predicated region
    $region9: #{netf_forward.6} parent=5 // pred_check
      _
    $region10: #{netf_forward.6} parent=5 // pred_check_branch
      %206 = sbr.rel (%p203) target = $region12
    $region11: #{netf_forward.6} parent=5 // pred_region
      %s207 = ssub.s32 %s11, 1
      // Predicated region
      $region13: #{netf_forward.6} parent=11 // pred_check
        %p208 = pneg %p144
      $region14: #{netf_forward.6} parent=11 // pred_check_branch
        %210 = sbr.rel (%p208) target = $region16
      $region15: #{netf_forward.6} parent=11 // pred_region
        _
      $region16: #{netf_forward.6} parent=11 // pred_fallthru
        _
      // Predicated region
      $region17: #{netf_forward.6} parent=11 // pred_check
        %p211 = pneg %p165
      $region18: #{netf_forward.6} parent=11 // pred_check_branch
        %213 = sbr.rel (%p211) target = $region20
      $region19: #{netf_forward.6} parent=11 // pred_region
        _
      $region20: #{netf_forward.6} parent=11 // pred_fallthru
        _
    $region12: #{netf_forward.6} parent=5 // pred_fallthru
      _
    %p214 = scmp.lt.s32.totalorder %s11, 2
    // Predicated region
    $region21: #{netf_forward.6} parent=5 // pred_check
      %p215 = pneg %p214
    $region22: #{netf_forward.6} parent=5 // pred_check_branch
      %217 = sbr.rel (%p215) target = $region24
    $region23: #{netf_forward.6} parent=5 // pred_region
      // Predicated region
      $region25: #{netf_forward.6} parent=23 // pred_check
        %p218 = pneg %p53
      $region26: #{netf_forward.6} parent=23 // pred_check_branch
        %220 = sbr.rel (%p218) target = $region28
      $region27: #{netf_forward.6} parent=23 // pred_region
        %s221 = smul.u32 %s19, 8
        %s222 = ssub.s32 %s221, 1
        %p223 = scmp.gt.s32.totalorder %s222, 0
        %s224 = scalar_select %p223, %s222, 0
        %p225 = scmp.lt.s32.totalorder %s18, 1
        %s226 = scalar_select %p225, %s18, 1
        %p227 = scmp.lt.s32.totalorder %s224, 7
        %s228 = scalar_select %p227, %s224, 7
        %s229 = smul.addr %s226, 8
        %s230 = sadd.s32 %s228, %s229
        %s231 = smul.addr %s230, 4
        %s232 = scalar_lea.vmem %s0, %s231
        %s233 = smul.u32 %s19, 8
        %s234 = ssub.s32 %s233, 1
        %p235 = scmp.gt.s32.totalorder %s234, 0
        %s236 = scalar_select %p235, %s234, 0
      $region28: #{netf_forward.6} parent=23 // pred_fallthru
        _
      // Predicated region
      $region29: #{netf_forward.6} parent=23 // pred_check
        %p237 = pneg %p81
      $region30: #{netf_forward.6} parent=23 // pred_check_branch
        %239 = sbr.rel (%p237) target = $region32
      $region31: #{netf_forward.6} parent=23 // pred_region
        %s240 = smul.u32 8, %s19
        %p241 = scmp.lt.s32.totalorder %s18, 1
        %s242 = scalar_select %p241, %s18, 1
        %p243 = scmp.lt.s32.totalorder %s240, 7
        %s244 = scalar_select %p243, %s240, 7
        %s245 = smul.addr %s242, 8
        %s246 = sadd.s32 %s244, %s245
        %s247 = smul.addr %s246, 4
        %s248 = scalar_lea.vmem %s1, %s247
        %s249 = smul.u32 8, %s19
      $region32: #{netf_forward.6} parent=23 // pred_fallthru
        _
      // Predicated region
      $region33: #{netf_forward.6} parent=23 // pred_check
        %p250 = pneg %p117
      $region34: #{netf_forward.6} parent=23 // pred_check_branch
        %252 = sbr.rel (%p250) target = $region36
      $region35: #{netf_forward.6} parent=23 // pred_region
        %s253 = smul.u32 %s19, 8
        %s254 = sadd.s32 %s253, 8
        %p255 = scmp.lt.s32.totalorder %s254, 7
        %s256 = scalar_select %p255, %s254, 7
        %p257 = scmp.lt.s32.totalorder %s18, 1
        %s258 = scalar_select %p257, %s18, 1
        %p259 = scmp.lt.s32.totalorder %s256, 7
        %s260 = scalar_select %p259, %s256, 7
        %s261 = smul.addr %s258, 8
        %s262 = sadd.s32 %s260, %s261
        %s263 = smul.addr %s262, 4
        %s264 = scalar_lea.vmem %s2, %s263
        %s265 = smul.u32 %s19, 8
        %s266 = sadd.s32 %s265, 8
        %p267 = scmp.lt.s32.totalorder %s266, 7
        %s268 = scalar_select %p267, %s266, 7
      $region36: #{netf_forward.6} parent=23 // pred_fallthru
        _
    $region24: #{netf_forward.6} parent=5 // pred_fallthru
      _
    %p269 = scmp.le.s32.totalorder 1, %s11
    %p270 = scmp.lt.s32.totalorder %s11, 3
    %p271 = pnand %p269, %p270
    %p272 = pneg %p271
    // Predicated region
    $region37: #{netf_forward.6} parent=5 // pred_check
      _
    $region38: #{netf_forward.6} parent=5 // pred_check_branch
      %274 = sbr.rel (%p271) target = $region40
    $region39: #{netf_forward.6} parent=5 // pred_region
      %s275 = ssub.s32 %s11, 1
      %s276 = smul.u32 %s21, 8
      %s277 = ssub.s32 %s276, 1
      %p278 = scmp.gt.s32.totalorder %s277, 0
      %s279 = scalar_select %p278, %s277, 0
      %p280 = scmp.lt.s32.totalorder %s20, 1
      %s281 = scalar_select %p280, %s20, 1
      %p282 = scmp.lt.s32.totalorder %s279, 7
      %s283 = scalar_select %p282, %s279, 7
      %s284 = smul.addr %s281, 8
      %s285 = sadd.s32 %s283, %s284
      %s286 = smul.addr %s285, 4
      %s287 = scalar_lea.vmem %s0, %s286
      %p288 = pneg %p59
      %p289 = pneg %p56
      %s290 = smul.u32 8, %s21
      %p291 = scmp.lt.s32.totalorder %s20, 1
      %s292 = scalar_select %p291, %s20, 1
      %p293 = scmp.lt.s32.totalorder %s290, 7
      %s294 = scalar_select %p293, %s290, 7
      %s295 = smul.addr %s292, 8
      %s296 = sadd.s32 %s294, %s295
      %s297 = smul.addr %s296, 4
      %s298 = scalar_lea.vmem %s1, %s297
      %p299 = pneg %p87
      %p300 = pneg %p84
      %s301 = smul.u32 %s21, 8
      %s302 = sadd.s32 %s301, 8
      %p303 = scmp.lt.s32.totalorder %s302, 7
      %s304 = scalar_select %p303, %s302, 7
      %p305 = scmp.lt.s32.totalorder %s20, 1
      %s306 = scalar_select %p305, %s20, 1
      %p307 = scmp.lt.s32.totalorder %s304, 7
      %s308 = scalar_select %p307, %s304, 7
      %s309 = smul.addr %s306, 8
      %s310 = sadd.s32 %s308, %s309
      %s311 = smul.addr %s310, 4
      %s312 = scalar_lea.vmem %s2, %s311
      %p313 = pneg %p123
      %p314 = pneg %p120
      %p315 = pneg %p144
      %p316 = pneg %p141
      %p317 = pneg %p165
      %p318 = pneg %p162
      %p319 = pneg %p193
      %p320 = pneg %p190
      %s321 = smul.u32 8, %s21
      %p322 = scmp.lt.s32.totalorder %s20, 1
      %s323 = scalar_select %p322, %s20, 1
      %p324 = scmp.lt.s32.totalorder %s321, 7
      %s325 = scalar_select %p324, %s321, 7
      %s326 = smul.addr %s323, 8
      %s327 = sadd.s32 %s325, %s326
      %s328 = smul.addr %s327, 4
      %s329 = scalar_lea.vmem %s5, %s328
      %s330 = smul.u32 %s21, 8
      %s331 = ssub.s32 %s330, 1
      %p332 = scmp.gt.s32.totalorder %s331, 0
      %s333 = scalar_select %p332, %s331, 0
      %p334 = scmp.lt.s32.totalorder %s20, 1
      %s335 = scalar_select %p334, %s20, 1
      %p336 = scmp.lt.s32.totalorder %s333, 7
      %s337 = scalar_select %p336, %s333, 7
      %s338 = smul.addr %s335, 8
      %s339 = sadd.s32 %s337, %s338
      %s340 = smul.addr %s339, 4
      %s341 = scalar_lea.vmem %s0, %s340
      %s342 = smul.u32 %s21, 8
      %s343 = ssub.s32 %s342, 1
      %p344 = scmp.gt.s32.totalorder %s343, 0
      %s345 = scalar_select %p344, %s343, 0
      %s346 = smul.u32 8, %s21
      %p347 = scmp.lt.s32.totalorder %s20, 1
      %s348 = scalar_select %p347, %s20, 1
      %p349 = scmp.lt.s32.totalorder %s346, 7
      %s350 = scalar_select %p349, %s346, 7
      %s351 = smul.addr %s348, 8
      %s352 = sadd.s32 %s350, %s351
      %s353 = smul.addr %s352, 4
      %s354 = scalar_lea.vmem %s1, %s353
      %s355 = smul.u32 8, %s21
      %s356 = smul.u32 %s21, 8
      %s357 = sadd.s32 %s356, 8
      %p358 = scmp.lt.s32.totalorder %s357, 7
      %s359 = scalar_select %p358, %s357, 7
      %p360 = scmp.lt.s32.totalorder %s20, 1
      %s361 = scalar_select %p360, %s20, 1
      %p362 = scmp.lt.s32.totalorder %s359, 7
      %s363 = scalar_select %p362, %s359, 7
      %s364 = smul.addr %s361, 8
      %s365 = sadd.s32 %s363, %s364
      %s366 = smul.addr %s365, 4
      %s367 = scalar_lea.vmem %s2, %s366
      %s368 = smul.u32 %s21, 8
      %s369 = sadd.s32 %s368, 8
      %p370 = scmp.lt.s32.totalorder %s369, 7
      %s371 = scalar_select %p370, %s369, 7
      %s372 = smul.u32 8, %s21
      %p373 = scmp.lt.s32.totalorder %s20, 1
      %s374 = scalar_select %p373, %s20, 1
      %p375 = scmp.lt.s32.totalorder %s372, 7
      %s376 = scalar_select %p375, %s372, 7
      %s377 = smul.addr %s374, 8
      %s378 = sadd.s32 %s376, %s377
      %s379 = smul.addr %s378, 4
      %s380 = scalar_lea.vmem %s5, %s379
      %s381 = smul.u32 8, %s21
      %v383 = vld [vmem:[%s341] sm:$0xf]
      %v384 = vld [vmem:[%s354] sm:$0xf]
      %v385 = vld [vmem:[%s354 + $0x4] sm:$0xf]
      %v386 = vld [vmem:[%s354 + $0x8] sm:$0xf]
      %v387 = vld [vmem:[%s354 + $0xc] sm:$0xf]
      %v388 = vld [vmem:[%s354 + $0x10] sm:$0xf]
      %v389 = vld [vmem:[%s354 + $0x14] sm:$0xf]
      %v390 = vld [vmem:[%s354 + $0x18] sm:$0xf]
      %v391 = vld [vmem:[%s354 + $0x1c] sm:$0xf]
      %v392 = vld [vmem:[%s367] sm:$0xf]
      %p393 = scmp.gt.s32.totalorder %s21, 0
      %s394 = scalar_select %p393, 1, 0
      %s395 = scvt.s32.f32 %s394
      %p397 = scmp.ne.f32.partialorder %s395, %s395
      %s398 = sshrl.u32 %s395, 16
      %s399 = sand.u32 %s398, 1
      %s400 = sadd.s32 32767, %s399
      %s401 = sadd.s32 %s395, %s400
      %s402 = sand.u32 %s401, 4294901760
      %s403 = scalar_select %p397, 2143289344, %s402
      %s405 = sshrl.u32 %s403, 16
      %s406 = sshll.u32 %s405, 16
      %s407 = sor.u32 %s405, %s406
      %v408 = vstv %s407
      %v410 = vunpack.c.l.bf16 %v383
      %v411 = vunpack.c.l.bf16 %v408
      %v412 = vmul.f32 %v410, %v411
      %v413 = vpack.c.bf16 %v412, %v412
      %p414 = scmp.lt.s32.totalorder %s21, 0
      %s415 = scalar_select %p414, 1, 0
      %s416 = scvt.s32.f32 %s415
      %p418 = scmp.ne.f32.partialorder %s416, %s416
      %s419 = sshrl.u32 %s416, 16
      %s420 = sand.u32 %s419, 1
      %s421 = sadd.s32 32767, %s420
      %s422 = sadd.s32 %s416, %s421
      %s423 = sand.u32 %s422, 4294901760
      %s424 = scalar_select %p418, 2143289344, %s423
      %s426 = sshrl.u32 %s424, 16
      %s427 = sshll.u32 %s426, 16
      %s428 = sor.u32 %s426, %s427
      %v429 = vstv %s428
      %v431 = vunpack.c.l.bf16 %v392
      %v432 = vunpack.c.l.bf16 %v429
      %v433 = vmul.f32 %v431, %v432
      %v434 = vpack.c.bf16 %v433, %v433
      %v445 = vunpack.c.l.b16 %v413
      %v446 = vunpack.c.l.b16 %v384
      %v447 = vunpack.c.l.b16 %v385
      %v448 = vunpack.c.l.b16 %v386
      %v449 = vunpack.c.l.b16 %v387
      %v450 = vunpack.c.l.b16 %v388
      %v451 = vunpack.c.l.b16 %v389
      %v452 = vunpack.c.l.b16 %v390
      %v453 = vunpack.c.l.b16 %v391
      %v454 = vunpack.c.l.b16 %v434
      %v455 = vpack.c.b16 %v445, %v445
      %v456 = vpack.c.b16 %v446, %v446
      %v457 = vpack.c.b16 %v447, %v447
      %v458 = vpack.c.b16 %v448, %v448
      %v459 = vpack.c.b16 %v449, %v449
      %v460 = vpack.c.b16 %v450, %v450
      %v461 = vpack.c.b16 %v451, %v451
      %v462 = vpack.c.b16 %v452, %v452
      %v463 = vpack.c.b16 %v453, %v453
      %v464 = vpack.c.b16 %v454, %v454
      %v466 = vshrl.u32 %v455, 16
      %v468 = vrot.slane %v466, 7
      %v469 = vshll.u32 %v455, 16
      %v471 = vor.u32 %v468, %v469
      %v473 = vshrl.u32 %v456, 16
      %v475 = vrot.slane %v473, 7
      %v476 = vshll.u32 %v456, 16
      %v478 = vor.u32 %v475, %v476
      %v480 = vshrl.u32 %v457, 16
      %v482 = vrot.slane %v480, 7
      %v483 = vshll.u32 %v457, 16
      %v485 = vor.u32 %v482, %v483
      %v487 = vshrl.u32 %v458, 16
      %v489 = vrot.slane %v487, 7
      %v490 = vshll.u32 %v458, 16
      %v492 = vor.u32 %v489, %v490
      %v494 = vshrl.u32 %v459, 16
      %v496 = vrot.slane %v494, 7
      %v497 = vshll.u32 %v459, 16
      %v499 = vor.u32 %v496, %v497
      %v501 = vshrl.u32 %v460, 16
      %v503 = vrot.slane %v501, 7
      %v504 = vshll.u32 %v460, 16
      %v506 = vor.u32 %v503, %v504
      %v508 = vshrl.u32 %v461, 16
      %v510 = vrot.slane %v508, 7
      %v511 = vshll.u32 %v461, 16
      %v513 = vor.u32 %v510, %v511
      %v515 = vshrl.u32 %v462, 16
      %v517 = vrot.slane %v515, 7
      %v518 = vshll.u32 %v462, 16
      %v520 = vor.u32 %v517, %v518
      %v522 = vshrl.u32 %v463, 16
      %v524 = vrot.slane %v522, 7
      %v525 = vshll.u32 %v463, 16
      %v527 = vor.u32 %v524, %v525
      %v529 = vshrl.u32 %v464, 16
      %v531 = vrot.slane %v529, 7
      %v532 = vshll.u32 %v464, 16
      %v534 = vor.u32 %v531, %v532
      %vm545 = vcmask 1040384
      %vm546 = vsmask.f32 256
      %vm547 = vmand %vm545, %vm546
      %v548 = vsel %vm547, 0, %v471
      %v549 = vsel %vm547, 0, %v478
      %v550 = vsel %vm547, 0, %v485
      %v551 = vsel %vm547, 0, %v492
      %v552 = vsel %vm547, 0, %v499
      %v553 = vsel %vm547, 0, %v506
      %v554 = vsel %vm547, 0, %v513
      %v555 = vsel %vm547, 0, %v520
      %v556 = vsel %vm547, 0, %v527
      %v557 = vsel %vm547, 0, %v534
      %v558 = vrot.slane %v469, 1
      %v559 = vor.u32 %v466, %v558
      %v560 = vrot.slane %v476, 1
      %v561 = vor.u32 %v473, %v560
      %v562 = vrot.slane %v483, 1
      %v563 = vor.u32 %v480, %v562
      %v564 = vrot.slane %v490, 1
      %v565 = vor.u32 %v487, %v564
      %v566 = vrot.slane %v497, 1
      %v567 = vor.u32 %v494, %v566
      %v568 = vrot.slane %v504, 1
      %v569 = vor.u32 %v501, %v568
      %v570 = vrot.slane %v511, 1
      %v571 = vor.u32 %v508, %v570
      %v572 = vrot.slane %v518, 1
      %v573 = vor.u32 %v515, %v572
      %v574 = vrot.slane %v525, 1
      %v575 = vor.u32 %v522, %v574
      %v576 = vrot.slane %v532, 1
      %v577 = vor.u32 %v529, %v576
      %vm588 = vcmask 1043456
      %vm589 = vsmask.f32 3328
      %vm590 = vmand %vm588, %vm589
      %v591 = vsel %vm590, %v559, 0
      %v592 = vsel %vm590, %v561, 0
      %v593 = vsel %vm590, %v563, 0
      %v594 = vsel %vm590, %v565, 0
      %v595 = vsel %vm590, %v567, 0
      %v596 = vsel %vm590, %v569, 0
      %v597 = vsel %vm590, %v571, 0
      %v598 = vsel %vm590, %v573, 0
      %v599 = vsel %vm590, %v575, 0
      %v600 = vsel %vm590, %v577, 0
      %601 = vrot.lane.b32.xlu0 %v455, 64
      %v602 = vpop.permute.xlu0 %601
      %603 = vrot.lane.b32.xlu0 %v456, 64
      %v604 = vpop.permute.xlu0 %603
      %605 = vrot.lane.b32.xlu0 %v457, 64
      %v606 = vpop.permute.xlu0 %605
      %607 = vrot.lane.b32.xlu0 %v458, 64
      %v608 = vpop.permute.xlu0 %607
      %609 = vrot.lane.b32.xlu0 %v459, 64
      %v610 = vpop.permute.xlu0 %609
      %611 = vrot.lane.b32.xlu0 %v460, 64
      %v612 = vpop.permute.xlu0 %611
      %613 = vrot.lane.b32.xlu0 %v461, 64
      %v614 = vpop.permute.xlu0 %613
      %615 = vrot.lane.b32.xlu0 %v462, 64
      %v616 = vpop.permute.xlu0 %615
      %617 = vrot.lane.b32.xlu0 %v463, 64
      %v618 = vpop.permute.xlu0 %617
      %619 = vrot.lane.b32.xlu0 %v464, 64
      %v620 = vpop.permute.xlu0 %619
      %vm621 = vcmask 523264
      %v624 = vsel %vm621, %v548, %v602
      %v627 = vsel %vm621, %v549, %v604
      %v630 = vsel %vm621, %v550, %v606
      %v633 = vsel %vm621, %v551, %v608
      %v636 = vsel %vm621, %v552, %v610
      %v639 = vsel %vm621, %v553, %v612
      %v642 = vsel %vm621, %v554, %v614
      %v645 = vsel %vm621, %v555, %v616
      %v648 = vsel %vm621, %v556, %v618
      %v651 = vsel %vm621, %v557, %v620
      %v668 = vunpack.c.l.b16 %v624
      %v669 = vunpack.c.l.b16 %v591
      %v670 = vunpack.c.l.b16 %v627
      %v671 = vunpack.c.l.b16 %v592
      %v672 = vunpack.c.l.b16 %v630
      %v673 = vunpack.c.l.b16 %v593
      %v674 = vunpack.c.l.b16 %v633
      %v675 = vunpack.c.l.b16 %v594
      %v676 = vunpack.c.l.b16 %v636
      %v677 = vunpack.c.l.b16 %v595
      %v678 = vunpack.c.l.b16 %v639
      %v679 = vunpack.c.l.b16 %v596
      %v680 = vunpack.c.l.b16 %v642
      %v681 = vunpack.c.l.b16 %v597
      %v682 = vunpack.c.l.b16 %v645
      %v683 = vunpack.c.l.b16 %v598
      %v684 = vld [vmem:[%s3] sm:$0xf]
      %v685 = vld [vmem:[%s3 + $0x4] sm:$0xf]
      %v686 = vld [vmem:[%s3 + $0x8] sm:$0xf]
      %v687 = vld [vmem:[%s3 + $0xc] sm:$0xf]
      %v688 = vld [vmem:[%s3 + $0x10] sm:$0xf]
      %v689 = vld [vmem:[%s3 + $0x14] sm:$0xf]
      %v690 = vld [vmem:[%s3 + $0x18] sm:$0xf]
      %v691 = vld [vmem:[%s3 + $0x1c] sm:$0xf]
      %v692 = vld [vmem:[%s3 + $0x20] sm:$0xf]
      %v693 = vld [vmem:[%s3 + $0x24] sm:$0xf]
      %v694 = vld [vmem:[%s3 + $0x28] sm:$0xf]
      %v695 = vld [vmem:[%s3 + $0x2c] sm:$0xf]
      %v696 = vld [vmem:[%s3 + $0x30] sm:$0xf]
      %v697 = vld [vmem:[%s3 + $0x34] sm:$0xf]
      %v698 = vld [vmem:[%s3 + $0x38] sm:$0xf]
      %v699 = vld [vmem:[%s3 + $0x3c] sm:$0xf]
      %v700 = vld [vmem:[%s3 + $0x40] sm:$0xf]
      %v701 = vld [vmem:[%s3 + $0x44] sm:$0xf]
      %v702 = vld [vmem:[%s3 + $0x48] sm:$0xf]
      %v703 = vld [vmem:[%s3 + $0x4c] sm:$0xf]
      %v704 = vld [vmem:[%s3 + $0x50] sm:$0xf]
      %v705 = vld [vmem:[%s3 + $0x54] sm:$0xf]
      %v706 = vld [vmem:[%s3 + $0x58] sm:$0xf]
      %v707 = vld [vmem:[%s3 + $0x5c] sm:$0xf]
      %v710 = vunpack.c.l.b16 %v648
      %v711 = vunpack.c.l.b16 %v599
      %s712 = scalar_lea.vmem %s3, 96
      %v713 = vld [vmem:[%s712] sm:$0xf]
      %v714 = vld [vmem:[%s712 + $0x4] sm:$0xf]
      %v715 = vld [vmem:[%s712 + $0x8] sm:$0xf]
      %v716 = vld [vmem:[%s712 + $0xc] sm:$0xf]
      %v717 = vld [vmem:[%s712 + $0x10] sm:$0xf]
      %v718 = vld [vmem:[%s712 + $0x14] sm:$0xf]
      %v719 = vld [vmem:[%s712 + $0x18] sm:$0xf]
      %v720 = vld [vmem:[%s712 + $0x1c] sm:$0xf]
      %v721 = vld [vmem:[%s712 + $0x20] sm:$0xf]
      %v722 = vld [vmem:[%s712 + $0x24] sm:$0xf]
      %v723 = vld [vmem:[%s712 + $0x28] sm:$0xf]
      %v724 = vld [vmem:[%s712 + $0x2c] sm:$0xf]
      %v725 = vld [vmem:[%s712 + $0x30] sm:$0xf]
      %v726 = vld [vmem:[%s712 + $0x34] sm:$0xf]
      %v727 = vld [vmem:[%s712 + $0x38] sm:$0xf]
      %v728 = vld [vmem:[%s712 + $0x3c] sm:$0xf]
      %v729 = vld [vmem:[%s712 + $0x40] sm:$0xf]
      %v730 = vld [vmem:[%s712 + $0x44] sm:$0xf]
      %v731 = vld [vmem:[%s712 + $0x48] sm:$0xf]
      %v732 = vld [vmem:[%s712 + $0x4c] sm:$0xf]
      %v733 = vld [vmem:[%s712 + $0x50] sm:$0xf]
      %v734 = vld [vmem:[%s712 + $0x54] sm:$0xf]
      %v735 = vld [vmem:[%s712 + $0x58] sm:$0xf]
      %v736 = vld [vmem:[%s712 + $0x5c] sm:$0xf]
      %v737 = vpack.c.b16 %v672, %v670
      %v738 = vpack.c.b16 %v673, %v671
      %v739 = vpack.c.b16 %v676, %v674
      %v740 = vpack.c.b16 %v677, %v675
      %v741 = vpack.c.b16 %v680, %v678
      %v742 = vpack.c.b16 %v681, %v679
      %v743 = vpack.c.b16 %v710, %v682
      %v744 = vpack.c.b16 %v711, %v683
      %v773 = vunpack.c.l.b16 %v713
      %v774 = vunpack.c.l.b16 %v714
      %v775 = vunpack.c.l.b16 %v715
      %v776 = vunpack.c.l.b16 %v716
      %v777 = vunpack.c.l.b16 %v717
      %v778 = vunpack.c.l.b16 %v718
      %v779 = vunpack.c.l.b16 %v719
      %v780 = vunpack.c.l.b16 %v720
      %v781 = vunpack.c.l.b16 %v721
      %v782 = vunpack.c.l.b16 %v722
      %v783 = vunpack.c.l.b16 %v723
      %v784 = vunpack.c.l.b16 %v724
      %v785 = vunpack.c.l.b16 %v725
      %v786 = vunpack.c.l.b16 %v726
      %v787 = vunpack.c.l.b16 %v727
      %v788 = vunpack.c.l.b16 %v728
      %v789 = vunpack.c.l.b16 %v729
      %v790 = vunpack.c.l.b16 %v730
      %v791 = vunpack.c.l.b16 %v731
      %v792 = vunpack.c.l.b16 %v732
      %v793 = vunpack.c.l.b16 %v733
      %v794 = vunpack.c.l.b16 %v734
      %v795 = vunpack.c.l.b16 %v735
      %v796 = vunpack.c.l.b16 %v736
      %v797 = vpack.c.b16 %v774, %v773
      %v798 = vpack.c.b16 %v776, %v775
      %v799 = vpack.c.b16 %v778, %v777
      %v800 = vpack.c.b16 %v780, %v779
      %v801 = vpack.c.b16 %v782, %v781
      %v802 = vpack.c.b16 %v784, %v783
      %v803 = vpack.c.b16 %v786, %v785
      %v804 = vpack.c.b16 %v788, %v787
      %v805 = vpack.c.b16 %v790, %v789
      %v806 = vpack.c.b16 %v792, %v791
      %v807 = vpack.c.b16 %v794, %v793
      %v808 = vpack.c.b16 %v796, %v795
      %v822 = vsel %vm621, %v738, 0
      %v825 = vsel %vm621, %v740, 0
      %v828 = vsel %vm621, %v742, 0
      %v831 = vsel %vm621, %v744, 0
      %833 = vmatpush.bf16.msra.mxu0 %v804
      %834 = vmatpush.bf16.msra.mxu0 %v803
      %835 = vmatpush.bf16.msra.mxu0 %v802
      %836 = vmatpush.bf16.msra.mxu0 %v801
      %837 = vmatpush.bf16.msra.mxu0 %v800
      %838 = vmatpush.bf16.msra.mxu0 %v799
      %839 = vmatpush.bf16.msra.mxu0 %v798
      %840 = vmatpush.bf16.msra.mxu0 %v797
      %841 = vmatmul.bf16.gmra.mxu0 %v737
      %v842 = vpop.f32.mrf.mxu0
      %v843 = vadd.f32 0.0, %v842
      %v844 = vpop.f32.mrf.mxu0
      %v845 = vadd.f32 0.0, %v844
      %846 = vmatmul.bf16.gmra.mxu0 %v739
      %v847 = vpop.f32.mrf.mxu0
      %v848 = vadd.f32 0.0, %v847
      %v849 = vpop.f32.mrf.mxu0
      %v850 = vadd.f32 0.0, %v849
      %851 = vmatmul.bf16.gmra.mxu0 %v741
      %v852 = vpop.f32.mrf.mxu0
      %v853 = vadd.f32 0.0, %v852
      %v854 = vpop.f32.mrf.mxu0
      %v855 = vadd.f32 0.0, %v854
      %856 = vmatmul.bf16.gmra.mxu0 %v743
      %v857 = vpop.f32.mrf.mxu0
      %v858 = vadd.f32 0.0, %v857
      %v859 = vpop.f32.mrf.mxu0
      %v860 = vadd.f32 0.0, %v859
      %861 = vdwg.mxu0
      %862 = vmatpush.bf16.msra.mxu0 0
      %863 = vmatpush.bf16.msra.mxu0 0
      %864 = vmatpush.bf16.msra.mxu0 0
      %865 = vmatpush.bf16.msra.mxu0 0
      %866 = vmatpush.bf16.msra.mxu0 %v808
      %867 = vmatpush.bf16.msra.mxu0 %v807
      %868 = vmatpush.bf16.msra.mxu0 %v806
      %869 = vmatpush.bf16.msra.mxu0 %v805
      %870 = vmatmul.bf16.gmra.mxu0 %v822
      %v871 = vpop.f32.mrf.mxu0
      %v872 = vadd.f32 %v843, %v871
      %v873 = vpop.f32.mrf.mxu0
      %v874 = vadd.f32 %v845, %v873
      %875 = vmatmul.bf16.gmra.mxu0 %v825
      %v876 = vpop.f32.mrf.mxu0
      %v877 = vadd.f32 %v848, %v876
      %v878 = vpop.f32.mrf.mxu0
      %v879 = vadd.f32 %v850, %v878
      %880 = vmatmul.bf16.gmra.mxu0 %v828
      %v881 = vpop.f32.mrf.mxu0
      %v882 = vadd.f32 %v853, %v881
      %v883 = vpop.f32.mrf.mxu0
      %v884 = vadd.f32 %v855, %v883
      %885 = vmatmul.bf16.gmra.mxu0 %v831
      %v886 = vpop.f32.mrf.mxu0
      %v887 = vadd.f32 %v858, %v886
      %v888 = vpop.f32.mrf.mxu0
      %v889 = vadd.f32 %v860, %v888
      %890 = vdwg.mxu0
      %v891 = vpack.c.b16 %v670, %v668
      %v892 = vpack.c.b16 %v671, %v669
      %v893 = vpack.c.b16 %v674, %v672
      %v894 = vpack.c.b16 %v675, %v673
      %v895 = vpack.c.b16 %v678, %v676
      %v896 = vpack.c.b16 %v679, %v677
      %v897 = vpack.c.b16 %v682, %v680
      %v898 = vpack.c.b16 %v683, %v681
      %v927 = vunpack.c.l.b16 %v684
      %v928 = vunpack.c.l.b16 %v685
      %v929 = vunpack.c.l.b16 %v686
      %v930 = vunpack.c.l.b16 %v687
      %v931 = vunpack.c.l.b16 %v688
      %v932 = vunpack.c.l.b16 %v689
      %v933 = vunpack.c.l.b16 %v690
      %v934 = vunpack.c.l.b16 %v691
      %v935 = vunpack.c.l.b16 %v692
      %v936 = vunpack.c.l.b16 %v693
      %v937 = vunpack.c.l.b16 %v694
      %v938 = vunpack.c.l.b16 %v695
      %v939 = vunpack.c.l.b16 %v696
      %v940 = vunpack.c.l.b16 %v697
      %v941 = vunpack.c.l.b16 %v698
      %v942 = vunpack.c.l.b16 %v699
      %v943 = vunpack.c.l.b16 %v700
      %v944 = vunpack.c.l.b16 %v701
      %v945 = vunpack.c.l.b16 %v702
      %v946 = vunpack.c.l.b16 %v703
      %v947 = vunpack.c.l.b16 %v704
      %v948 = vunpack.c.l.b16 %v705
      %v949 = vunpack.c.l.b16 %v706
      %v950 = vunpack.c.l.b16 %v707
      %v951 = vpack.c.b16 %v928, %v927
      %v952 = vpack.c.b16 %v930, %v929
      %v953 = vpack.c.b16 %v932, %v931
      %v954 = vpack.c.b16 %v934, %v933
      %v955 = vpack.c.b16 %v936, %v935
      %v956 = vpack.c.b16 %v938, %v937
      %v957 = vpack.c.b16 %v940, %v939
      %v958 = vpack.c.b16 %v942, %v941
      %v959 = vpack.c.b16 %v944, %v943
      %v960 = vpack.c.b16 %v946, %v945
      %v961 = vpack.c.b16 %v948, %v947
      %v962 = vpack.c.b16 %v950, %v949
      %v976 = vsel %vm621, %v892, 0
      %v979 = vsel %vm621, %v894, 0
      %v982 = vsel %vm621, %v896, 0
      %v985 = vsel %vm621, %v898, 0
      %987 = vmatpush.bf16.msra.mxu0 %v958
      %988 = vmatpush.bf16.msra.mxu0 %v957
      %989 = vmatpush.bf16.msra.mxu0 %v956
      %990 = vmatpush.bf16.msra.mxu0 %v955
      %991 = vmatpush.bf16.msra.mxu0 %v954
      %992 = vmatpush.bf16.msra.mxu0 %v953
      %993 = vmatpush.bf16.msra.mxu0 %v952
      %994 = vmatpush.bf16.msra.mxu0 %v951
      %995 = vmatmul.bf16.gmra.mxu0 %v891
      %v996 = vpop.f32.mrf.mxu0
      %v997 = vadd.f32 %v872, %v996
      %v998 = vpop.f32.mrf.mxu0
      %v999 = vadd.f32 %v874, %v998
      %1000 = vmatmul.bf16.gmra.mxu0 %v893
      %v1001 = vpop.f32.mrf.mxu0
      %v1002 = vadd.f32 %v877, %v1001
      %v1003 = vpop.f32.mrf.mxu0
      %v1004 = vadd.f32 %v879, %v1003
      %1005 = vmatmul.bf16.gmra.mxu0 %v895
      %v1006 = vpop.f32.mrf.mxu0
      %v1007 = vadd.f32 %v882, %v1006
      %v1008 = vpop.f32.mrf.mxu0
      %v1009 = vadd.f32 %v884, %v1008
      %1010 = vmatmul.bf16.gmra.mxu0 %v897
      %v1011 = vpop.f32.mrf.mxu0
      %v1012 = vadd.f32 %v887, %v1011
      %v1013 = vpop.f32.mrf.mxu0
      %v1014 = vadd.f32 %v889, %v1013
      %1015 = vdwg.mxu0
      %1016 = vmatpush.bf16.msra.mxu0 0
      %1017 = vmatpush.bf16.msra.mxu0 0
      %1018 = vmatpush.bf16.msra.mxu0 0
      %1019 = vmatpush.bf16.msra.mxu0 0
      %1020 = vmatpush.bf16.msra.mxu0 %v962
      %1021 = vmatpush.bf16.msra.mxu0 %v961
      %1022 = vmatpush.bf16.msra.mxu0 %v960
      %1023 = vmatpush.bf16.msra.mxu0 %v959
      %1024 = vmatmul.bf16.gmra.mxu0 %v976
      %v1025 = vpop.f32.mrf.mxu0
      %v1026 = vadd.f32 %v997, %v1025
      %v1027 = vpop.f32.mrf.mxu0
      %v1028 = vadd.f32 %v999, %v1027
      %1029 = vmatmul.bf16.gmra.mxu0 %v979
      %v1030 = vpop.f32.mrf.mxu0
      %v1031 = vadd.f32 %v1002, %v1030
      %v1032 = vpop.f32.mrf.mxu0
      %v1033 = vadd.f32 %v1004, %v1032
      %1034 = vmatmul.bf16.gmra.mxu0 %v982
      %v1035 = vpop.f32.mrf.mxu0
      %v1036 = vadd.f32 %v1007, %v1035
      %v1037 = vpop.f32.mrf.mxu0
      %v1038 = vadd.f32 %v1009, %v1037
      %1039 = vmatmul.bf16.gmra.mxu0 %v985
      %v1040 = vpop.f32.mrf.mxu0
      %v1041 = vadd.f32 %v1012, %v1040
      %v1042 = vpop.f32.mrf.mxu0
      %v1043 = vadd.f32 %v1014, %v1042
      %1044 = vdwg.mxu0
      %v1047 = vunpack.c.l.b16 %v651
      %v1048 = vunpack.c.l.b16 %v600
      %s1049 = scalar_lea.vmem %s3, 192
      %v1050 = vld [vmem:[%s1049] sm:$0xf]
      %v1051 = vld [vmem:[%s1049 + $0x4] sm:$0xf]
      %v1052 = vld [vmem:[%s1049 + $0x8] sm:$0xf]
      %v1053 = vld [vmem:[%s1049 + $0xc] sm:$0xf]
      %v1054 = vld [vmem:[%s1049 + $0x10] sm:$0xf]
      %v1055 = vld [vmem:[%s1049 + $0x14] sm:$0xf]
      %v1056 = vld [vmem:[%s1049 + $0x18] sm:$0xf]
      %v1057 = vld [vmem:[%s1049 + $0x1c] sm:$0xf]
      %v1058 = vld [vmem:[%s1049 + $0x20] sm:$0xf]
      %v1059 = vld [vmem:[%s1049 + $0x24] sm:$0xf]
      %v1060 = vld [vmem:[%s1049 + $0x28] sm:$0xf]
      %v1061 = vld [vmem:[%s1049 + $0x2c] sm:$0xf]
      %v1062 = vld [vmem:[%s1049 + $0x30] sm:$0xf]
      %v1063 = vld [vmem:[%s1049 + $0x34] sm:$0xf]
      %v1064 = vld [vmem:[%s1049 + $0x38] sm:$0xf]
      %v1065 = vld [vmem:[%s1049 + $0x3c] sm:$0xf]
      %v1066 = vld [vmem:[%s1049 + $0x40] sm:$0xf]
      %v1067 = vld [vmem:[%s1049 + $0x44] sm:$0xf]
      %v1068 = vld [vmem:[%s1049 + $0x48] sm:$0xf]
      %v1069 = vld [vmem:[%s1049 + $0x4c] sm:$0xf]
      %v1070 = vld [vmem:[%s1049 + $0x50] sm:$0xf]
      %v1071 = vld [vmem:[%s1049 + $0x54] sm:$0xf]
      %v1072 = vld [vmem:[%s1049 + $0x58] sm:$0xf]
      %v1073 = vld [vmem:[%s1049 + $0x5c] sm:$0xf]
      %v1074 = vpack.c.b16 %v1047, %v710
      %v1075 = vpack.c.b16 %v1048, %v711
      %v1101 = vunpack.c.l.b16 %v1050
      %v1102 = vunpack.c.l.b16 %v1051
      %v1103 = vunpack.c.l.b16 %v1052
      %v1104 = vunpack.c.l.b16 %v1053
      %v1105 = vunpack.c.l.b16 %v1054
      %v1106 = vunpack.c.l.b16 %v1055
      %v1107 = vunpack.c.l.b16 %v1056
      %v1108 = vunpack.c.l.b16 %v1057
      %v1109 = vunpack.c.l.b16 %v1058
      %v1110 = vunpack.c.l.b16 %v1059
      %v1111 = vunpack.c.l.b16 %v1060
      %v1112 = vunpack.c.l.b16 %v1061
      %v1113 = vunpack.c.l.b16 %v1062
      %v1114 = vunpack.c.l.b16 %v1063
      %v1115 = vunpack.c.l.b16 %v1064
      %v1116 = vunpack.c.l.b16 %v1065
      %v1117 = vunpack.c.l.b16 %v1066
      %v1118 = vunpack.c.l.b16 %v1067
      %v1119 = vunpack.c.l.b16 %v1068
      %v1120 = vunpack.c.l.b16 %v1069
      %v1121 = vunpack.c.l.b16 %v1070
      %v1122 = vunpack.c.l.b16 %v1071
      %v1123 = vunpack.c.l.b16 %v1072
      %v1124 = vunpack.c.l.b16 %v1073
      %v1125 = vpack.c.b16 %v1102, %v1101
      %v1126 = vpack.c.b16 %v1104, %v1103
      %v1127 = vpack.c.b16 %v1106, %v1105
      %v1128 = vpack.c.b16 %v1108, %v1107
      %v1129 = vpack.c.b16 %v1110, %v1109
      %v1130 = vpack.c.b16 %v1112, %v1111
      %v1131 = vpack.c.b16 %v1114, %v1113
      %v1132 = vpack.c.b16 %v1116, %v1115
      %v1133 = vpack.c.b16 %v1118, %v1117
      %v1134 = vpack.c.b16 %v1120, %v1119
      %v1135 = vpack.c.b16 %v1122, %v1121
      %v1136 = vpack.c.b16 %v1124, %v1123
      %v1150 = vsel %vm621, %v1075, 0
      %1152 = vmatpush.bf16.msra.mxu0 %v1132
      %1153 = vmatpush.bf16.msra.mxu0 %v1131
      %1154 = vmatpush.bf16.msra.mxu0 %v1130
      %1155 = vmatpush.bf16.msra.mxu0 %v1129
      %1156 = vmatpush.bf16.msra.mxu0 %v1128
      %1157 = vmatpush.bf16.msra.mxu0 %v1127
      %1158 = vmatpush.bf16.msra.mxu0 %v1126
      %1159 = vmatpush.bf16.msra.mxu0 %v1125
      %1160 = vmatmul.bf16.gmra.mxu0 %v893
      %v1161 = vpop.f32.mrf.mxu0
      %v1162 = vadd.f32 0.0, %v1161
      %v1163 = vpop.f32.mrf.mxu0
      %v1164 = vadd.f32 0.0, %v1163
      %1165 = vmatmul.bf16.gmra.mxu0 %v895
      %v1166 = vpop.f32.mrf.mxu0
      %v1167 = vadd.f32 0.0, %v1166
      %v1168 = vpop.f32.mrf.mxu0
      %v1169 = vadd.f32 0.0, %v1168
      %1170 = vmatmul.bf16.gmra.mxu0 %v897
      %v1171 = vpop.f32.mrf.mxu0
      %v1172 = vadd.f32 0.0, %v1171
      %v1173 = vpop.f32.mrf.mxu0
      %v1174 = vadd.f32 0.0, %v1173
      %1175 = vmatmul.bf16.gmra.mxu0 %v1074
      %v1176 = vpop.f32.mrf.mxu0
      %v1177 = vadd.f32 0.0, %v1176
      %v1178 = vpop.f32.mrf.mxu0
      %v1179 = vadd.f32 0.0, %v1178
      %1180 = vdwg.mxu0
      %1181 = vmatpush.bf16.msra.mxu0 0
      %1182 = vmatpush.bf16.msra.mxu0 0
      %1183 = vmatpush.bf16.msra.mxu0 0
      %1184 = vmatpush.bf16.msra.mxu0 0
      %1185 = vmatpush.bf16.msra.mxu0 %v1136
      %1186 = vmatpush.bf16.msra.mxu0 %v1135
      %1187 = vmatpush.bf16.msra.mxu0 %v1134
      %1188 = vmatpush.bf16.msra.mxu0 %v1133
      %1189 = vmatmul.bf16.gmra.mxu0 %v979
      %v1190 = vpop.f32.mrf.mxu0
      %v1191 = vadd.f32 %v1162, %v1190
      %v1192 = vpop.f32.mrf.mxu0
      %v1193 = vadd.f32 %v1164, %v1192
      %1194 = vmatmul.bf16.gmra.mxu0 %v982
      %v1195 = vpop.f32.mrf.mxu0
      %v1196 = vadd.f32 %v1167, %v1195
      %v1197 = vpop.f32.mrf.mxu0
      %v1198 = vadd.f32 %v1169, %v1197
      %1199 = vmatmul.bf16.gmra.mxu0 %v985
      %v1200 = vpop.f32.mrf.mxu0
      %v1201 = vadd.f32 %v1172, %v1200
      %v1202 = vpop.f32.mrf.mxu0
      %v1203 = vadd.f32 %v1174, %v1202
      %1204 = vmatmul.bf16.gmra.mxu0 %v1150
      %v1205 = vpop.f32.mrf.mxu0
      %v1206 = vadd.f32 %v1177, %v1205
      %v1207 = vpop.f32.mrf.mxu0
      %v1208 = vadd.f32 %v1179, %v1207
      %1209 = vdwg.mxu0
      %v1210 = vadd.f32 %v1026, %v1191
      %v1211 = vadd.f32 %v1028, %v1193
      %v1212 = vadd.f32 %v1031, %v1196
      %v1213 = vadd.f32 %v1033, %v1198
      %v1214 = vadd.f32 %v1036, %v1201
      %v1215 = vadd.f32 %v1038, %v1203
      %v1216 = vadd.f32 %v1041, %v1206
      %v1217 = vadd.f32 %v1043, %v1208
      %v1218 = vld [vmem:[%s4] sm:$0x1]
      %v1220 = vperm.slane %v1218, 0
      %v1222 = vadd.f32 %v1210, %v1220
      %v1223 = vadd.f32 %v1211, %v1220
      %v1224 = vadd.f32 %v1212, %v1220
      %v1225 = vadd.f32 %v1213, %v1220
      %v1226 = vadd.f32 %v1214, %v1220
      %v1227 = vadd.f32 %v1215, %v1220
      %v1228 = vadd.f32 %v1216, %v1220
      %v1229 = vadd.f32 %v1217, %v1220
      %v1230 = vmax.f32 %v1222, 0.0
      %v1231 = vmax.f32 %v1223, 0.0
      %v1232 = vmax.f32 %v1224, 0.0
      %v1233 = vmax.f32 %v1225, 0.0
      %v1234 = vmax.f32 %v1226, 0.0
      %v1235 = vmax.f32 %v1227, 0.0
      %v1236 = vmax.f32 %v1228, 0.0
      %v1237 = vmax.f32 %v1229, 0.0
      %v1238 = vpack.c.bf16 %v1230, %v1230
      %v1239 = vpack.c.bf16 %v1231, %v1231
      %v1240 = vpack.c.bf16 %v1232, %v1232
      %v1241 = vpack.c.bf16 %v1233, %v1233
      %v1242 = vpack.c.bf16 %v1234, %v1234
      %v1243 = vpack.c.bf16 %v1235, %v1235
      %v1244 = vpack.c.bf16 %v1236, %v1236
      %v1245 = vpack.c.bf16 %v1237, %v1237
      %1246 = vst [vmem:[%s380] sm:$0xf] %v1238
      %1247 = vst [vmem:[%s380 + $0x4] sm:$0xf] %v1239
      %1248 = vst [vmem:[%s380 + $0x8] sm:$0xf] %v1240
      %1249 = vst [vmem:[%s380 + $0xc] sm:$0xf] %v1241
      %1250 = vst [vmem:[%s380 + $0x10] sm:$0xf] %v1242
      %1251 = vst [vmem:[%s380 + $0x14] sm:$0xf] %v1243
      %1252 = vst [vmem:[%s380 + $0x18] sm:$0xf] %v1244
      %1253 = vst [vmem:[%s380 + $0x1c] sm:$0xf] %v1245
      %s1254 = smul.u32 8, %s21
      %p1255 = scmp.lt.s32.totalorder %s20, 1
      %s1256 = scalar_select %p1255, %s20, 1
      %p1257 = scmp.lt.s32.totalorder %s1254, 7
      %s1258 = scalar_select %p1257, %s1254, 7
      %s1259 = smul.addr %s1256, 8
      %s1260 = sadd.s32 %s1258, %s1259
      %s1261 = smul.addr %s1260, 4
      %s1262 = scalar_lea.vmem %s5, %s1261
      // Predicated region
      $region41: #{netf_forward.6} parent=39 // pred_check
        %p1263 = pneg %p190
      $region42: #{netf_forward.6} parent=39 // pred_check_branch
        %1265 = sbr.rel (%p1263) target = $region44
      $region43: #{netf_forward.6} parent=39 // pred_region
        %s1266 = smul.u32 8, %s21
      $region44: #{netf_forward.6} parent=39 // pred_fallthru
        _
    $region40: #{netf_forward.6} parent=5 // pred_fallthru
      _
    %p1267 = scmp.le.s32.totalorder 2, %s11
    // Predicated region
    $region45: #{netf_forward.6} parent=5 // pred_check
      %p1268 = pneg %p1267
    $region46: #{netf_forward.6} parent=5 // pred_check_branch
      %1270 = sbr.rel (%p1268) target = $region48
    $region47: #{netf_forward.6} parent=5 // pred_region
      %s1271 = ssub.s32 %s11, 2
      // Predicated region
      $region49: #{netf_forward.6} parent=47 // pred_check
        %p1272 = pneg %p196
      $region50: #{netf_forward.6} parent=47 // pred_check_branch
        %1274 = sbr.rel (%p1272) target = $region52
      $region51: #{netf_forward.6} parent=47 // pred_region
        %s1275 = smul.u32 8, %s23
        %p1276 = scmp.lt.s32.totalorder %s22, 1
        %s1277 = scalar_select %p1276, %s22, 1
        %p1278 = scmp.lt.s32.totalorder %s1275, 7
        %s1279 = scalar_select %p1278, %s1275, 7
        %s1280 = smul.addr %s1277, 8
        %s1281 = sadd.s32 %s1279, %s1280
        %s1282 = smul.addr %s1281, 4
        %s1283 = scalar_lea.vmem %s5, %s1282
      $region52: #{netf_forward.6} parent=47 // pred_fallthru
        _
    $region48: #{netf_forward.6} parent=5 // pred_fallthru
      _
  $region6: #{netf_forward.6} parent=0 // loop_footer
    %s15 = sadd.s32 1, %s11
  $region7: #{netf_forward.6} parent=0 // loop_footer_branch
    %10 = sbr.rel target = $region3
  $region8: #{netf_forward.6} parent=0 // loop_exit
    _

// kernel: netf_forward.7
$region0: #{netf_forward.7}
  #allocation0 [shape = 'u32[]', space=smem, size = 0x4, offset = 0x4, fixed_abs, tag = 'smem constant byte address 0x4 - core index']
  #allocation1 [shape = 'u32[72,128]{1,0:T(1,128)}', space=vmem, size = 0x9000, scoped, tag = 'internal scratch']
  %s0 = inlined_call_operand.vmem [shape: bf16[2,8,8,128], index: 0, kind: input, shape index: {}, may-alias: {0,1,2}]
  %s1 = inlined_call_operand.vmem [shape: bf16[2,8,8,128], index: 1, kind: input, shape index: {}, may-alias: {0,1,2}]
  %s2 = inlined_call_operand.vmem [shape: bf16[2,8,8,128], index: 2, kind: input, shape index: {}, may-alias: {0,1,2}]
  %s3 = inlined_call_operand.vmem [shape: bf16[3,384,128], index: 3, kind: input, shape index: {}]
  %s4 = inlined_call_operand.vmem [shape: f32[1,128], index: 4, kind: input, shape index: {}]
  %s5 = inlined_call_operand.hbm [shape: f32[2,8,8,128], index: 5, kind: output, shape index: {}]
  %s6 = sld [smem:[#allocation0]]
  $region53: #{netf_forward.7} parent=0
    _
  %s8 = ssub.s32 1, %s6
  %s9 = scalar_select 0, %s8, %s6
  $region1: #{netf_forward.7} parent=0
    #allocation2 [shape = 'u8[65536]{0}', space=vmem, size = 0x10000, scoped, tag = 'output window, operand 0']
    #allocation3 [shape = 's32[2]{0}', space=sflag, size = 0x8, scoped, tag = 'scoped memory for netf_forward.7']
    %10 = vsyncpa [#allocation3], 0
    %s11 = scalar_lea.sflag [#allocation3], 1
    %12 = vsyncpa %s11, 0
    loop: start=0, step=1, limit=4
    $region2: #{netf_forward.7} parent=1 // loop_pre_header
      _
    $region3: #{netf_forward.7} parent=1 // loop_header
      %s14 = sphi 0, %s18
      %p15 = scmp.ge.s32.totalorder %s14, 4
      %s21 = sphi 0, %s33
      %s22 = sphi 0, %s29
      %s23 = sphi 0, %s21
      %s24 = sphi 0, %s22
      %s25 = sphi 0, %s23
      %s26 = sphi 0, %s24
      %s46 = sphi 0, %s48
      %s49 = sphi 0, %s46
      %s50 = sphi 0, %s49
      %s66 = sphi 0, %s50
      %s74 = sphi 0, %s76
      %s77 = sphi 0, %s74
      %s78 = sphi 0, %s77
      %s94 = sphi 0, %s78
      %s110 = sphi 0, %s112
      %s113 = sphi 0, %s110
      %s114 = sphi 0, %s113
      %s130 = sphi 0, %s114
      %s134 = sphi 0, %s134
      %s136 = sphi 0, %s134
      %s137 = sphi 0, %s136
      %s151 = sphi 0, %s137
      %s155 = sphi 0, %s155
      %s157 = sphi 0, %s155
      %s158 = sphi 0, %s157
      %s172 = sphi 0, %s158
      %s180 = sphi 0, %s182
      %s183 = sphi 0, %s180
      %s184 = sphi 0, %s183
      %s200 = sphi 0, %s184
    $region4: #{netf_forward.7} parent=1 // loop_header_branch
      %17 = sbr.rel (%p15) target = $region8
    $region5: #{netf_forward.7} parent=1 // loop_body
      %s19 = ssub.s32 %s14, 1
      %s20 = ssub.s32 %s14, 2
      %s27 = sadd.s32 1, %s22
      %p28 = scmp.ge.s32.totalorder %s27, 1
      %s29 = scalar_select %p28, 0, %s27
      %s30 = sadd.s32 1, %s21
      %s31 = scalar_select %p28, %s30, %s21
      %p32 = scmp.ge.s32.totalorder %s31, 2
      %s33 = scalar_select %p32, 0, %s31
      %s34 = smul.u32 %s22, 8
      %s35 = ssub.s32 %s34, 1
      %p36 = scmp.gt.s32.totalorder %s35, 0
      %s37 = scalar_select %p36, %s35, 0
      %s38 = smul.u32 %s29, 8
      %s39 = ssub.s32 %s38, 1
      %p40 = scmp.gt.s32.totalorder %s39, 0
      %s41 = scalar_select %p40, %s39, 0
      %s42 = ssub.s32 %s21, %s33
      %s43 = ssub.s32 %s37, %s41
      %s44 = sor.u32 %s42, %s43
      %p45 = scmp.eq.s32.totalorder %s44, 0
      %s47 = sadd.s32 %s46, 1
      %s48 = scalar_select %p45, %s46, %s47
      %p51 = pneg %p45
      %p52 = scmp.eq.s32.totalorder %s14, 1
      %p53 = por %p51, %p52
      %p54 = scmp.ne.s32.totalorder %s46, %s49
      %p55 = scmp.eq.s32.totalorder %s14, 0
      %p56 = por %p54, %p55
      %p57 = scmp.ne.s32.totalorder %s46, %s49
      %p58 = scmp.eq.s32.totalorder %s19, 1
      %p59 = por %p57, %p58
      %p60 = scmp.ne.s32.totalorder %s49, %s50
      %p61 = scmp.eq.s32.totalorder %s19, 0
      %p62 = por %p60, %p61
      %p63 = scmp.ne.s32.totalorder %s49, %s50
      %p64 = scmp.eq.s32.totalorder %s20, 1
      %p65 = por %p63, %p64
      %p67 = scmp.ne.s32.totalorder %s50, %s66
      %p68 = scmp.eq.s32.totalorder %s20, 0
      %p69 = por %p67, %p68
      %s70 = ssub.s32 %s21, %s33
      %s71 = ssub.s32 %s22, %s29
      %s72 = sor.u32 %s70, %s71
      %p73 = scmp.eq.s32.totalorder %s72, 0
      %s75 = sadd.s32 %s74, 1
      %s76 = scalar_select %p73, %s74, %s75
      %p79 = pneg %p73
      %p80 = scmp.eq.s32.totalorder %s14, 1
      %p81 = por %p79, %p80
      %p82 = scmp.ne.s32.totalorder %s74, %s77
      %p83 = scmp.eq.s32.totalorder %s14, 0
      %p84 = por %p82, %p83
      %p85 = scmp.ne.s32.totalorder %s74, %s77
      %p86 = scmp.eq.s32.totalorder %s19, 1
      %p87 = por %p85, %p86
      %p88 = scmp.ne.s32.totalorder %s77, %s78
      %p89 = scmp.eq.s32.totalorder %s19, 0
      %p90 = por %p88, %p89
      %p91 = scmp.ne.s32.totalorder %s77, %s78
      %p92 = scmp.eq.s32.totalorder %s20, 1
      %p93 = por %p91, %p92
      %p95 = scmp.ne.s32.totalorder %s78, %s94
      %p96 = scmp.eq.s32.totalorder %s20, 0
      %p97 = por %p95, %p96
      %s98 = smul.u32 %s22, 8
      %s99 = sadd.s32 %s98, 8
      %p100 = scmp.lt.s32.totalorder %s99, 7
      %s101 = scalar_select %p100, %s99, 7
      %s102 = smul.u32 %s29, 8
      %s103 = sadd.s32 %s102, 8
      %p104 = scmp.lt.s32.totalorder %s103, 7
      %s105 = scalar_select %p104, %s103, 7
      %s106 = ssub.s32 %s21, %s33
      %s107 = ssub.s32 %s101, %s105
      %s108 = sor.u32 %s106, %s107
      %p109 = scmp.eq.s32.totalorder %s108, 0
      %s111 = sadd.s32 %s110, 1
      %s112 = scalar_select %p109, %s110, %s111
      %p115 = pneg %p109
      %p116 = scmp.eq.s32.totalorder %s14, 1
      %p117 = por %p115, %p116
      %p118 = scmp.ne.s32.totalorder %s110, %s113
      %p119 = scmp.eq.s32.totalorder %s14, 0
      %p120 = por %p118, %p119
      %p121 = scmp.ne.s32.totalorder %s110, %s113
      %p122 = scmp.eq.s32.totalorder %s19, 1
      %p123 = por %p121, %p122
      %p124 = scmp.ne.s32.totalorder %s113, %s114
      %p125 = scmp.eq.s32.totalorder %s19, 0
      %p126 = por %p124, %p125
      %p127 = scmp.ne.s32.totalorder %s113, %s114
      %p128 = scmp.eq.s32.totalorder %s20, 1
      %p129 = por %p127, %p128
      %p131 = scmp.ne.s32.totalorder %s114, %s130
      %p132 = scmp.eq.s32.totalorder %s20, 0
      %p133 = por %p131, %p132
      %s135 = sadd.s32 %s134, 1
      %p138 = scmp.eq.s32.totalorder %s14, 1
      %p139 = scmp.ne.s32.totalorder %s134, %s136
      %p140 = scmp.eq.s32.totalorder %s14, 0
      %p141 = por %p139, %p140
      %p142 = scmp.ne.s32.totalorder %s134, %s136
      %p143 = scmp.eq.s32.totalorder %s19, 1
      %p144 = por %p142, %p143
      %p145 = scmp.ne.s32.totalorder %s136, %s137
      %p146 = scmp.eq.s32.totalorder %s19, 0
      %p147 = por %p145, %p146
      %p148 = scmp.ne.s32.totalorder %s136, %s137
      %p149 = scmp.eq.s32.totalorder %s20, 1
      %p150 = por %p148, %p149
      %p152 = scmp.ne.s32.totalorder %s137, %s151
      %p153 = scmp.eq.s32.totalorder %s20, 0
      %p154 = por %p152, %p153
      %s156 = sadd.s32 %s155, 1
      %p159 = scmp.eq.s32.totalorder %s14, 1
      %p160 = scmp.ne.s32.totalorder %s155, %s157
      %p161 = scmp.eq.s32.totalorder %s14, 0
      %p162 = por %p160, %p161
      %p163 = scmp.ne.s32.totalorder %s155, %s157
      %p164 = scmp.eq.s32.totalorder %s19, 1
      %p165 = por %p163, %p164
      %p166 = scmp.ne.s32.totalorder %s157, %s158
      %p167 = scmp.eq.s32.totalorder %s19, 0
      %p168 = por %p166, %p167
      %p169 = scmp.ne.s32.totalorder %s157, %s158
      %p170 = scmp.eq.s32.totalorder %s20, 1
      %p171 = por %p169, %p170
      %p173 = scmp.ne.s32.totalorder %s158, %s172
      %p174 = scmp.eq.s32.totalorder %s20, 0
      %p175 = por %p173, %p174
      %s176 = ssub.s32 %s21, %s33
      %s177 = ssub.s32 %s22, %s29
      %s178 = sor.u32 %s176, %s177
      %p179 = scmp.eq.s32.totalorder %s178, 0
      %s181 = sadd.s32 %s180, 1
      %s182 = scalar_select %p179, %s180, %s181
      %p185 = pneg %p179
      %p186 = scmp.eq.s32.totalorder %s14, 1
      %p187 = por %p185, %p186
      %p188 = scmp.ne.s32.totalorder %s180, %s183
      %p189 = scmp.eq.s32.totalorder %s14, 0
      %p190 = por %p188, %p189
      %p191 = scmp.ne.s32.totalorder %s180, %s183
      %p192 = scmp.eq.s32.totalorder %s19, 1
      %p193 = por %p191, %p192
      %p194 = scmp.ne.s32.totalorder %s183, %s184
      %p195 = scmp.eq.s32.totalorder %s19, 0
      %p196 = por %p194, %p195
      %p197 = scmp.ne.s32.totalorder %s183, %s184
      %p198 = scmp.eq.s32.totalorder %s20, 1
      %p199 = por %p197, %p198
      %p201 = scmp.ne.s32.totalorder %s184, %s200
      %p202 = scmp.eq.s32.totalorder %s20, 0
      %p203 = por %p201, %p202
      %p204 = scmp.le.s32.totalorder 1, %s14
      %p205 = scmp.lt.s32.totalorder %s14, 3
      %p206 = pnand %p204, %p205
      %p207 = pneg %p206
      // Predicated region
      $region9: #{netf_forward.7} parent=5 // pred_check
        _
      $region10: #{netf_forward.7} parent=5 // pred_check_branch
        %209 = sbr.rel (%p206) target = $region12
      $region11: #{netf_forward.7} parent=5 // pred_region
        %s210 = ssub.s32 %s14, 1
        // Predicated region
        $region13: #{netf_forward.7} parent=11 // pred_check
          %p211 = pneg %p147
        $region14: #{netf_forward.7} parent=11 // pred_check_branch
          %213 = sbr.rel (%p211) target = $region16
        $region15: #{netf_forward.7} parent=11 // pred_region
          _
        $region16: #{netf_forward.7} parent=11 // pred_fallthru
          _
        // Predicated region
        $region17: #{netf_forward.7} parent=11 // pred_check
          %p214 = pneg %p168
        $region18: #{netf_forward.7} parent=11 // pred_check_branch
          %216 = sbr.rel (%p214) target = $region20
        $region19: #{netf_forward.7} parent=11 // pred_region
          _
        $region20: #{netf_forward.7} parent=11 // pred_fallthru
          _
      $region12: #{netf_forward.7} parent=5 // pred_fallthru
        _
      %p217 = scmp.lt.s32.totalorder %s14, 2
      // Predicated region
      $region21: #{netf_forward.7} parent=5 // pred_check
        %p218 = pneg %p217
      $region22: #{netf_forward.7} parent=5 // pred_check_branch
        %220 = sbr.rel (%p218) target = $region24
      $region23: #{netf_forward.7} parent=5 // pred_region
        // Predicated region
        $region25: #{netf_forward.7} parent=23 // pred_check
          %p221 = pneg %p56
        $region26: #{netf_forward.7} parent=23 // pred_check_branch
          %223 = sbr.rel (%p221) target = $region28
        $region27: #{netf_forward.7} parent=23 // pred_region
          %s224 = smul.u32 %s22, 8
          %s225 = ssub.s32 %s224, 1
          %p226 = scmp.gt.s32.totalorder %s225, 0
          %s227 = scalar_select %p226, %s225, 0
          %p228 = scmp.lt.s32.totalorder %s21, 1
          %s229 = scalar_select %p228, %s21, 1
          %p230 = scmp.lt.s32.totalorder %s227, 7
          %s231 = scalar_select %p230, %s227, 7
          %s232 = smul.addr %s229, 8
          %s233 = sadd.s32 %s231, %s232
          %s234 = smul.addr %s233, 4
          %s235 = scalar_lea.vmem %s0, %s234
          %s236 = smul.u32 %s22, 8
          %s237 = ssub.s32 %s236, 1
          %p238 = scmp.gt.s32.totalorder %s237, 0
          %s239 = scalar_select %p238, %s237, 0
        $region28: #{netf_forward.7} parent=23 // pred_fallthru
          _
        // Predicated region
        $region29: #{netf_forward.7} parent=23 // pred_check
          %p240 = pneg %p84
        $region30: #{netf_forward.7} parent=23 // pred_check_branch
          %242 = sbr.rel (%p240) target = $region32
        $region31: #{netf_forward.7} parent=23 // pred_region
          %s243 = smul.u32 8, %s22
          %p244 = scmp.lt.s32.totalorder %s21, 1
          %s245 = scalar_select %p244, %s21, 1
          %p246 = scmp.lt.s32.totalorder %s243, 7
          %s247 = scalar_select %p246, %s243, 7
          %s248 = smul.addr %s245, 8
          %s249 = sadd.s32 %s247, %s248
          %s250 = smul.addr %s249, 4
          %s251 = scalar_lea.vmem %s1, %s250
          %s252 = smul.u32 8, %s22
        $region32: #{netf_forward.7} parent=23 // pred_fallthru
          _
        // Predicated region
        $region33: #{netf_forward.7} parent=23 // pred_check
          %p253 = pneg %p120
        $region34: #{netf_forward.7} parent=23 // pred_check_branch
          %255 = sbr.rel (%p253) target = $region36
        $region35: #{netf_forward.7} parent=23 // pred_region
          %s256 = smul.u32 %s22, 8
          %s257 = sadd.s32 %s256, 8
          %p258 = scmp.lt.s32.totalorder %s257, 7
          %s259 = scalar_select %p258, %s257, 7
          %p260 = scmp.lt.s32.totalorder %s21, 1
          %s261 = scalar_select %p260, %s21, 1
          %p262 = scmp.lt.s32.totalorder %s259, 7
          %s263 = scalar_select %p262, %s259, 7
          %s264 = smul.addr %s261, 8
          %s265 = sadd.s32 %s263, %s264
          %s266 = smul.addr %s265, 4
          %s267 = scalar_lea.vmem %s2, %s266
          %s268 = smul.u32 %s22, 8
          %s269 = sadd.s32 %s268, 8
          %p270 = scmp.lt.s32.totalorder %s269, 7
          %s271 = scalar_select %p270, %s269, 7
        $region36: #{netf_forward.7} parent=23 // pred_fallthru
          _
      $region24: #{netf_forward.7} parent=5 // pred_fallthru
        _
      %p272 = scmp.le.s32.totalorder 1, %s14
      %p273 = scmp.lt.s32.totalorder %s14, 3
      %p274 = pnand %p272, %p273
      %p275 = pneg %p274
      // Predicated region
      $region37: #{netf_forward.7} parent=5 // pred_check
        _
      $region38: #{netf_forward.7} parent=5 // pred_check_branch
        %277 = sbr.rel (%p274) target = $region40
      $region39: #{netf_forward.7} parent=5 // pred_region
        %s278 = ssub.s32 %s14, 1
        %s279 = smul.u32 %s24, 8
        %s280 = ssub.s32 %s279, 1
        %p281 = scmp.gt.s32.totalorder %s280, 0
        %s282 = scalar_select %p281, %s280, 0
        %p283 = scmp.lt.s32.totalorder %s23, 1
        %s284 = scalar_select %p283, %s23, 1
        %p285 = scmp.lt.s32.totalorder %s282, 7
        %s286 = scalar_select %p285, %s282, 7
        %s287 = smul.addr %s284, 8
        %s288 = sadd.s32 %s286, %s287
        %s289 = smul.addr %s288, 4
        %s290 = scalar_lea.vmem %s0, %s289
        %p291 = pneg %p62
        %p292 = pneg %p59
        %s293 = smul.u32 8, %s24
        %p294 = scmp.lt.s32.totalorder %s23, 1
        %s295 = scalar_select %p294, %s23, 1
        %p296 = scmp.lt.s32.totalorder %s293, 7
        %s297 = scalar_select %p296, %s293, 7
        %s298 = smul.addr %s295, 8
        %s299 = sadd.s32 %s297, %s298
        %s300 = smul.addr %s299, 4
        %s301 = scalar_lea.vmem %s1, %s300
        %p302 = pneg %p90
        %p303 = pneg %p87
        %s304 = smul.u32 %s24, 8
        %s305 = sadd.s32 %s304, 8
        %p306 = scmp.lt.s32.totalorder %s305, 7
        %s307 = scalar_select %p306, %s305, 7
        %p308 = scmp.lt.s32.totalorder %s23, 1
        %s309 = scalar_select %p308, %s23, 1
        %p310 = scmp.lt.s32.totalorder %s307, 7
        %s311 = scalar_select %p310, %s307, 7
        %s312 = smul.addr %s309, 8
        %s313 = sadd.s32 %s311, %s312
        %s314 = smul.addr %s313, 4
        %s315 = scalar_lea.vmem %s2, %s314
        %p316 = pneg %p126
        %p317 = pneg %p123
        %p318 = pneg %p147
        %p319 = pneg %p144
        %p320 = pneg %p168
        %p321 = pneg %p165
        %p322 = pneg %p196
        %p323 = pneg %p193
        %s324 = sand.u32 %s183, 1
        %s325 = scalar_lea.sflag [#allocation3], %s324
        %s326 = sand.u32 %s183, 1
        %s327 = smul.addr %s326, 64
        %s328 = scalar_lea.vmem [#allocation2], %s327
        %s329 = smul.u32 %s24, 8
        %s330 = ssub.s32 %s329, 1
        %p331 = scmp.gt.s32.totalorder %s330, 0
        %s332 = scalar_select %p331, %s330, 0
        %p333 = scmp.lt.s32.totalorder %s23, 1
        %s334 = scalar_select %p333, %s23, 1
        %p335 = scmp.lt.s32.totalorder %s332, 7
        %s336 = scalar_select %p335, %s332, 7
        %s337 = smul.addr %s334, 8
        %s338 = sadd.s32 %s336, %s337
        %s339 = smul.addr %s338, 4
        %s340 = scalar_lea.vmem %s0, %s339
        %s341 = smul.u32 %s24, 8
        %s342 = ssub.s32 %s341, 1
        %p343 = scmp.gt.s32.totalorder %s342, 0
        %s344 = scalar_select %p343, %s342, 0
        %s345 = smul.u32 8, %s24
        %p346 = scmp.lt.s32.totalorder %s23, 1
        %s347 = scalar_select %p346, %s23, 1
        %p348 = scmp.lt.s32.totalorder %s345, 7
        %s349 = scalar_select %p348, %s345, 7
        %s350 = smul.addr %s347, 8
        %s351 = sadd.s32 %s349, %s350
        %s352 = smul.addr %s351, 4
        %s353 = scalar_lea.vmem %s1, %s352
        %s354 = smul.u32 8, %s24
        %s355 = smul.u32 %s24, 8
        %s356 = sadd.s32 %s355, 8
        %p357 = scmp.lt.s32.totalorder %s356, 7
        %s358 = scalar_select %p357, %s356, 7
        %p359 = scmp.lt.s32.totalorder %s23, 1
        %s360 = scalar_select %p359, %s23, 1
        %p361 = scmp.lt.s32.totalorder %s358, 7
        %s362 = scalar_select %p361, %s358, 7
        %s363 = smul.addr %s360, 8
        %s364 = sadd.s32 %s362, %s363
        %s365 = smul.addr %s364, 4
        %s366 = scalar_lea.vmem %s2, %s365
        %s367 = smul.u32 %s24, 8
        %s368 = sadd.s32 %s367, 8
        %p369 = scmp.lt.s32.totalorder %s368, 7
        %s370 = scalar_select %p369, %s368, 7
        %s371 = smul.u32 8, %s24
        %v373 = vld [vmem:[%s340] sm:$0xf]
        %v374 = vld [vmem:[%s353] sm:$0xf]
        %v375 = vld [vmem:[%s353 + $0x4] sm:$0xf]
        %v376 = vld [vmem:[%s353 + $0x8] sm:$0xf]
        %v377 = vld [vmem:[%s353 + $0xc] sm:$0xf]
        %v378 = vld [vmem:[%s353 + $0x10] sm:$0xf]
        %v379 = vld [vmem:[%s353 + $0x14] sm:$0xf]
        %v380 = vld [vmem:[%s353 + $0x18] sm:$0xf]
        %v381 = vld [vmem:[%s353 + $0x1c] sm:$0xf]
        %v382 = vld [vmem:[%s366] sm:$0xf]
        %p383 = scmp.gt.s32.totalorder %s24, 0
        %s384 = scalar_select %p383, 1, 0
        %s385 = scvt.s32.f32 %s384
        %p387 = scmp.ne.f32.partialorder %s385, %s385
        %s388 = sshrl.u32 %s385, 16
        %s389 = sand.u32 %s388, 1
        %s390 = sadd.s32 32767, %s389
        %s391 = sadd.s32 %s385, %s390
        %s392 = sand.u32 %s391, 4294901760
        %s393 = scalar_select %p387, 2143289344, %s392
        %s395 = sshrl.u32 %s393, 16
        %s396 = sshll.u32 %s395, 16
        %s397 = sor.u32 %s395, %s396
        %v398 = vstv %s397
        %v400 = vunpack.c.l.bf16 %v373
        %v401 = vunpack.c.l.bf16 %v398
        %v402 = vmul.f32 %v400, %v401
        %v403 = vpack.c.bf16 %v402, %v402
        %p404 = scmp.lt.s32.totalorder %s24, 0
        %s405 = scalar_select %p404, 1, 0
        %s406 = scvt.s32.f32 %s405
        %p408 = scmp.ne.f32.partialorder %s406, %s406
        %s409 = sshrl.u32 %s406, 16
        %s410 = sand.u32 %s409, 1
        %s411 = sadd.s32 32767, %s410
        %s412 = sadd.s32 %s406, %s411
        %s413 = sand.u32 %s412, 4294901760
        %s414 = scalar_select %p408, 2143289344, %s413
        %s416 = sshrl.u32 %s414, 16
        %s417 = sshll.u32 %s416, 16
        %s418 = sor.u32 %s416, %s417
        %v419 = vstv %s418
        %v421 = vunpack.c.l.bf16 %v382
        %v422 = vunpack.c.l.bf16 %v419
        %v423 = vmul.f32 %v421, %v422
        %v424 = vpack.c.bf16 %v423, %v423
        %v435 = vunpack.c.l.b16 %v403
        %v436 = vunpack.c.l.b16 %v374
        %v437 = vunpack.c.l.b16 %v375
        %v438 = vunpack.c.l.b16 %v376
        %v439 = vunpack.c.l.b16 %v377
        %v440 = vunpack.c.l.b16 %v378
        %v441 = vunpack.c.l.b16 %v379
        %v442 = vunpack.c.l.b16 %v380
        %v443 = vunpack.c.l.b16 %v381
        %v444 = vunpack.c.l.b16 %v424
        %v445 = vpack.c.b16 %v435, %v435
        %v446 = vpack.c.b16 %v436, %v436
        %v447 = vpack.c.b16 %v437, %v437
        %v448 = vpack.c.b16 %v438, %v438
        %v449 = vpack.c.b16 %v439, %v439
        %v450 = vpack.c.b16 %v440, %v440
        %v451 = vpack.c.b16 %v441, %v441
        %v452 = vpack.c.b16 %v442, %v442
        %v453 = vpack.c.b16 %v443, %v443
        %v454 = vpack.c.b16 %v444, %v444
        %v456 = vshrl.u32 %v445, 16
        %v458 = vrot.slane %v456, 7
        %v459 = vshll.u32 %v445, 16
        %v461 = vor.u32 %v458, %v459
        %v463 = vshrl.u32 %v446, 16
        %v465 = vrot.slane %v463, 7
        %v466 = vshll.u32 %v446, 16
        %v468 = vor.u32 %v465, %v466
        %v470 = vshrl.u32 %v447, 16
        %v472 = vrot.slane %v470, 7
        %v473 = vshll.u32 %v447, 16
        %v475 = vor.u32 %v472, %v473
        %v477 = vshrl.u32 %v448, 16
        %v479 = vrot.slane %v477, 7
        %v480 = vshll.u32 %v448, 16
        %v482 = vor.u32 %v479, %v480
        %v484 = vshrl.u32 %v449, 16
        %v486 = vrot.slane %v484, 7
        %v487 = vshll.u32 %v449, 16
        %v489 = vor.u32 %v486, %v487
        %v491 = vshrl.u32 %v450, 16
        %v493 = vrot.slane %v491, 7
        %v494 = vshll.u32 %v450, 16
        %v496 = vor.u32 %v493, %v494
        %v498 = vshrl.u32 %v451, 16
        %v500 = vrot.slane %v498, 7
        %v501 = vshll.u32 %v451, 16
        %v503 = vor.u32 %v500, %v501
        %v505 = vshrl.u32 %v452, 16
        %v507 = vrot.slane %v505, 7
        %v508 = vshll.u32 %v452, 16
        %v510 = vor.u32 %v507, %v508
        %v512 = vshrl.u32 %v453, 16
        %v514 = vrot.slane %v512, 7
        %v515 = vshll.u32 %v453, 16
        %v517 = vor.u32 %v514, %v515
        %v519 = vshrl.u32 %v454, 16
        %v521 = vrot.slane %v519, 7
        %v522 = vshll.u32 %v454, 16
        %v524 = vor.u32 %v521, %v522
        %vm535 = vcmask 1040384
        %vm536 = vsmask.f32 256
        %vm537 = vmand %vm535, %vm536
        %v538 = vsel %vm537, 0, %v461
        %v539 = vsel %vm537, 0, %v468
        %v540 = vsel %vm537, 0, %v475
        %v541 = vsel %vm537, 0, %v482
        %v542 = vsel %vm537, 0, %v489
        %v543 = vsel %vm537, 0, %v496
        %v544 = vsel %vm537, 0, %v503
        %v545 = vsel %vm537, 0, %v510
        %v546 = vsel %vm537, 0, %v517
        %v547 = vsel %vm537, 0, %v524
        %v548 = vrot.slane %v459, 1
        %v549 = vor.u32 %v456, %v548
        %v550 = vrot.slane %v466, 1
        %v551 = vor.u32 %v463, %v550
        %v552 = vrot.slane %v473, 1
        %v553 = vor.u32 %v470, %v552
        %v554 = vrot.slane %v480, 1
        %v555 = vor.u32 %v477, %v554
        %v556 = vrot.slane %v487, 1
        %v557 = vor.u32 %v484, %v556
        %v558 = vrot.slane %v494, 1
        %v559 = vor.u32 %v491, %v558
        %v560 = vrot.slane %v501, 1
        %v561 = vor.u32 %v498, %v560
        %v562 = vrot.slane %v508, 1
        %v563 = vor.u32 %v505, %v562
        %v564 = vrot.slane %v515, 1
        %v565 = vor.u32 %v512, %v564
        %v566 = vrot.slane %v522, 1
        %v567 = vor.u32 %v519, %v566
        %vm578 = vcmask 1043456
        %vm579 = vsmask.f32 3328
        %vm580 = vmand %vm578, %vm579
        %v581 = vsel %vm580, %v549, 0
        %v582 = vsel %vm580, %v551, 0
        %v583 = vsel %vm580, %v553, 0
        %v584 = vsel %vm580, %v555, 0
        %v585 = vsel %vm580, %v557, 0
        %v586 = vsel %vm580, %v559, 0
        %v587 = vsel %vm580, %v561, 0
        %v588 = vsel %vm580, %v563, 0
        %v589 = vsel %vm580, %v565, 0
        %v590 = vsel %vm580, %v567, 0
        %v607 = vunpack.c.l.b16 %v538
        %v608 = vunpack.c.l.b16 %v581
        %v609 = vunpack.c.l.b16 %v539
        %v610 = vunpack.c.l.b16 %v582
        %v611 = vunpack.c.l.b16 %v540
        %v612 = vunpack.c.l.b16 %v583
        %v613 = vunpack.c.l.b16 %v541
        %v614 = vunpack.c.l.b16 %v584
        %v615 = vunpack.c.l.b16 %v542
        %v616 = vunpack.c.l.b16 %v585
        %v617 = vunpack.c.l.b16 %v543
        %v618 = vunpack.c.l.b16 %v586
        %v619 = vunpack.c.l.b16 %v544
        %v620 = vunpack.c.l.b16 %v587
        %v621 = vunpack.c.l.b16 %v545
        %v622 = vunpack.c.l.b16 %v588
        %v623 = vld [vmem:[%s3] sm:$0xf]
        %v624 = vld [vmem:[%s3 + $0x4] sm:$0xf]
        %v625 = vld [vmem:[%s3 + $0x8] sm:$0xf]
        %v626 = vld [vmem:[%s3 + $0xc] sm:$0xf]
        %v627 = vld [vmem:[%s3 + $0x10] sm:$0xf]
        %v628 = vld [vmem:[%s3 + $0x14] sm:$0xf]
        %v629 = vld [vmem:[%s3 + $0x18] sm:$0xf]
        %v630 = vld [vmem:[%s3 + $0x1c] sm:$0xf]
        %v631 = vld [vmem:[%s3 + $0x20] sm:$0xf]
        %v632 = vld [vmem:[%s3 + $0x24] sm:$0xf]
        %v633 = vld [vmem:[%s3 + $0x28] sm:$0xf]
        %v634 = vld [vmem:[%s3 + $0x2c] sm:$0xf]
        %v635 = vld [vmem:[%s3 + $0x30] sm:$0xf]
        %v636 = vld [vmem:[%s3 + $0x34] sm:$0xf]
        %v637 = vld [vmem:[%s3 + $0x38] sm:$0xf]
        %v638 = vld [vmem:[%s3 + $0x3c] sm:$0xf]
        %v639 = vld [vmem:[%s3 + $0x40] sm:$0xf]
        %v640 = vld [vmem:[%s3 + $0x44] sm:$0xf]
        %v641 = vld [vmem:[%s3 + $0x48] sm:$0xf]
        %v642 = vld [vmem:[%s3 + $0x4c] sm:$0xf]
        %v643 = vld [vmem:[%s3 + $0x50] sm:$0xf]
        %v644 = vld [vmem:[%s3 + $0x54] sm:$0xf]
        %v645 = vld [vmem:[%s3 + $0x58] sm:$0xf]
        %v646 = vld [vmem:[%s3 + $0x5c] sm:$0xf]
        %v647 = vld [vmem:[%s3 + $0x60] sm:$0xf]
        %v648 = vld [vmem:[%s3 + $0x64] sm:$0xf]
        %v649 = vld [vmem:[%s3 + $0x68] sm:$0xf]
        %v650 = vld [vmem:[%s3 + $0x6c] sm:$0xf]
        %v651 = vld [vmem:[%s3 + $0x70] sm:$0xf]
        %v652 = vld [vmem:[%s3 + $0x74] sm:$0xf]
        %v653 = vld [vmem:[%s3 + $0x78] sm:$0xf]
        %v654 = vld [vmem:[%s3 + $0x7c] sm:$0xf]
        %v655 = vld [vmem:[%s3 + $0x80] sm:$0xf]
        %v656 = vld [vmem:[%s3 + $0x84] sm:$0xf]
        %v657 = vld [vmem:[%s3 + $0x88] sm:$0xf]
        %v658 = vld [vmem:[%s3 + $0x8c] sm:$0xf]
        %v659 = vld [vmem:[%s3 + $0x90] sm:$0xf]
        %v660 = vld [vmem:[%s3 + $0x94] sm:$0xf]
        %v661 = vld [vmem:[%s3 + $0x98] sm:$0xf]
        %v662 = vld [vmem:[%s3 + $0x9c] sm:$0xf]
        %v663 = vld [vmem:[%s3 + $0xa0] sm:$0xf]
        %v664 = vld [vmem:[%s3 + $0xa4] sm:$0xf]
        %v665 = vld [vmem:[%s3 + $0xa8] sm:$0xf]
        %v666 = vld [vmem:[%s3 + $0xac] sm:$0xf]
        %v667 = vld [vmem:[%s3 + $0xb0] sm:$0xf]
        %v668 = vld [vmem:[%s3 + $0xb4] sm:$0xf]
        %v669 = vld [vmem:[%s3 + $0xb8] sm:$0xf]
        %v670 = vld [vmem:[%s3 + $0xbc] sm:$0xf]
        %v673 = vunpack.c.l.b16 %v546
        %v674 = vunpack.c.l.b16 %v589
        %s675 = scalar_lea.vmem %s3, 192
        %v676 = vld [vmem:[%s675] sm:$0xf]
        %v677 = vld [vmem:[%s675 + $0x4] sm:$0xf]
        %v678 = vld [vmem:[%s675 + $0x8] sm:$0xf]
        %v679 = vld [vmem:[%s675 + $0xc] sm:$0xf]
        %v680 = vld [vmem:[%s675 + $0x10] sm:$0xf]
        %v681 = vld [vmem:[%s675 + $0x14] sm:$0xf]
        %v682 = vld [vmem:[%s675 + $0x18] sm:$0xf]
        %v683 = vld [vmem:[%s675 + $0x1c] sm:$0xf]
        %v684 = vld [vmem:[%s675 + $0x20] sm:$0xf]
        %v685 = vld [vmem:[%s675 + $0x24] sm:$0xf]
        %v686 = vld [vmem:[%s675 + $0x28] sm:$0xf]
        %v687 = vld [vmem:[%s675 + $0x2c] sm:$0xf]
        %v688 = vld [vmem:[%s675 + $0x30] sm:$0xf]
        %v689 = vld [vmem:[%s675 + $0x34] sm:$0xf]
        %v690 = vld [vmem:[%s675 + $0x38] sm:$0xf]
        %v691 = vld [vmem:[%s675 + $0x3c] sm:$0xf]
        %v692 = vld [vmem:[%s675 + $0x40] sm:$0xf]
        %v693 = vld [vmem:[%s675 + $0x44] sm:$0xf]
        %v694 = vld [vmem:[%s675 + $0x48] sm:$0xf]
        %v695 = vld [vmem:[%s675 + $0x4c] sm:$0xf]
        %v696 = vld [vmem:[%s675 + $0x50] sm:$0xf]
        %v697 = vld [vmem:[%s675 + $0x54] sm:$0xf]
        %v698 = vld [vmem:[%s675 + $0x58] sm:$0xf]
        %v699 = vld [vmem:[%s675 + $0x5c] sm:$0xf]
        %v700 = vld [vmem:[%s675 + $0x60] sm:$0xf]
        %v701 = vld [vmem:[%s675 + $0x64] sm:$0xf]
        %v702 = vld [vmem:[%s675 + $0x68] sm:$0xf]
        %v703 = vld [vmem:[%s675 + $0x6c] sm:$0xf]
        %v704 = vld [vmem:[%s675 + $0x70] sm:$0xf]
        %v705 = vld [vmem:[%s675 + $0x74] sm:$0xf]
        %v706 = vld [vmem:[%s675 + $0x78] sm:$0xf]
        %v707 = vld [vmem:[%s675 + $0x7c] sm:$0xf]
        %v708 = vld [vmem:[%s675 + $0x80] sm:$0xf]
        %v709 = vld [vmem:[%s675 + $0x84] sm:$0xf]
        %v710 = vld [vmem:[%s675 + $0x88] sm:$0xf]
        %v711 = vld [vmem:[%s675 + $0x8c] sm:$0xf]
        %v712 = vld [vmem:[%s675 + $0x90] sm:$0xf]
        %v713 = vld [vmem:[%s675 + $0x94] sm:$0xf]
        %v714 = vld [vmem:[%s675 + $0x98] sm:$0xf]
        %v715 = vld [vmem:[%s675 + $0x9c] sm:$0xf]
        %v716 = vld [vmem:[%s675 + $0xa0] sm:$0xf]
        %v717 = vld [vmem:[%s675 + $0xa4] sm:$0xf]
        %v718 = vld [vmem:[%s675 + $0xa8] sm:$0xf]
        %v719 = vld [vmem:[%s675 + $0xac] sm:$0xf]
        %v720 = vld [vmem:[%s675 + $0xb0] sm:$0xf]
        %v721 = vld [vmem:[%s675 + $0xb4] sm:$0xf]
        %v722 = vld [vmem:[%s675 + $0xb8] sm:$0xf]
        %v723 = vld [vmem:[%s675 + $0xbc] sm:$0xf]
        %v724 = vpack.c.b16 %v611, %v609
        %v725 = vpack.c.b16 %v437, %v436
        %v726 = vpack.c.b16 %v612, %v610
        %v727 = vpack.c.b16 %v615, %v613
        %v728 = vpack.c.b16 %v439, %v438
        %v729 = vpack.c.b16 %v616, %v614
        %v730 = vpack.c.b16 %v619, %v617
        %v731 = vpack.c.b16 %v441, %v440
        %v732 = vpack.c.b16 %v620, %v618
        %v733 = vpack.c.b16 %v673, %v621
        %v734 = vpack.c.b16 %v443, %v442
        %v735 = vpack.c.b16 %v674, %v622
        %v796 = vunpack.c.l.b16 %v676
        %v797 = vunpack.c.l.b16 %v677
        %v798 = vunpack.c.l.b16 %v678
        %v799 = vunpack.c.l.b16 %v679
        %v800 = vunpack.c.l.b16 %v680
        %v801 = vunpack.c.l.b16 %v681
        %v802 = vunpack.c.l.b16 %v682
        %v803 = vunpack.c.l.b16 %v683
        %v804 = vunpack.c.l.b16 %v684
        %v805 = vunpack.c.l.b16 %v685
        %v806 = vunpack.c.l.b16 %v686
        %v807 = vunpack.c.l.b16 %v687
        %v808 = vunpack.c.l.b16 %v688
        %v809 = vunpack.c.l.b16 %v689
        %v810 = vunpack.c.l.b16 %v690
        %v811 = vunpack.c.l.b16 %v691
        %v812 = vunpack.c.l.b16 %v692
        %v813 = vunpack.c.l.b16 %v693
        %v814 = vunpack.c.l.b16 %v694
        %v815 = vunpack.c.l.b16 %v695
        %v816 = vunpack.c.l.b16 %v696
        %v817 = vunpack.c.l.b16 %v697
        %v818 = vunpack.c.l.b16 %v698
        %v819 = vunpack.c.l.b16 %v699
        %v820 = vunpack.c.l.b16 %v700
        %v821 = vunpack.c.l.b16 %v701
        %v822 = vunpack.c.l.b16 %v702
        %v823 = vunpack.c.l.b16 %v703
        %v824 = vunpack.c.l.b16 %v704
        %v825 = vunpack.c.l.b16 %v705
        %v826 = vunpack.c.l.b16 %v706
        %v827 = vunpack.c.l.b16 %v707
        %v828 = vunpack.c.l.b16 %v708
        %v829 = vunpack.c.l.b16 %v709
        %v830 = vunpack.c.l.b16 %v710
        %v831 = vunpack.c.l.b16 %v711
        %v832 = vunpack.c.l.b16 %v712
        %v833 = vunpack.c.l.b16 %v713
        %v834 = vunpack.c.l.b16 %v714
        %v835 = vunpack.c.l.b16 %v715
        %v836 = vunpack.c.l.b16 %v716
        %v837 = vunpack.c.l.b16 %v717
        %v838 = vunpack.c.l.b16 %v718
        %v839 = vunpack.c.l.b16 %v719
        %v840 = vunpack.c.l.b16 %v720
        %v841 = vunpack.c.l.b16 %v721
        %v842 = vunpack.c.l.b16 %v722
        %v843 = vunpack.c.l.b16 %v723
        %v844 = vpack.c.b16 %v797, %v796
        %v845 = vpack.c.b16 %v799, %v798
        %v846 = vpack.c.b16 %v801, %v800
        %v847 = vpack.c.b16 %v803, %v802
        %v848 = vpack.c.b16 %v805, %v804
        %v849 = vpack.c.b16 %v807, %v806
        %v850 = vpack.c.b16 %v809, %v808
        %v851 = vpack.c.b16 %v811, %v810
        %v852 = vpack.c.b16 %v813, %v812
        %v853 = vpack.c.b16 %v815, %v814
        %v854 = vpack.c.b16 %v817, %v816
        %v855 = vpack.c.b16 %v819, %v818
        %v856 = vpack.c.b16 %v821, %v820
        %v857 = vpack.c.b16 %v823, %v822
        %v858 = vpack.c.b16 %v825, %v824
        %v859 = vpack.c.b16 %v827, %v826
        %v860 = vpack.c.b16 %v829, %v828
        %v861 = vpack.c.b16 %v831, %v830
        %v862 = vpack.c.b16 %v833, %v832
        %v863 = vpack.c.b16 %v835, %v834
        %v864 = vpack.c.b16 %v837, %v836
        %v865 = vpack.c.b16 %v839, %v838
        %v866 = vpack.c.b16 %v841, %v840
        %v867 = vpack.c.b16 %v843, %v842
        %892 = vmatpush.bf16.msra.mxu0 %v851
        %893 = vmatpush.bf16.msra.mxu0 %v850
        %894 = vmatpush.bf16.msra.mxu0 %v849
        %895 = vmatpush.bf16.msra.mxu0 %v848
        %896 = vmatpush.bf16.msra.mxu0 %v847
        %897 = vmatpush.bf16.msra.mxu0 %v846
        %898 = vmatpush.bf16.msra.mxu0 %v845
        %899 = vmatpush.bf16.msra.mxu0 %v844
        %900 = vmatmul.bf16.gmra.mxu0 %v724
        %v901 = vpop.f32.mrf.mxu0
        %v902 = vadd.f32 0.0, %v901
        %v903 = vpop.f32.mrf.mxu0
        %v904 = vadd.f32 0.0, %v903
        %905 = vmatmul.bf16.gmra.mxu0 %v727
        %v906 = vpop.f32.mrf.mxu0
        %v907 = vadd.f32 0.0, %v906
        %v908 = vpop.f32.mrf.mxu0
        %v909 = vadd.f32 0.0, %v908
        %910 = vmatmul.bf16.gmra.mxu0 %v730
        %v911 = vpop.f32.mrf.mxu0
        %v912 = vadd.f32 0.0, %v911
        %v913 = vpop.f32.mrf.mxu0
        %v914 = vadd.f32 0.0, %v913
        %915 = vmatmul.bf16.gmra.mxu0 %v733
        %v916 = vpop.f32.mrf.mxu0
        %v917 = vadd.f32 0.0, %v916
        %v918 = vpop.f32.mrf.mxu0
        %v919 = vadd.f32 0.0, %v918
        %920 = vdwg.mxu0
        %921 = vmatpush.bf16.msra.mxu0 %v859
        %922 = vmatpush.bf16.msra.mxu0 %v858
        %923 = vmatpush.bf16.msra.mxu0 %v857
        %924 = vmatpush.bf16.msra.mxu0 %v856
        %925 = vmatpush.bf16.msra.mxu0 %v855
        %926 = vmatpush.bf16.msra.mxu0 %v854
        %927 = vmatpush.bf16.msra.mxu0 %v853
        %928 = vmatpush.bf16.msra.mxu0 %v852
        %929 = vmatmul.bf16.gmra.mxu0 %v725
        %v930 = vpop.f32.mrf.mxu0
        %v931 = vadd.f32 %v902, %v930
        %v932 = vpop.f32.mrf.mxu0
        %v933 = vadd.f32 %v904, %v932
        %934 = vmatmul.bf16.gmra.mxu0 %v728
        %v935 = vpop.f32.mrf.mxu0
        %v936 = vadd.f32 %v907, %v935
        %v937 = vpop.f32.mrf.mxu0
        %v938 = vadd.f32 %v909, %v937
        %939 = vmatmul.bf16.gmra.mxu0 %v731
        %v940 = vpop.f32.mrf.mxu0
        %v941 = vadd.f32 %v912, %v940
        %v942 = vpop.f32.mrf.mxu0
        %v943 = vadd.f32 %v914, %v942
        %944 = vmatmul.bf16.gmra.mxu0 %v734
        %v945 = vpop.f32.mrf.mxu0
        %v946 = vadd.f32 %v917, %v945
        %v947 = vpop.f32.mrf.mxu0
        %v948 = vadd.f32 %v919, %v947
        %949 = vdwg.mxu0
        %950 = vmatpush.bf16.msra.mxu0 %v867
        %951 = vmatpush.bf16.msra.mxu0 %v866
        %952 = vmatpush.bf16.msra.mxu0 %v865
        %953 = vmatpush.bf16.msra.mxu0 %v864
        %954 = vmatpush.bf16.msra.mxu0 %v863
        %955 = vmatpush.bf16.msra.mxu0 %v862
        %956 = vmatpush.bf16.msra.mxu0 %v861
        %957 = vmatpush.bf16.msra.mxu0 %v860
        %958 = vmatmul.bf16.gmra.mxu0 %v726
        %v959 = vpop.f32.mrf.mxu0
        %v960 = vadd.f32 %v931, %v959
        %v961 = vpop.f32.mrf.mxu0
        %v962 = vadd.f32 %v933, %v961
        %963 = vmatmul.bf16.gmra.mxu0 %v729
        %v964 = vpop.f32.mrf.mxu0
        %v965 = vadd.f32 %v936, %v964
        %v966 = vpop.f32.mrf.mxu0
        %v967 = vadd.f32 %v938, %v966
        %968 = vmatmul.bf16.gmra.mxu0 %v732
        %v969 = vpop.f32.mrf.mxu0
        %v970 = vadd.f32 %v941, %v969
        %v971 = vpop.f32.mrf.mxu0
        %v972 = vadd.f32 %v943, %v971
        %973 = vmatmul.bf16.gmra.mxu0 %v735
        %v974 = vpop.f32.mrf.mxu0
        %v975 = vadd.f32 %v946, %v974
        %v976 = vpop.f32.mrf.mxu0
        %v977 = vadd.f32 %v948, %v976
        %978 = vdwg.mxu0
        %v979 = vpack.c.b16 %v609, %v607
        %v980 = vpack.c.b16 %v436, %v435
        %v981 = vpack.c.b16 %v610, %v608
        %v982 = vpack.c.b16 %v613, %v611
        %v983 = vpack.c.b16 %v438, %v437
        %v984 = vpack.c.b16 %v614, %v612
        %v985 = vpack.c.b16 %v617, %v615
        %v986 = vpack.c.b16 %v440, %v439
        %v987 = vpack.c.b16 %v618, %v616
        %v988 = vpack.c.b16 %v621, %v619
        %v989 = vpack.c.b16 %v442, %v441
        %v990 = vpack.c.b16 %v622, %v620
        %v1051 = vunpack.c.l.b16 %v623
        %v1052 = vunpack.c.l.b16 %v624
        %v1053 = vunpack.c.l.b16 %v625
        %v1054 = vunpack.c.l.b16 %v626
        %v1055 = vunpack.c.l.b16 %v627
        %v1056 = vunpack.c.l.b16 %v628
        %v1057 = vunpack.c.l.b16 %v629
        %v1058 = vunpack.c.l.b16 %v630
        %v1059 = vunpack.c.l.b16 %v631
        %v1060 = vunpack.c.l.b16 %v632
        %v1061 = vunpack.c.l.b16 %v633
        %v1062 = vunpack.c.l.b16 %v634
        %v1063 = vunpack.c.l.b16 %v635
        %v1064 = vunpack.c.l.b16 %v636
        %v1065 = vunpack.c.l.b16 %v637
        %v1066 = vunpack.c.l.b16 %v638
        %v1067 = vunpack.c.l.b16 %v639
        %v1068 = vunpack.c.l.b16 %v640
        %v1069 = vunpack.c.l.b16 %v641
        %v1070 = vunpack.c.l.b16 %v642
        %v1071 = vunpack.c.l.b16 %v643
        %v1072 = vunpack.c.l.b16 %v644
        %v1073 = vunpack.c.l.b16 %v645
        %v1074 = vunpack.c.l.b16 %v646
        %v1075 = vunpack.c.l.b16 %v647
        %v1076 = vunpack.c.l.b16 %v648
        %v1077 = vunpack.c.l.b16 %v649
        %v1078 = vunpack.c.l.b16 %v650
        %v1079 = vunpack.c.l.b16 %v651
        %v1080 = vunpack.c.l.b16 %v652
        %v1081 = vunpack.c.l.b16 %v653
        %v1082 = vunpack.c.l.b16 %v654
        %v1083 = vunpack.c.l.b16 %v655
        %v1084 = vunpack.c.l.b16 %v656
        %v1085 = vunpack.c.l.b16 %v657
        %v1086 = vunpack.c.l.b16 %v658
        %v1087 = vunpack.c.l.b16 %v659
        %v1088 = vunpack.c.l.b16 %v660
        %v1089 = vunpack.c.l.b16 %v661
        %v1090 = vunpack.c.l.b16 %v662
        %v1091 = vunpack.c.l.b16 %v663
        %v1092 = vunpack.c.l.b16 %v664
        %v1093 = vunpack.c.l.b16 %v665
        %v1094 = vunpack.c.l.b16 %v666
        %v1095 = vunpack.c.l.b16 %v667
        %v1096 = vunpack.c.l.b16 %v668
        %v1097 = vunpack.c.l.b16 %v669
        %v1098 = vunpack.c.l.b16 %v670
        %v1099 = vpack.c.b16 %v1052, %v1051
        %v1100 = vpack.c.b16 %v1054, %v1053
        %v1101 = vpack.c.b16 %v1056, %v1055
        %v1102 = vpack.c.b16 %v1058, %v1057
        %v1103 = vpack.c.b16 %v1060, %v1059
        %v1104 = vpack.c.b16 %v1062, %v1061
        %v1105 = vpack.c.b16 %v1064, %v1063
        %v1106 = vpack.c.b16 %v1066, %v1065
        %v1107 = vpack.c.b16 %v1068, %v1067
        %v1108 = vpack.c.b16 %v1070, %v1069
        %v1109 = vpack.c.b16 %v1072, %v1071
        %v1110 = vpack.c.b16 %v1074, %v1073
        %v1111 = vpack.c.b16 %v1076, %v1075
        %v1112 = vpack.c.b16 %v1078, %v1077
        %v1113 = vpack.c.b16 %v1080, %v1079
        %v1114 = vpack.c.b16 %v1082, %v1081
        %v1115 = vpack.c.b16 %v1084, %v1083
        %v1116 = vpack.c.b16 %v1086, %v1085
        %v1117 = vpack.c.b16 %v1088, %v1087
        %v1118 = vpack.c.b16 %v1090, %v1089
        %v1119 = vpack.c.b16 %v1092, %v1091
        %v1120 = vpack.c.b16 %v1094, %v1093
        %v1121 = vpack.c.b16 %v1096, %v1095
        %v1122 = vpack.c.b16 %v1098, %v1097
        %1147 = vmatpush.bf16.msra.mxu0 %v1106
        %1148 = vmatpush.bf16.msra.mxu0 %v1105
        %1149 = vmatpush.bf16.msra.mxu0 %v1104
        %1150 = vmatpush.bf16.msra.mxu0 %v1103
        %1151 = vmatpush.bf16.msra.mxu0 %v1102
        %1152 = vmatpush.bf16.msra.mxu0 %v1101
        %1153 = vmatpush.bf16.msra.mxu0 %v1100
        %1154 = vmatpush.bf16.msra.mxu0 %v1099
        %1155 = vmatmul.bf16.gmra.mxu0 %v979
        %v1156 = vpop.f32.mrf.mxu0
        %v1157 = vadd.f32 %v960, %v1156
        %v1158 = vpop.f32.mrf.mxu0
        %v1159 = vadd.f32 %v962, %v1158
        %1160 = vmatmul.bf16.gmra.mxu0 %v982
        %v1161 = vpop.f32.mrf.mxu0
        %v1162 = vadd.f32 %v965, %v1161
        %v1163 = vpop.f32.mrf.mxu0
        %v1164 = vadd.f32 %v967, %v1163
        %1165 = vmatmul.bf16.gmra.mxu0 %v985
        %v1166 = vpop.f32.mrf.mxu0
        %v1167 = vadd.f32 %v970, %v1166
        %v1168 = vpop.f32.mrf.mxu0
        %v1169 = vadd.f32 %v972, %v1168
        %1170 = vmatmul.bf16.gmra.mxu0 %v988
        %v1171 = vpop.f32.mrf.mxu0
        %v1172 = vadd.f32 %v975, %v1171
        %v1173 = vpop.f32.mrf.mxu0
        %v1174 = vadd.f32 %v977, %v1173
        %1175 = vdwg.mxu0
        %1176 = vmatpush.bf16.msra.mxu0 %v1114
        %1177 = vmatpush.bf16.msra.mxu0 %v1113
        %1178 = vmatpush.bf16.msra.mxu0 %v1112
        %1179 = vmatpush.bf16.msra.mxu0 %v1111
        %1180 = vmatpush.bf16.msra.mxu0 %v1110
        %1181 = vmatpush.bf16.msra.mxu0 %v1109
        %1182 = vmatpush.bf16.msra.mxu0 %v1108
        %1183 = vmatpush.bf16.msra.mxu0 %v1107
        %1184 = vmatmul.bf16.gmra.mxu0 %v980
        %v1185 = vpop.f32.mrf.mxu0
        %v1186 = vadd.f32 %v1157, %v1185
        %v1187 = vpop.f32.mrf.mxu0
        %v1188 = vadd.f32 %v1159, %v1187
        %1189 = vmatmul.bf16.gmra.mxu0 %v983
        %v1190 = vpop.f32.mrf.mxu0
        %v1191 = vadd.f32 %v1162, %v1190
        %v1192 = vpop.f32.mrf.mxu0
        %v1193 = vadd.f32 %v1164, %v1192
        %1194 = vmatmul.bf16.gmra.mxu0 %v986
        %v1195 = vpop.f32.mrf.mxu0
        %v1196 = vadd.f32 %v1167, %v1195
        %v1197 = vpop.f32.mrf.mxu0
        %v1198 = vadd.f32 %v1169, %v1197
        %1199 = vmatmul.bf16.gmra.mxu0 %v989
        %v1200 = vpop.f32.mrf.mxu0
        %v1201 = vadd.f32 %v1172, %v1200
        %v1202 = vpop.f32.mrf.mxu0
        %v1203 = vadd.f32 %v1174, %v1202
        %1204 = vdwg.mxu0
        %1205 = vmatpush.bf16.msra.mxu0 %v1122
        %1206 = vmatpush.bf16.msra.mxu0 %v1121
        %1207 = vmatpush.bf16.msra.mxu0 %v1120
        %1208 = vmatpush.bf16.msra.mxu0 %v1119
        %1209 = vmatpush.bf16.msra.mxu0 %v1118
        %1210 = vmatpush.bf16.msra.mxu0 %v1117
        %1211 = vmatpush.bf16.msra.mxu0 %v1116
        %1212 = vmatpush.bf16.msra.mxu0 %v1115
        %1213 = vmatmul.bf16.gmra.mxu0 %v981
        %v1214 = vpop.f32.mrf.mxu0
        %v1215 = vadd.f32 %v1186, %v1214
        %v1216 = vpop.f32.mrf.mxu0
        %v1217 = vadd.f32 %v1188, %v1216
        %1218 = vmatmul.bf16.gmra.mxu0 %v984
        %v1219 = vpop.f32.mrf.mxu0
        %v1220 = vadd.f32 %v1191, %v1219
        %v1221 = vpop.f32.mrf.mxu0
        %v1222 = vadd.f32 %v1193, %v1221
        %1223 = vmatmul.bf16.gmra.mxu0 %v987
        %v1224 = vpop.f32.mrf.mxu0
        %v1225 = vadd.f32 %v1196, %v1224
        %v1226 = vpop.f32.mrf.mxu0
        %v1227 = vadd.f32 %v1198, %v1226
        %1228 = vmatmul.bf16.gmra.mxu0 %v990
        %v1229 = vpop.f32.mrf.mxu0
        %v1230 = vadd.f32 %v1201, %v1229
        %v1231 = vpop.f32.mrf.mxu0
        %v1232 = vadd.f32 %v1203, %v1231
        %1233 = vdwg.mxu0
        %v1236 = vunpack.c.l.b16 %v547
        %v1237 = vunpack.c.l.b16 %v590
        %s1238 = scalar_lea.vmem %s3, 384
        %v1239 = vld [vmem:[%s1238] sm:$0xf]
        %v1240 = vld [vmem:[%s1238 + $0x4] sm:$0xf]
        %v1241 = vld [vmem:[%s1238 + $0x8] sm:$0xf]
        %v1242 = vld [vmem:[%s1238 + $0xc] sm:$0xf]
        %v1243 = vld [vmem:[%s1238 + $0x10] sm:$0xf]
        %v1244 = vld [vmem:[%s1238 + $0x14] sm:$0xf]
        %v1245 = vld [vmem:[%s1238 + $0x18] sm:$0xf]
        %v1246 = vld [vmem:[%s1238 + $0x1c] sm:$0xf]
        %v1247 = vld [vmem:[%s1238 + $0x20] sm:$0xf]
        %v1248 = vld [vmem:[%s1238 + $0x24] sm:$0xf]
        %v1249 = vld [vmem:[%s1238 + $0x28] sm:$0xf]
        %v1250 = vld [vmem:[%s1238 + $0x2c] sm:$0xf]
        %v1251 = vld [vmem:[%s1238 + $0x30] sm:$0xf]
        %v1252 = vld [vmem:[%s1238 + $0x34] sm:$0xf]
        %v1253 = vld [vmem:[%s1238 + $0x38] sm:$0xf]
        %v1254 = vld [vmem:[%s1238 + $0x3c] sm:$0xf]
        %v1255 = vld [vmem:[%s1238 + $0x40] sm:$0xf]
        %v1256 = vld [vmem:[%s1238 + $0x44] sm:$0xf]
        %v1257 = vld [vmem:[%s1238 + $0x48] sm:$0xf]
        %v1258 = vld [vmem:[%s1238 + $0x4c] sm:$0xf]
        %v1259 = vld [vmem:[%s1238 + $0x50] sm:$0xf]
        %v1260 = vld [vmem:[%s1238 + $0x54] sm:$0xf]
        %v1261 = vld [vmem:[%s1238 + $0x58] sm:$0xf]
        %v1262 = vld [vmem:[%s1238 + $0x5c] sm:$0xf]
        %v1263 = vld [vmem:[%s1238 + $0x60] sm:$0xf]
        %v1264 = vld [vmem:[%s1238 + $0x64] sm:$0xf]
        %v1265 = vld [vmem:[%s1238 + $0x68] sm:$0xf]
        %v1266 = vld [vmem:[%s1238 + $0x6c] sm:$0xf]
        %v1267 = vld [vmem:[%s1238 + $0x70] sm:$0xf]
        %v1268 = vld [vmem:[%s1238 + $0x74] sm:$0xf]
        %v1269 = vld [vmem:[%s1238 + $0x78] sm:$0xf]
        %v1270 = vld [vmem:[%s1238 + $0x7c] sm:$0xf]
        %v1271 = vld [vmem:[%s1238 + $0x80] sm:$0xf]
        %v1272 = vld [vmem:[%s1238 + $0x84] sm:$0xf]
        %v1273 = vld [vmem:[%s1238 + $0x88] sm:$0xf]
        %v1274 = vld [vmem:[%s1238 + $0x8c] sm:$0xf]
        %v1275 = vld [vmem:[%s1238 + $0x90] sm:$0xf]
        %v1276 = vld [vmem:[%s1238 + $0x94] sm:$0xf]
        %v1277 = vld [vmem:[%s1238 + $0x98] sm:$0xf]
        %v1278 = vld [vmem:[%s1238 + $0x9c] sm:$0xf]
        %v1279 = vld [vmem:[%s1238 + $0xa0] sm:$0xf]
        %v1280 = vld [vmem:[%s1238 + $0xa4] sm:$0xf]
        %v1281 = vld [vmem:[%s1238 + $0xa8] sm:$0xf]
        %v1282 = vld [vmem:[%s1238 + $0xac] sm:$0xf]
        %v1283 = vld [vmem:[%s1238 + $0xb0] sm:$0xf]
        %v1284 = vld [vmem:[%s1238 + $0xb4] sm:$0xf]
        %v1285 = vld [vmem:[%s1238 + $0xb8] sm:$0xf]
        %v1286 = vld [vmem:[%s1238 + $0xbc] sm:$0xf]
        %v1287 = vpack.c.b16 %v1236, %v673
        %v1288 = vpack.c.b16 %v444, %v443
        %v1289 = vpack.c.b16 %v1237, %v674
        %v1341 = vunpack.c.l.b16 %v1239
        %v1342 = vunpack.c.l.b16 %v1240
        %v1343 = vunpack.c.l.b16 %v1241
        %v1344 = vunpack.c.l.b16 %v1242
        %v1345 = vunpack.c.l.b16 %v1243
        %v1346 = vunpack.c.l.b16 %v1244
        %v1347 = vunpack.c.l.b16 %v1245
        %v1348 = vunpack.c.l.b16 %v1246
        %v1349 = vunpack.c.l.b16 %v1247
        %v1350 = vunpack.c.l.b16 %v1248
        %v1351 = vunpack.c.l.b16 %v1249
        %v1352 = vunpack.c.l.b16 %v1250
        %v1353 = vunpack.c.l.b16 %v1251
        %v1354 = vunpack.c.l.b16 %v1252
        %v1355 = vunpack.c.l.b16 %v1253
        %v1356 = vunpack.c.l.b16 %v1254
        %v1357 = vunpack.c.l.b16 %v1255
        %v1358 = vunpack.c.l.b16 %v1256
        %v1359 = vunpack.c.l.b16 %v1257
        %v1360 = vunpack.c.l.b16 %v1258
        %v1361 = vunpack.c.l.b16 %v1259
        %v1362 = vunpack.c.l.b16 %v1260
        %v1363 = vunpack.c.l.b16 %v1261
        %v1364 = vunpack.c.l.b16 %v1262
        %v1365 = vunpack.c.l.b16 %v1263
        %v1366 = vunpack.c.l.b16 %v1264
        %v1367 = vunpack.c.l.b16 %v1265
        %v1368 = vunpack.c.l.b16 %v1266
        %v1369 = vunpack.c.l.b16 %v1267
        %v1370 = vunpack.c.l.b16 %v1268
        %v1371 = vunpack.c.l.b16 %v1269
        %v1372 = vunpack.c.l.b16 %v1270
        %v1373 = vunpack.c.l.b16 %v1271
        %v1374 = vunpack.c.l.b16 %v1272
        %v1375 = vunpack.c.l.b16 %v1273
        %v1376 = vunpack.c.l.b16 %v1274
        %v1377 = vunpack.c.l.b16 %v1275
        %v1378 = vunpack.c.l.b16 %v1276
        %v1379 = vunpack.c.l.b16 %v1277
        %v1380 = vunpack.c.l.b16 %v1278
        %v1381 = vunpack.c.l.b16 %v1279
        %v1382 = vunpack.c.l.b16 %v1280
        %v1383 = vunpack.c.l.b16 %v1281
        %v1384 = vunpack.c.l.b16 %v1282
        %v1385 = vunpack.c.l.b16 %v1283
        %v1386 = vunpack.c.l.b16 %v1284
        %v1387 = vunpack.c.l.b16 %v1285
        %v1388 = vunpack.c.l.b16 %v1286
        %v1389 = vpack.c.b16 %v1342, %v1341
        %v1390 = vpack.c.b16 %v1344, %v1343
        %v1391 = vpack.c.b16 %v1346, %v1345
        %v1392 = vpack.c.b16 %v1348, %v1347
        %v1393 = vpack.c.b16 %v1350, %v1349
        %v1394 = vpack.c.b16 %v1352, %v1351
        %v1395 = vpack.c.b16 %v1354, %v1353
        %v1396 = vpack.c.b16 %v1356, %v1355
        %v1397 = vpack.c.b16 %v1358, %v1357
        %v1398 = vpack.c.b16 %v1360, %v1359
        %v1399 = vpack.c.b16 %v1362, %v1361
        %v1400 = vpack.c.b16 %v1364, %v1363
        %v1401 = vpack.c.b16 %v1366, %v1365
        %v1402 = vpack.c.b16 %v1368, %v1367
        %v1403 = vpack.c.b16 %v1370, %v1369
        %v1404 = vpack.c.b16 %v1372, %v1371
        %v1405 = vpack.c.b16 %v1374, %v1373
        %v1406 = vpack.c.b16 %v1376, %v1375
        %v1407 = vpack.c.b16 %v1378, %v1377
        %v1408 = vpack.c.b16 %v1380, %v1379
        %v1409 = vpack.c.b16 %v1382, %v1381
        %v1410 = vpack.c.b16 %v1384, %v1383
        %v1411 = vpack.c.b16 %v1386, %v1385
        %v1412 = vpack.c.b16 %v1388, %v1387
        %1437 = vmatpush.bf16.msra.mxu0 %v1396
        %1438 = vmatpush.bf16.msra.mxu0 %v1395
        %1439 = vmatpush.bf16.msra.mxu0 %v1394
        %1440 = vmatpush.bf16.msra.mxu0 %v1393
        %1441 = vmatpush.bf16.msra.mxu0 %v1392
        %1442 = vmatpush.bf16.msra.mxu0 %v1391
        %1443 = vmatpush.bf16.msra.mxu0 %v1390
        %1444 = vmatpush.bf16.msra.mxu0 %v1389
        %1445 = vmatmul.bf16.gmra.mxu0 %v982
        %v1446 = vpop.f32.mrf.mxu0
        %v1447 = vadd.f32 0.0, %v1446
        %v1448 = vpop.f32.mrf.mxu0
        %v1449 = vadd.f32 0.0, %v1448
        %1450 = vmatmul.bf16.gmra.mxu0 %v985
        %v1451 = vpop.f32.mrf.mxu0
        %v1452 = vadd.f32 0.0, %v1451
        %v1453 = vpop.f32.mrf.mxu0
        %v1454 = vadd.f32 0.0, %v1453
        %1455 = vmatmul.bf16.gmra.mxu0 %v988
        %v1456 = vpop.f32.mrf.mxu0
        %v1457 = vadd.f32 0.0, %v1456
        %v1458 = vpop.f32.mrf.mxu0
        %v1459 = vadd.f32 0.0, %v1458
        %1460 = vmatmul.bf16.gmra.mxu0 %v1287
        %v1461 = vpop.f32.mrf.mxu0
        %v1462 = vadd.f32 0.0, %v1461
        %v1463 = vpop.f32.mrf.mxu0
        %v1464 = vadd.f32 0.0, %v1463
        %1465 = vdwg.mxu0
        %1466 = vmatpush.bf16.msra.mxu0 %v1404
        %1467 = vmatpush.bf16.msra.mxu0 %v1403
        %1468 = vmatpush.bf16.msra.mxu0 %v1402
        %1469 = vmatpush.bf16.msra.mxu0 %v1401
        %1470 = vmatpush.bf16.msra.mxu0 %v1400
        %1471 = vmatpush.bf16.msra.mxu0 %v1399
        %1472 = vmatpush.bf16.msra.mxu0 %v1398
        %1473 = vmatpush.bf16.msra.mxu0 %v1397
        %1474 = vmatmul.bf16.gmra.mxu0 %v983
        %v1475 = vpop.f32.mrf.mxu0
        %v1476 = vadd.f32 %v1447, %v1475
        %v1477 = vpop.f32.mrf.mxu0
        %v1478 = vadd.f32 %v1449, %v1477
        %1479 = vmatmul.bf16.gmra.mxu0 %v986
        %v1480 = vpop.f32.mrf.mxu0
        %v1481 = vadd.f32 %v1452, %v1480
        %v1482 = vpop.f32.mrf.mxu0
        %v1483 = vadd.f32 %v1454, %v1482
        %1484 = vmatmul.bf16.gmra.mxu0 %v989
        %v1485 = vpop.f32.mrf.mxu0
        %v1486 = vadd.f32 %v1457, %v1485
        %v1487 = vpop.f32.mrf.mxu0
        %v1488 = vadd.f32 %v1459, %v1487
        %1489 = vmatmul.bf16.gmra.mxu0 %v1288
        %v1490 = vpop.f32.mrf.mxu0
        %v1491 = vadd.f32 %v1462, %v1490
        %v1492 = vpop.f32.mrf.mxu0
        %v1493 = vadd.f32 %v1464, %v1492
        %1494 = vdwg.mxu0
        %1495 = vmatpush.bf16.msra.mxu0 %v1412
        %1496 = vmatpush.bf16.msra.mxu0 %v1411
        %1497 = vmatpush.bf16.msra.mxu0 %v1410
        %1498 = vmatpush.bf16.msra.mxu0 %v1409
        %1499 = vmatpush.bf16.msra.mxu0 %v1408
        %1500 = vmatpush.bf16.msra.mxu0 %v1407
        %1501 = vmatpush.bf16.msra.mxu0 %v1406
        %1502 = vmatpush.bf16.msra.mxu0 %v1405
        %1503 = vmatmul.bf16.gmra.mxu0 %v984
        %v1504 = vpop.f32.mrf.mxu0
        %v1505 = vadd.f32 %v1476, %v1504
        %v1506 = vpop.f32.mrf.mxu0
        %v1507 = vadd.f32 %v1478, %v1506
        %1508 = vmatmul.bf16.gmra.mxu0 %v987
        %v1509 = vpop.f32.mrf.mxu0
        %v1510 = vadd.f32 %v1481, %v1509
        %v1511 = vpop.f32.mrf.mxu0
        %v1512 = vadd.f32 %v1483, %v1511
        %1513 = vmatmul.bf16.gmra.mxu0 %v990
        %v1514 = vpop.f32.mrf.mxu0
        %v1515 = vadd.f32 %v1486, %v1514
        %v1516 = vpop.f32.mrf.mxu0
        %v1517 = vadd.f32 %v1488, %v1516
        %1518 = vmatmul.bf16.gmra.mxu0 %v1289
        %v1519 = vpop.f32.mrf.mxu0
        %v1520 = vadd.f32 %v1491, %v1519
        %v1521 = vpop.f32.mrf.mxu0
        %v1522 = vadd.f32 %v1493, %v1521
        %1523 = vdwg.mxu0
        %v1524 = vadd.f32 %v1215, %v1505
        %v1525 = vadd.f32 %v1217, %v1507
        %v1526 = vadd.f32 %v1220, %v1510
        %v1527 = vadd.f32 %v1222, %v1512
        %v1528 = vadd.f32 %v1225, %v1515
        %v1529 = vadd.f32 %v1227, %v1517
        %v1530 = vadd.f32 %v1230, %v1520
        %v1531 = vadd.f32 %v1232, %v1522
        %v1532 = vld [vmem:[%s4] sm:$0x1]
        %v1534 = vperm.slane %v1532, 0
        %v1536 = vadd.f32 %v1524, %v1534
        %v1537 = vadd.f32 %v1525, %v1534
        %v1538 = vadd.f32 %v1526, %v1534
        %v1539 = vadd.f32 %v1527, %v1534
        %v1540 = vadd.f32 %v1528, %v1534
        %v1541 = vadd.f32 %v1529, %v1534
        %v1542 = vadd.f32 %v1530, %v1534
        %v1543 = vadd.f32 %v1531, %v1534
        %v1544 = vmax.f32 %v1536, 0.0
        %v1545 = vmax.f32 %v1537, 0.0
        %v1546 = vmax.f32 %v1538, 0.0
        %v1547 = vmax.f32 %v1539, 0.0
        %v1548 = vmax.f32 %v1540, 0.0
        %v1549 = vmax.f32 %v1541, 0.0
        %v1550 = vmax.f32 %v1542, 0.0
        %v1551 = vmax.f32 %v1543, 0.0
        %1552 = vst [vmem:[%s328] sm:$0xff] %v1544
        %1553 = vst [vmem:[%s328 + $0x8] sm:$0xff] %v1545
        %1554 = vst [vmem:[%s328 + $0x10] sm:$0xff] %v1546
        %1555 = vst [vmem:[%s328 + $0x18] sm:$0xff] %v1547
        %1556 = vst [vmem:[%s328 + $0x20] sm:$0xff] %v1548
        %1557 = vst [vmem:[%s328 + $0x28] sm:$0xff] %v1549
        %1558 = vst [vmem:[%s328 + $0x30] sm:$0xff] %v1550
        %1559 = vst [vmem:[%s328 + $0x38] sm:$0xff] %v1551
        %s1560 = sand.u32 %s183, 1
        %s1561 = scalar_lea.sflag [#allocation3], %s1560
        %s1562 = sand.u32 %s183, 1
        %s1563 = smul.addr %s1562, 64
        %s1564 = scalar_lea.vmem [#allocation2], %s1563
        // Predicated region
        $region41: #{netf_forward.7} parent=39 // pred_check
          %p1565 = pneg %p193
        $region42: #{netf_forward.7} parent=39 // pred_check_branch
          %1567 = sbr.rel (%p1565) target = $region44
        $region43: #{netf_forward.7} parent=39 // pred_region
          %s1568 = smul.u32 8, %s24
          %1570 = vsyncadd %s1561, 0
          %s1571 = smul.addr %s23, 8
          %s1572 = sadd.s32 %s1568, %s1571
          %s1573 = smul.addr %s1572, 8
          %s1574 = scalar_lea.hbm %s5, %s1573
          %s1575 = sshll.u32 %s1564, 4
          %s1576 = int_to_ptr.vmem [resolvable:$true] %s1575
          %s1577 = sshll.u32 %s1574, 4
          %s1578 = int_to_ptr.hbm [resolvable:$true] %s1577
          %1583 = dma.vmem_to_hbm [thread:$0]  %s1576, 1024, %s1578, %s1561, 128, 128, 8
        $region44: #{netf_forward.7} parent=39 // pred_fallthru
          _
      $region40: #{netf_forward.7} parent=5 // pred_fallthru
        _
      %p1584 = scmp.le.s32.totalorder 2, %s14
      // Predicated region
      $region45: #{netf_forward.7} parent=5 // pred_check
        %p1585 = pneg %p1584
      $region46: #{netf_forward.7} parent=5 // pred_check_branch
        %1587 = sbr.rel (%p1585) target = $region48
      $region47: #{netf_forward.7} parent=5 // pred_region
        %s1588 = ssub.s32 %s14, 2
        // Predicated region
        $region49: #{netf_forward.7} parent=47 // pred_check
          %p1589 = pneg %p199
        $region50: #{netf_forward.7} parent=47 // pred_check_branch
          %1591 = sbr.rel (%p1589) target = $region52
        $region51: #{netf_forward.7} parent=47 // pred_region
          %s1592 = sand.u32 %s184, 1
          %s1593 = scalar_lea.sflag [#allocation3], %s1592
          %s1594 = sand.u32 %s184, 1
          %s1595 = smul.addr %s1594, 64
          %s1596 = scalar_lea.vmem [#allocation2], %s1595
          %1598 = dma.done %s1593, 1024
        $region52: #{netf_forward.7} parent=47 // pred_fallthru
          _
      $region48: #{netf_forward.7} parent=5 // pred_fallthru
        _
    $region6: #{netf_forward.7} parent=1 // loop_footer
      %s18 = sadd.s32 1, %s14
    $region7: #{netf_forward.7} parent=1 // loop_footer_branch
      %13 = sbr.rel target = $region3
    $region8: #{netf_forward.7} parent=1 // loop_exit
      _
    %1599 = vsyncpa [#allocation3], 1
    %s1600 = scalar_lea.sflag [#allocation3], 1
    %1601 = vsyncpa %s1600, 1

// kernel: netf_forward.5
$region0: #{netf_forward.5}
  #allocation0 [shape = 'u32[]', space=smem, size = 0x4, offset = 0x4, fixed_abs, tag = 'smem constant byte address 0x4 - core index']
  #allocation1 [shape = 'u32[72,128]{1,0:T(1,128)}', space=vmem, size = 0x9000, scoped, tag = 'internal scratch']
  #allocation2 [shape = 'f32[8,16,64]{2,1,0:T(8,128)}', space=vmem, size = 0x10000, scoped, tag = 'scratch operand']
  %s0 = inlined_call_operand.vmem [shape: bf16[2,16,16,64], index: 0, kind: input, shape index: {}, may-alias: {0,1,2}]
  %s1 = inlined_call_operand.vmem [shape: bf16[2,16,16,64], index: 1, kind: input, shape index: {}, may-alias: {0,1,2}]
  %s2 = inlined_call_operand.vmem [shape: bf16[2,16,16,64], index: 2, kind: input, shape index: {}, may-alias: {0,1,2}]
  %s3 = inlined_call_operand.vmem [shape: bf16[3,192,64], index: 3, kind: input, shape index: {}]
  %s4 = inlined_call_operand.vmem [shape: f32[1,64], index: 4, kind: input, shape index: {}]
  %s5 = inlined_call_operand.vmem [shape: bf16[2,8,8,64], index: 5, kind: output, shape index: {}]
  %s6 = sld [smem:[#allocation0]]
  $region53: #{netf_forward.5} parent=0
    _
  %s8 = ssub.s32 1, %s6
  %s9 = scalar_select 0, %s8, %s6
  loop: start=0, step=1, limit=4
  $region2: #{netf_forward.5} parent=0 // loop_pre_header
    _
  $region3: #{netf_forward.5} parent=0 // loop_header
    %s11 = sphi 0, %s15
    %p12 = scmp.ge.s32.totalorder %s11, 4
    %s18 = sphi 0, %s30
    %s19 = sphi 0, %s26
    %s20 = sphi 0, %s18
    %s21 = sphi 0, %s19
    %s22 = sphi 0, %s20
    %s23 = sphi 0, %s21
    %s43 = sphi 0, %s45
    %s46 = sphi 0, %s43
    %s47 = sphi 0, %s46
    %s63 = sphi 0, %s47
    %s71 = sphi 0, %s73
    %s74 = sphi 0, %s71
    %s75 = sphi 0, %s74
    %s91 = sphi 0, %s75
    %s107 = sphi 0, %s109
    %s110 = sphi 0, %s107
    %s111 = sphi 0, %s110
    %s127 = sphi 0, %s111
    %s131 = sphi 0, %s131
    %s133 = sphi 0, %s131
    %s134 = sphi 0, %s133
    %s148 = sphi 0, %s134
    %s152 = sphi 0, %s152
    %s154 = sphi 0, %s152
    %s155 = sphi 0, %s154
    %s169 = sphi 0, %s155
    %s177 = sphi 0, %s179
    %s180 = sphi 0, %s177
    %s181 = sphi 0, %s180
    %s197 = sphi 0, %s181
  $region4: #{netf_forward.5} parent=0 // loop_header_branch
    %14 = sbr.rel (%p12) target = $region8
  $region5: #{netf_forward.5} parent=0 // loop_body
    %s16 = ssub.s32 %s11, 1
    %s17 = ssub.s32 %s11, 2
    %s24 = sadd.s32 1, %s19
    %p25 = scmp.ge.s32.totalorder %s24, 1
    %s26 = scalar_select %p25, 0, %s24
    %s27 = sadd.s32 1, %s18
    %s28 = scalar_select %p25, %s27, %s18
    %p29 = scmp.ge.s32.totalorder %s28, 2
    %s30 = scalar_select %p29, 0, %s28
    %s31 = smul.u32 %s19, 16
    %s32 = ssub.s32 %s31, 1
    %p33 = scmp.gt.s32.totalorder %s32, 0
    %s34 = scalar_select %p33, %s32, 0
    %s35 = smul.u32 %s26, 16
    %s36 = ssub.s32 %s35, 1
    %p37 = scmp.gt.s32.totalorder %s36, 0
    %s38 = scalar_select %p37, %s36, 0
    %s39 = ssub.s32 %s18, %s30
    %s40 = ssub.s32 %s34, %s38
    %s41 = sor.u32 %s39, %s40
    %p42 = scmp.eq.s32.totalorder %s41, 0
    %s44 = sadd.s32 %s43, 1
    %s45 = scalar_select %p42, %s43, %s44
    %p48 = pneg %p42
    %p49 = scmp.eq.s32.totalorder %s11, 1
    %p50 = por %p48, %p49
    %p51 = scmp.ne.s32.totalorder %s43, %s46
    %p52 = scmp.eq.s32.totalorder %s11, 0
    %p53 = por %p51, %p52
    %p54 = scmp.ne.s32.totalorder %s43, %s46
    %p55 = scmp.eq.s32.totalorder %s16, 1
    %p56 = por %p54, %p55
    %p57 = scmp.ne.s32.totalorder %s46, %s47
    %p58 = scmp.eq.s32.totalorder %s16, 0
    %p59 = por %p57, %p58
    %p60 = scmp.ne.s32.totalorder %s46, %s47
    %p61 = scmp.eq.s32.totalorder %s17, 1
    %p62 = por %p60, %p61
    %p64 = scmp.ne.s32.totalorder %s47, %s63
    %p65 = scmp.eq.s32.totalorder %s17, 0
    %p66 = por %p64, %p65
    %s67 = ssub.s32 %s18, %s30
    %s68 = ssub.s32 %s19, %s26
    %s69 = sor.u32 %s67, %s68
    %p70 = scmp.eq.s32.totalorder %s69, 0
    %s72 = sadd.s32 %s71, 1
    %s73 = scalar_select %p70, %s71, %s72
    %p76 = pneg %p70
    %p77 = scmp.eq.s32.totalorder %s11, 1
    %p78 = por %p76, %p77
    %p79 = scmp.ne.s32.totalorder %s71, %s74
    %p80 = scmp.eq.s32.totalorder %s11, 0
    %p81 = por %p79, %p80
    %p82 = scmp.ne.s32.totalorder %s71, %s74
    %p83 = scmp.eq.s32.totalorder %s16, 1
    %p84 = por %p82, %p83
    %p85 = scmp.ne.s32.totalorder %s74, %s75
    %p86 = scmp.eq.s32.totalorder %s16, 0
    %p87 = por %p85, %p86
    %p88 = scmp.ne.s32.totalorder %s74, %s75
    %p89 = scmp.eq.s32.totalorder %s17, 1
    %p90 = por %p88, %p89
    %p92 = scmp.ne.s32.totalorder %s75, %s91
    %p93 = scmp.eq.s32.totalorder %s17, 0
    %p94 = por %p92, %p93
    %s95 = smul.u32 %s19, 16
    %s96 = sadd.s32 %s95, 16
    %p97 = scmp.lt.s32.totalorder %s96, 15
    %s98 = scalar_select %p97, %s96, 15
    %s99 = smul.u32 %s26, 16
    %s100 = sadd.s32 %s99, 16
    %p101 = scmp.lt.s32.totalorder %s100, 15
    %s102 = scalar_select %p101, %s100, 15
    %s103 = ssub.s32 %s18, %s30
    %s104 = ssub.s32 %s98, %s102
    %s105 = sor.u32 %s103, %s104
    %p106 = scmp.eq.s32.totalorder %s105, 0
    %s108 = sadd.s32 %s107, 1
    %s109 = scalar_select %p106, %s107, %s108
    %p112 = pneg %p106
    %p113 = scmp.eq.s32.totalorder %s11, 1
    %p114 = por %p112, %p113
    %p115 = scmp.ne.s32.totalorder %s107, %s110
    %p116 = scmp.eq.s32.totalorder %s11, 0
    %p117 = por %p115, %p116
    %p118 = scmp.ne.s32.totalorder %s107, %s110
    %p119 = scmp.eq.s32.totalorder %s16, 1
    %p120 = por %p118, %p119
    %p121 = scmp.ne.s32.totalorder %s110, %s111
    %p122 = scmp.eq.s32.totalorder %s16, 0
    %p123 = por %p121, %p122
    %p124 = scmp.ne.s32.totalorder %s110, %s111
    %p125 = scmp.eq.s32.totalorder %s17, 1
    %p126 = por %p124, %p125
    %p128 = scmp.ne.s32.totalorder %s111, %s127
    %p129 = scmp.eq.s32.totalorder %s17, 0
    %p130 = por %p128, %p129
    %s132 = sadd.s32 %s131, 1
    %p135 = scmp.eq.s32.totalorder %s11, 1
    %p136 = scmp.ne.s32.totalorder %s131, %s133
    %p137 = scmp.eq.s32.totalorder %s11, 0
    %p138 = por %p136, %p137
    %p139 = scmp.ne.s32.totalorder %s131, %s133
    %p140 = scmp.eq.s32.totalorder %s16, 1
    %p141 = por %p139, %p140
    %p142 = scmp.ne.s32.totalorder %s133, %s134
    %p143 = scmp.eq.s32.totalorder %s16, 0
    %p144 = por %p142, %p143
    %p145 = scmp.ne.s32.totalorder %s133, %s134
    %p146 = scmp.eq.s32.totalorder %s17, 1
    %p147 = por %p145, %p146
    %p149 = scmp.ne.s32.totalorder %s134, %s148
    %p150 = scmp.eq.s32.totalorder %s17, 0
    %p151 = por %p149, %p150
    %s153 = sadd.s32 %s152, 1
    %p156 = scmp.eq.s32.totalorder %s11, 1
    %p157 = scmp.ne.s32.totalorder %s152, %s154
    %p158 = scmp.eq.s32.totalorder %s11, 0
    %p159 = por %p157, %p158
    %p160 = scmp.ne.s32.totalorder %s152, %s154
    %p161 = scmp.eq.s32.totalorder %s16, 1
    %p162 = por %p160, %p161
    %p163 = scmp.ne.s32.totalorder %s154, %s155
    %p164 = scmp.eq.s32.totalorder %s16, 0
    %p165 = por %p163, %p164
    %p166 = scmp.ne.s32.totalorder %s154, %s155
    %p167 = scmp.eq.s32.totalorder %s17, 1
    %p168 = por %p166, %p167
    %p170 = scmp.ne.s32.totalorder %s155, %s169
    %p171 = scmp.eq.s32.totalorder %s17, 0
    %p172 = por %p170, %p171
    %s173 = ssub.s32 %s18, %s30
    %s174 = ssub.s32 %s19, %s26
    %s175 = sor.u32 %s173, %s174
    %p176 = scmp.eq.s32.totalorder %s175, 0
    %s178 = sadd.s32 %s177, 1
    %s179 = scalar_select %p176, %s177, %s178
    %p182 = pneg %p176
    %p183 = scmp.eq.s32.totalorder %s11, 1
    %p184 = por %p182, %p183
    %p185 = scmp.ne.s32.totalorder %s177, %s180
    %p186 = scmp.eq.s32.totalorder %s11, 0
    %p187 = por %p185, %p186
    %p188 = scmp.ne.s32.totalorder %s177, %s180
    %p189 = scmp.eq.s32.totalorder %s16, 1
    %p190 = por %p188, %p189
    %p191 = scmp.ne.s32.totalorder %s180, %s181
    %p192 = scmp.eq.s32.totalorder %s16, 0
    %p193 = por %p191, %p192
    %p194 = scmp.ne.s32.totalorder %s180, %s181
    %p195 = scmp.eq.s32.totalorder %s17, 1
    %p196 = por %p194, %p195
    %p198 = scmp.ne.s32.totalorder %s181, %s197
    %p199 = scmp.eq.s32.totalorder %s17, 0
    %p200 = por %p198, %p199
    %p201 = scmp.le.s32.totalorder 1, %s11
    %p202 = scmp.lt.s32.totalorder %s11, 3
    %p203 = pnand %p201, %p202
    %p204 = pneg %p203
    // Predicated region
    $region9: #{netf_forward.5} parent=5 // pred_check
      _
    $region10: #{netf_forward.5} parent=5 // pred_check_branch
      %206 = sbr.rel (%p203) target = $region12
    $region11: #{netf_forward.5} parent=5 // pred_region
      %s207 = ssub.s32 %s11, 1
      // Predicated region
      $region13: #{netf_forward.5} parent=11 // pred_check
        %p208 = pneg %p144
      $region14: #{netf_forward.5} parent=11 // pred_check_branch
        %210 = sbr.rel (%p208) target = $region16
      $region15: #{netf_forward.5} parent=11 // pred_region
        _
      $region16: #{netf_forward.5} parent=11 // pred_fallthru
        _
      // Predicated region
      $region17: #{netf_forward.5} parent=11 // pred_check
        %p211 = pneg %p165
      $region18: #{netf_forward.5} parent=11 // pred_check_branch
        %213 = sbr.rel (%p211) target = $region20
      $region19: #{netf_forward.5} parent=11 // pred_region
        _
      $region20: #{netf_forward.5} parent=11 // pred_fallthru
        _
    $region12: #{netf_forward.5} parent=5 // pred_fallthru
      _
    %p214 = scmp.lt.s32.totalorder %s11, 2
    // Predicated region
    $region21: #{netf_forward.5} parent=5 // pred_check
      %p215 = pneg %p214
    $region22: #{netf_forward.5} parent=5 // pred_check_branch
      %217 = sbr.rel (%p215) target = $region24
    $region23: #{netf_forward.5} parent=5 // pred_region
      // Predicated region
      $region25: #{netf_forward.5} parent=23 // pred_check
        %p218 = pneg %p53
      $region26: #{netf_forward.5} parent=23 // pred_check_branch
        %220 = sbr.rel (%p218) target = $region28
      $region27: #{netf_forward.5} parent=23 // pred_region
        %s221 = smul.u32 %s19, 16
        %s222 = ssub.s32 %s221, 1
        %p223 = scmp.gt.s32.totalorder %s222, 0
        %s224 = scalar_select %p223, %s222, 0
        %p225 = scmp.lt.s32.totalorder %s18, 1
        %s226 = scalar_select %p225, %s18, 1
        %p227 = scmp.lt.s32.totalorder %s224, 15
        %s228 = scalar_select %p227, %s224, 15
        %s229 = smul.addr %s228, 2
        %s230 = smul.addr %s226, 32
        %s231 = sadd.s32 %s229, %s230
        %s232 = smul.addr %s231, 4
        %s233 = scalar_lea.vmem %s0, %s232
        %s234 = smul.u32 %s19, 16
        %s235 = ssub.s32 %s234, 1
        %p236 = scmp.gt.s32.totalorder %s235, 0
        %s237 = scalar_select %p236, %s235, 0
      $region28: #{netf_forward.5} parent=23 // pred_fallthru
        _
      // Predicated region
      $region29: #{netf_forward.5} parent=23 // pred_check
        %p238 = pneg %p81
      $region30: #{netf_forward.5} parent=23 // pred_check_branch
        %240 = sbr.rel (%p238) target = $region32
      $region31: #{netf_forward.5} parent=23 // pred_region
        %s241 = smul.u32 16, %s19
        %p242 = scmp.lt.s32.totalorder %s18, 1
        %s243 = scalar_select %p242, %s18, 1
        %p244 = scmp.lt.s32.totalorder %s241, 15
        %s245 = scalar_select %p244, %s241, 15
        %s246 = smul.addr %s245, 2
        %s247 = smul.addr %s243, 32
        %s248 = sadd.s32 %s246, %s247
        %s249 = smul.addr %s248, 4
        %s250 = scalar_lea.vmem %s1, %s249
        %s251 = smul.u32 16, %s19
      $region32: #{netf_forward.5} parent=23 // pred_fallthru
        _
      // Predicated region
      $region33: #{netf_forward.5} parent=23 // pred_check
        %p252 = pneg %p117
      $region34: #{netf_forward.5} parent=23 // pred_check_branch
        %254 = sbr.rel (%p252) target = $region36
      $region35: #{netf_forward.5} parent=23 // pred_region
        %s255 = smul.u32 %s19, 16
        %s256 = sadd.s32 %s255, 16
        %p257 = scmp.lt.s32.totalorder %s256, 15
        %s258 = scalar_select %p257, %s256, 15
        %p259 = scmp.lt.s32.totalorder %s18, 1
        %s260 = scalar_select %p259, %s18, 1
        %p261 = scmp.lt.s32.totalorder %s258, 15
        %s262 = scalar_select %p261, %s258, 15
        %s263 = smul.addr %s262, 2
        %s264 = smul.addr %s260, 32
        %s265 = sadd.s32 %s263, %s264
        %s266 = smul.addr %s265, 4
        %s267 = scalar_lea.vmem %s2, %s266
        %s268 = smul.u32 %s19, 16
        %s269 = sadd.s32 %s268, 16
        %p270 = scmp.lt.s32.totalorder %s269, 15
        %s271 = scalar_select %p270, %s269, 15
      $region36: #{netf_forward.5} parent=23 // pred_fallthru
        _
    $region24: #{netf_forward.5} parent=5 // pred_fallthru
      _
    %p272 = scmp.le.s32.totalorder 1, %s11
    %p273 = scmp.lt.s32.totalorder %s11, 3
    %p274 = pnand %p272, %p273
    %p275 = pneg %p274
    // Predicated region
    $region37: #{netf_forward.5} parent=5 // pred_check
      _
    $region38: #{netf_forward.5} parent=5 // pred_check_branch
      %277 = sbr.rel (%p274) target = $region40
    $region39: #{netf_forward.5} parent=5 // pred_region
      %s278 = ssub.s32 %s11, 1
      %s279 = smul.u32 %s21, 16
      %s280 = ssub.s32 %s279, 1
      %p281 = scmp.gt.s32.totalorder %s280, 0
      %s282 = scalar_select %p281, %s280, 0
      %p283 = scmp.lt.s32.totalorder %s20, 1
      %s284 = scalar_select %p283, %s20, 1
      %p285 = scmp.lt.s32.totalorder %s282, 15
      %s286 = scalar_select %p285, %s282, 15
      %s287 = smul.addr %s286, 2
      %s288 = smul.addr %s284, 32
      %s289 = sadd.s32 %s287, %s288
      %s290 = smul.addr %s289, 4
      %s291 = scalar_lea.vmem %s0, %s290
      %p292 = pneg %p59
      %p293 = pneg %p56
      %s294 = smul.u32 16, %s21
      %p295 = scmp.lt.s32.totalorder %s20, 1
      %s296 = scalar_select %p295, %s20, 1
      %p297 = scmp.lt.s32.totalorder %s294, 15
      %s298 = scalar_select %p297, %s294, 15
      %s299 = smul.addr %s298, 2
      %s300 = smul.addr %s296, 32
      %s301 = sadd.s32 %s299, %s300
      %s302 = smul.addr %s301, 4
      %s303 = scalar_lea.vmem %s1, %s302
      %p304 = pneg %p87
      %p305 = pneg %p84
      %s306 = smul.u32 %s21, 16
      %s307 = sadd.s32 %s306, 16
      %p308 = scmp.lt.s32.totalorder %s307, 15
      %s309 = scalar_select %p308, %s307, 15
      %p310 = scmp.lt.s32.totalorder %s20, 1
      %s311 = scalar_select %p310, %s20, 1
      %p312 = scmp.lt.s32.totalorder %s309, 15
      %s313 = scalar_select %p312, %s309, 15
      %s314 = smul.addr %s313, 2
      %s315 = smul.addr %s311, 32
      %s316 = sadd.s32 %s314, %s315
      %s317 = smul.addr %s316, 4
      %s318 = scalar_lea.vmem %s2, %s317
      %p319 = pneg %p123
      %p320 = pneg %p120
      %p321 = pneg %p144
      %p322 = pneg %p141
      %p323 = pneg %p165
      %p324 = pneg %p162
      %p325 = pneg %p193
      %p326 = pneg %p190
      %s327 = smul.u32 8, %s21
      %p328 = scmp.lt.s32.totalorder %s20, 1
      %s329 = scalar_select %p328, %s20, 1
      %p330 = scmp.lt.s32.totalorder %s327, 7
      %s331 = scalar_select %p330, %s327, 7
      %s332 = smul.addr %s329, 8
      %s333 = sadd.s32 %s331, %s332
      %s334 = smul.addr %s333, 4
      %s335 = scalar_lea.vmem %s5, %s334
      %s336 = smul.u32 %s21, 16
      %s337 = ssub.s32 %s336, 1
      %p338 = scmp.gt.s32.totalorder %s337, 0
      %s339 = scalar_select %p338, %s337, 0
      %p340 = scmp.lt.s32.totalorder %s20, 1
      %s341 = scalar_select %p340, %s20, 1
      %p342 = scmp.lt.s32.totalorder %s339, 15
      %s343 = scalar_select %p342, %s339, 15
      %s344 = smul.addr %s343, 2
      %s345 = smul.addr %s341, 32
      %s346 = sadd.s32 %s344, %s345
      %s347 = smul.addr %s346, 4
      %s348 = scalar_lea.vmem %s0, %s347
      %s349 = smul.u32 %s21, 16
      %s350 = ssub.s32 %s349, 1
      %p351 = scmp.gt.s32.totalorder %s350, 0
      %s352 = scalar_select %p351, %s350, 0
      %s353 = smul.u32 16, %s21
      %p354 = scmp.lt.s32.totalorder %s20, 1
      %s355 = scalar_select %p354, %s20, 1
      %p356 = scmp.lt.s32.totalorder %s353, 15
      %s357 = scalar_select %p356, %s353, 15
      %s358 = smul.addr %s357, 2
      %s359 = smul.addr %s355, 32
      %s360 = sadd.s32 %s358, %s359
      %s361 = smul.addr %s360, 4
      %s362 = scalar_lea.vmem %s1, %s361
      %s363 = smul.u32 16, %s21
      %s364 = smul.u32 %s21, 16
      %s365 = sadd.s32 %s364, 16
      %p366 = scmp.lt.s32.totalorder %s365, 15
      %s367 = scalar_select %p366, %s365, 15
      %p368 = scmp.lt.s32.totalorder %s20, 1
      %s369 = scalar_select %p368, %s20, 1
      %p370 = scmp.lt.s32.totalorder %s367, 15
      %s371 = scalar_select %p370, %s367, 15
      %s372 = smul.addr %s371, 2
      %s373 = smul.addr %s369, 32
      %s374 = sadd.s32 %s372, %s373
      %s375 = smul.addr %s374, 4
      %s376 = scalar_lea.vmem %s2, %s375
      %s377 = smul.u32 %s21, 16
      %s378 = sadd.s32 %s377, 16
      %p379 = scmp.lt.s32.totalorder %s378, 15
      %s380 = scalar_select %p379, %s378, 15
      %s381 = smul.u32 8, %s21
      %p382 = scmp.lt.s32.totalorder %s20, 1
      %s383 = scalar_select %p382, %s20, 1
      %p384 = scmp.lt.s32.totalorder %s381, 7
      %s385 = scalar_select %p384, %s381, 7
      %s386 = smul.addr %s383, 8
      %s387 = sadd.s32 %s385, %s386
      %s388 = smul.addr %s387, 4
      %s389 = scalar_lea.vmem %s5, %s388
      %s390 = smul.u32 8, %s21
      %v392 = vld [vmem:[%s348] sm:$0xf]
      %v393 = vld [vmem:[%s348 + $0x4] sm:$0xf]
      %v394 = vld [vmem:[%s362] sm:$0xf]
      %v395 = vld [vmem:[%s362 + $0x4] sm:$0xf]
      %v396 = vld [vmem:[%s362 + $0x8] sm:$0xf]
      %v397 = vld [vmem:[%s362 + $0xc] sm:$0xf]
      %v398 = vld [vmem:[%s362 + $0x10] sm:$0xf]
      %v399 = vld [vmem:[%s362 + $0x14] sm:$0xf]
      %v400 = vld [vmem:[%s362 + $0x18] sm:$0xf]
      %v401 = vld [vmem:[%s362 + $0x1c] sm:$0xf]
      %v402 = vld [vmem:[%s362 + $0x20] sm:$0xf]
      %v403 = vld [vmem:[%s362 + $0x24] sm:$0xf]
      %v404 = vld [vmem:[%s362 + $0x28] sm:$0xf]
      %v405 = vld [vmem:[%s362 + $0x2c] sm:$0xf]
      %v406 = vld [vmem:[%s362 + $0x30] sm:$0xf]
      %v407 = vld [vmem:[%s362 + $0x34] sm:$0xf]
      %v408 = vld [vmem:[%s362 + $0x38] sm:$0xf]
      %v409 = vld [vmem:[%s362 + $0x3c] sm:$0xf]
      %v410 = vld [vmem:[%s362 + $0x40] sm:$0xf]
      %v411 = vld [vmem:[%s362 + $0x44] sm:$0xf]
      %v412 = vld [vmem:[%s362 + $0x48] sm:$0xf]
      %v413 = vld [vmem:[%s362 + $0x4c] sm:$0xf]
      %v414 = vld [vmem:[%s362 + $0x50] sm:$0xf]
      %v415 = vld [vmem:[%s362 + $0x54] sm:$0xf]
      %v416 = vld [vmem:[%s362 + $0x58] sm:$0xf]
      %v417 = vld [vmem:[%s362 + $0x5c] sm:$0xf]
      %v418 = vld [vmem:[%s362 + $0x60] sm:$0xf]
      %v419 = vld [vmem:[%s362 + $0x64] sm:$0xf]
      %v420 = vld [vmem:[%s362 + $0x68] sm:$0xf]
      %v421 = vld [vmem:[%s362 + $0x6c] sm:$0xf]
      %v422 = vld [vmem:[%s362 + $0x70] sm:$0xf]
      %v423 = vld [vmem:[%s362 + $0x74] sm:$0xf]
      %v424 = vld [vmem:[%s362 + $0x78] sm:$0xf]
      %v425 = vld [vmem:[%s362 + $0x7c] sm:$0xf]
      %v426 = vld [vmem:[%s376] sm:$0xf]
      %v427 = vld [vmem:[%s376 + $0x4] sm:$0xf]
      %p428 = scmp.gt.s32.totalorder %s21, 0
      %s429 = scalar_select %p428, 1, 0
      %s430 = scvt.s32.f32 %s429
      %p432 = scmp.ne.f32.partialorder %s430, %s430
      %s433 = sshrl.u32 %s430, 16
      %s434 = sand.u32 %s433, 1
      %s435 = sadd.s32 32767, %s434
      %s436 = sadd.s32 %s430, %s435
      %s437 = sand.u32 %s436, 4294901760
      %s438 = scalar_select %p432, 2143289344, %s437
      %s440 = sshrl.u32 %s438, 16
      %s441 = sshll.u32 %s440, 16
      %s442 = sor.u32 %s440, %s441
      %v443 = vstv %s442
      %v445 = vunpack.c.l.bf16 %v392
      %v446 = vunpack.c.l.bf16 %v393
      %v447 = vunpack.c.l.bf16 %v443
      %v448 = vmul.f32 %v445, %v447
      %v449 = vmul.f32 %v446, %v447
      %v450 = vpack.c.bf16 %v448, %v448
      %v451 = vpack.c.bf16 %v449, %v449
      %p452 = scmp.lt.s32.totalorder %s21, 0
      %s453 = scalar_select %p452, 1, 0
      %s454 = scvt.s32.f32 %s453
      %p456 = scmp.ne.f32.partialorder %s454, %s454
      %s457 = sshrl.u32 %s454, 16
      %s458 = sand.u32 %s457, 1
      %s459 = sadd.s32 32767, %s458
      %s460 = sadd.s32 %s454, %s459
      %s461 = sand.u32 %s460, 4294901760
      %s462 = scalar_select %p456, 2143289344, %s461
      %s464 = sshrl.u32 %s462, 16
      %s465 = sshll.u32 %s464, 16
      %s466 = sor.u32 %s464, %s465
      %v467 = vstv %s466
      %v469 = vunpack.c.l.bf16 %v426
      %v470 = vunpack.c.l.bf16 %v427
      %v471 = vunpack.c.l.bf16 %v467
      %v472 = vmul.f32 %v469, %v471
      %v473 = vmul.f32 %v470, %v471
      %v474 = vpack.c.bf16 %v472, %v472
      %v475 = vpack.c.bf16 %v473, %v473
      %v512 = vunpack.c.l.b16 %v450
      %v513 = vunpack.c.l.b16 %v451
      %v514 = vunpack.c.l.b16 %v394
      %v515 = vunpack.c.l.b16 %v395
      %v516 = vunpack.c.l.b16 %v396
      %v517 = vunpack.c.l.b16 %v397
      %v518 = vunpack.c.l.b16 %v398
      %v519 = vunpack.c.l.b16 %v399
      %v520 = vunpack.c.l.b16 %v400
      %v521 = vunpack.c.l.b16 %v401
      %v522 = vunpack.c.l.b16 %v402
      %v523 = vunpack.c.l.b16 %v403
      %v524 = vunpack.c.l.b16 %v404
      %v525 = vunpack.c.l.b16 %v405
      %v526 = vunpack.c.l.b16 %v406
      %v527 = vunpack.c.l.b16 %v407
      %v528 = vunpack.c.l.b16 %v408
      %v529 = vunpack.c.l.b16 %v409
      %v530 = vunpack.c.l.b16 %v410
      %v531 = vunpack.c.l.b16 %v411
      %v532 = vunpack.c.l.b16 %v412
      %v533 = vunpack.c.l.b16 %v413
      %v534 = vunpack.c.l.b16 %v414
      %v535 = vunpack.c.l.b16 %v415
      %v536 = vunpack.c.l.b16 %v416
      %v537 = vunpack.c.l.b16 %v417
      %v538 = vunpack.c.l.b16 %v418
      %v539 = vunpack.c.l.b16 %v419
      %v540 = vunpack.c.l.b16 %v420
      %v541 = vunpack.c.l.b16 %v421
      %v542 = vunpack.c.l.b16 %v422
      %v543 = vunpack.c.l.b16 %v423
      %v544 = vunpack.c.l.b16 %v424
      %v545 = vunpack.c.l.b16 %v425
      %v546 = vunpack.c.l.b16 %v474
      %v547 = vunpack.c.l.b16 %v475
      %v548 = vpack.c.b16 %v513, %v512
      %v549 = vpack.c.b16 %v515, %v514
      %v550 = vpack.c.b16 %v517, %v516
      %v551 = vpack.c.b16 %v519, %v518
      %v552 = vpack.c.b16 %v521, %v520
      %v553 = vpack.c.b16 %v523, %v522
      %v554 = vpack.c.b16 %v525, %v524
      %v555 = vpack.c.b16 %v527, %v526
      %v556 = vpack.c.b16 %v529, %v528
      %v557 = vpack.c.b16 %v531, %v530
      %v558 = vpack.c.b16 %v533, %v532
      %v559 = vpack.c.b16 %v535, %v534
      %v560 = vpack.c.b16 %v537, %v536
      %v561 = vpack.c.b16 %v539, %v538
      %v562 = vpack.c.b16 %v541, %v540
      %v563 = vpack.c.b16 %v543, %v542
      %v564 = vpack.c.b16 %v545, %v544
      %v565 = vpack.c.b16 %v547, %v546
      %v567 = vshrl.u32 %v548, 16
      %v569 = vrot.slane %v567, 7
      %v570 = vshll.u32 %v548, 16
      %v572 = vor.u32 %v569, %v570
      %v574 = vshrl.u32 %v549, 16
      %v576 = vrot.slane %v574, 7
      %v577 = vshll.u32 %v549, 16
      %v579 = vor.u32 %v576, %v577
      %v581 = vshrl.u32 %v550, 16
      %v583 = vrot.slane %v581, 7
      %v584 = vshll.u32 %v550, 16
      %v586 = vor.u32 %v583, %v584
      %v588 = vshrl.u32 %v551, 16
      %v590 = vrot.slane %v588, 7
      %v591 = vshll.u32 %v551, 16
      %v593 = vor.u32 %v590, %v591
      %v595 = vshrl.u32 %v552, 16
      %v597 = vrot.slane %v595, 7
      %v598 = vshll.u32 %v552, 16
      %v600 = vor.u32 %v597, %v598
      %v602 = vshrl.u32 %v553, 16
      %v604 = vrot.slane %v602, 7
      %v605 = vshll.u32 %v553, 16
      %v607 = vor.u32 %v604, %v605
      %v609 = vshrl.u32 %v554, 16
      %v611 = vrot.slane %v609, 7
      %v612 = vshll.u32 %v554, 16
      %v614 = vor.u32 %v611, %v612
      %v616 = vshrl.u32 %v555, 16
      %v618 = vrot.slane %v616, 7
      %v619 = vshll.u32 %v555, 16
      %v621 = vor.u32 %v618, %v619
      %v623 = vshrl.u32 %v556, 16
      %v625 = vrot.slane %v623, 7
      %v626 = vshll.u32 %v556, 16
      %v628 = vor.u32 %v625, %v626
      %v630 = vshrl.u32 %v557, 16
      %v632 = vrot.slane %v630, 7
      %v633 = vshll.u32 %v557, 16
      %v635 = vor.u32 %v632, %v633
      %v637 = vshrl.u32 %v558, 16
      %v639 = vrot.slane %v637, 7
      %v640 = vshll.u32 %v558, 16
      %v642 = vor.u32 %v639, %v640
      %v644 = vshrl.u32 %v559, 16
      %v646 = vrot.slane %v644, 7
      %v647 = vshll.u32 %v559, 16
      %v649 = vor.u32 %v646, %v647
      %v651 = vshrl.u32 %v560, 16
      %v653 = vrot.slane %v651, 7
      %v654 = vshll.u32 %v560, 16
      %v656 = vor.u32 %v653, %v654
      %v658 = vshrl.u32 %v561, 16
      %v660 = vrot.slane %v658, 7
      %v661 = vshll.u32 %v561, 16
      %v663 = vor.u32 %v660, %v661
      %v665 = vshrl.u32 %v562, 16
      %v667 = vrot.slane %v665, 7
      %v668 = vshll.u32 %v562, 16
      %v670 = vor.u32 %v667, %v668
      %v672 = vshrl.u32 %v563, 16
      %v674 = vrot.slane %v672, 7
      %v675 = vshll.u32 %v563, 16
      %v677 = vor.u32 %v674, %v675
      %v679 = vshrl.u32 %v564, 16
      %v681 = vrot.slane %v679, 7
      %v682 = vshll.u32 %v564, 16
      %v684 = vor.u32 %v681, %v682
      %v686 = vshrl.u32 %v565, 16
      %v688 = vrot.slane %v686, 7
      %v689 = vshll.u32 %v565, 16
      %v691 = vor.u32 %v688, %v689
      %vm710 = vcmask 1040384
      %vm711 = vsmask.f32 256
      %vm712 = vmand %vm710, %vm711
      %v713 = vsel %vm712, 0, %v572
      %v714 = vsel %vm712, 0, %v579
      %v715 = vsel %vm712, 0, %v586
      %v716 = vsel %vm712, 0, %v593
      %v717 = vsel %vm712, 0, %v600
      %v718 = vsel %vm712, 0, %v607
      %v719 = vsel %vm712, 0, %v614
      %v720 = vsel %vm712, 0, %v621
      %v721 = vsel %vm712, 0, %v628
      %v722 = vsel %vm712, 0, %v635
      %v723 = vsel %vm712, 0, %v642
      %v724 = vsel %vm712, 0, %v649
      %v725 = vsel %vm712, 0, %v656
      %v726 = vsel %vm712, 0, %v663
      %v727 = vsel %vm712, 0, %v670
      %v728 = vsel %vm712, 0, %v677
      %v729 = vsel %vm712, 0, %v684
      %v730 = vsel %vm712, 0, %v691
      %v731 = vrot.slane %v570, 1
      %v732 = vor.u32 %v567, %v731
      %v733 = vrot.slane %v577, 1
      %v734 = vor.u32 %v574, %v733
      %v735 = vrot.slane %v584, 1
      %v736 = vor.u32 %v581, %v735
      %v737 = vrot.slane %v591, 1
      %v738 = vor.u32 %v588, %v737
      %v739 = vrot.slane %v598, 1
      %v740 = vor.u32 %v595, %v739
      %v741 = vrot.slane %v605, 1
      %v742 = vor.u32 %v602, %v741
      %v743 = vrot.slane %v612, 1
      %v744 = vor.u32 %v609, %v743
      %v745 = vrot.slane %v619, 1
      %v746 = vor.u32 %v616, %v745
      %v747 = vrot.slane %v626, 1
      %v748 = vor.u32 %v623, %v747
      %v749 = vrot.slane %v633, 1
      %v750 = vor.u32 %v630, %v749
      %v751 = vrot.slane %v640, 1
      %v752 = vor.u32 %v637, %v751
      %v753 = vrot.slane %v647, 1
      %v754 = vor.u32 %v644, %v753
      %v755 = vrot.slane %v654, 1
      %v756 = vor.u32 %v651, %v755
      %v757 = vrot.slane %v661, 1
      %v758 = vor.u32 %v658, %v757
      %v759 = vrot.slane %v668, 1
      %v760 = vor.u32 %v665, %v759
      %v761 = vrot.slane %v675, 1
      %v762 = vor.u32 %v672, %v761
      %v763 = vrot.slane %v682, 1
      %v764 = vor.u32 %v679, %v763
      %v765 = vrot.slane %v689, 1
      %v766 = vor.u32 %v686, %v765
      %vm785 = vcmask 1047552
      %vm786 = vsmask.f32 7424
      %vm787 = vmand %vm785, %vm786
      %v788 = vsel %vm787, %v732, 0
      %v789 = vsel %vm787, %v734, 0
      %v790 = vsel %vm787, %v736, 0
      %v791 = vsel %vm787, %v738, 0
      %v792 = vsel %vm787, %v740, 0
      %v793 = vsel %vm787, %v742, 0
      %v794 = vsel %vm787, %v744, 0
      %v795 = vsel %vm787, %v746, 0
      %v796 = vsel %vm787, %v748, 0
      %v797 = vsel %vm787, %v750, 0
      %v798 = vsel %vm787, %v752, 0
      %v799 = vsel %vm787, %v754, 0
      %v800 = vsel %vm787, %v756, 0
      %v801 = vsel %vm787, %v758, 0
      %v802 = vsel %vm787, %v760, 0
      %v803 = vsel %vm787, %v762, 0
      %v804 = vsel %vm787, %v764, 0
      %v805 = vsel %vm787, %v766, 0
      %806 = vrot.lane.b32.xlu0 %v548, 64
      %v807 = vpop.permute.xlu0 %806
      %808 = vrot.lane.b32.xlu0 %v549, 64
      %v809 = vpop.permute.xlu0 %808
      %810 = vrot.lane.b32.xlu0 %v550, 64
      %v811 = vpop.permute.xlu0 %810
      %812 = vrot.lane.b32.xlu0 %v551, 64
      %v813 = vpop.permute.xlu0 %812
      %814 = vrot.lane.b32.xlu0 %v552, 64
      %v815 = vpop.permute.xlu0 %814
      %816 = vrot.lane.b32.xlu0 %v553, 64
      %v817 = vpop.permute.xlu0 %816
      %818 = vrot.lane.b32.xlu0 %v554, 64
      %v819 = vpop.permute.xlu0 %818
      %820 = vrot.lane.b32.xlu0 %v555, 64
      %v821 = vpop.permute.xlu0 %820
      %822 = vrot.lane.b32.xlu0 %v556, 64
      %v823 = vpop.permute.xlu0 %822
      %824 = vrot.lane.b32.xlu0 %v557, 64
      %v825 = vpop.permute.xlu0 %824
      %826 = vrot.lane.b32.xlu0 %v558, 64
      %v827 = vpop.permute.xlu0 %826
      %828 = vrot.lane.b32.xlu0 %v559, 64
      %v829 = vpop.permute.xlu0 %828
      %830 = vrot.lane.b32.xlu0 %v560, 64
      %v831 = vpop.permute.xlu0 %830
      %832 = vrot.lane.b32.xlu0 %v561, 64
      %v833 = vpop.permute.xlu0 %832
      %834 = vrot.lane.b32.xlu0 %v562, 64
      %v835 = vpop.permute.xlu0 %834
      %836 = vrot.lane.b32.xlu0 %v563, 64
      %v837 = vpop.permute.xlu0 %836
      %838 = vrot.lane.b32.xlu0 %v564, 64
      %v839 = vpop.permute.xlu0 %838
      %840 = vrot.lane.b32.xlu0 %v565, 64
      %v841 = vpop.permute.xlu0 %840
      %vm842 = vcmask 523264
      %v845 = vsel %vm842, %v713, %v807
      %v849 = vsel %vm842, %v714, %v809
      %v853 = vsel %vm842, %v715, %v811
      %v857 = vsel %vm842, %v716, %v813
      %v861 = vsel %vm842, %v717, %v815
      %v865 = vsel %vm842, %v718, %v817
      %v869 = vsel %vm842, %v719, %v819
      %v873 = vsel %vm842, %v720, %v821
      %v877 = vsel %vm842, %v721, %v823
      %v881 = vsel %vm842, %v722, %v825
      %v885 = vsel %vm842, %v723, %v827
      %v889 = vsel %vm842, %v724, %v829
      %v893 = vsel %vm842, %v725, %v831
      %v897 = vsel %vm842, %v726, %v833
      %v901 = vsel %vm842, %v727, %v835
      %v905 = vsel %vm842, %v728, %v837
      %v909 = vsel %vm842, %v729, %v839
      %v913 = vsel %vm842, %v730, %v841
      %v915 = vld [vmem:[%s3] sm:$0xf]
      %v916 = vld [vmem:[%s3 + $0x4] sm:$0xf]
      %v917 = vld [vmem:[%s3 + $0x8] sm:$0xf]
      %v918 = vld [vmem:[%s3 + $0xc] sm:$0xf]
      %v919 = vld [vmem:[%s3 + $0x10] sm:$0xf]
      %v920 = vld [vmem:[%s3 + $0x14] sm:$0xf]
      %v921 = vld [vmem:[%s3 + $0x18] sm:$0xf]
      %v922 = vld [vmem:[%s3 + $0x1c] sm:$0xf]
      %v923 = vld [vmem:[%s3 + $0x20] sm:$0xf]
      %v924 = vld [vmem:[%s3 + $0x24] sm:$0xf]
      %v925 = vld [vmem:[%s3 + $0x28] sm:$0xf]
      %v926 = vld [vmem:[%s3 + $0x2c] sm:$0xf]
      %v927 = vld [vmem:[%s3 + $0x30] sm:$0xf]
      %v928 = vld [vmem:[%s3 + $0x34] sm:$0xf]
      %v929 = vld [vmem:[%s3 + $0x38] sm:$0xf]
      %v930 = vld [vmem:[%s3 + $0x3c] sm:$0xf]
      %v931 = vld [vmem:[%s3 + $0x40] sm:$0xf]
      %v932 = vld [vmem:[%s3 + $0x44] sm:$0xf]
      %v933 = vld [vmem:[%s3 + $0x48] sm:$0xf]
      %v934 = vld [vmem:[%s3 + $0x4c] sm:$0xf]
      %v935 = vld [vmem:[%s3 + $0x50] sm:$0xf]
      %v936 = vld [vmem:[%s3 + $0x54] sm:$0xf]
      %v937 = vld [vmem:[%s3 + $0x58] sm:$0xf]
      %v938 = vld [vmem:[%s3 + $0x5c] sm:$0xf]
      %s939 = scalar_lea.vmem %s3, 96
      %v940 = vld [vmem:[%s939] sm:$0xf]
      %v941 = vld [vmem:[%s939 + $0x4] sm:$0xf]
      %v942 = vld [vmem:[%s939 + $0x8] sm:$0xf]
      %v943 = vld [vmem:[%s939 + $0xc] sm:$0xf]
      %v944 = vld [vmem:[%s939 + $0x10] sm:$0xf]
      %v945 = vld [vmem:[%s939 + $0x14] sm:$0xf]
      %v946 = vld [vmem:[%s939 + $0x18] sm:$0xf]
      %v947 = vld [vmem:[%s939 + $0x1c] sm:$0xf]
      %v948 = vld [vmem:[%s939 + $0x20] sm:$0xf]
      %v949 = vld [vmem:[%s939 + $0x24] sm:$0xf]
      %v950 = vld [vmem:[%s939 + $0x28] sm:$0xf]
      %v951 = vld [vmem:[%s939 + $0x2c] sm:$0xf]
      %v952 = vld [vmem:[%s939 + $0x30] sm:$0xf]
      %v953 = vld [vmem:[%s939 + $0x34] sm:$0xf]
      %v954 = vld [vmem:[%s939 + $0x38] sm:$0xf]
      %v955 = vld [vmem:[%s939 + $0x3c] sm:$0xf]
      %v956 = vld [vmem:[%s939 + $0x40] sm:$0xf]
      %v957 = vld [vmem:[%s939 + $0x44] sm:$0xf]
      %v958 = vld [vmem:[%s939 + $0x48] sm:$0xf]
      %v959 = vld [vmem:[%s939 + $0x4c] sm:$0xf]
      %v960 = vld [vmem:[%s939 + $0x50] sm:$0xf]
      %v961 = vld [vmem:[%s939 + $0x54] sm:$0xf]
      %v962 = vld [vmem:[%s939 + $0x58] sm:$0xf]
      %v963 = vld [vmem:[%s939 + $0x5c] sm:$0xf]
      %v988 = vunpack.c.l.b16 %v940
      %v989 = vunpack.c.l.b16 %v941
      %v990 = vunpack.c.l.b16 %v942
      %v991 = vunpack.c.l.b16 %v943
      %v992 = vunpack.c.l.b16 %v944
      %v993 = vunpack.c.l.b16 %v945
      %v994 = vunpack.c.l.b16 %v946
      %v995 = vunpack.c.l.b16 %v947
      %v996 = vunpack.c.l.b16 %v948
      %v997 = vunpack.c.l.b16 %v949
      %v998 = vunpack.c.l.b16 %v950
      %v999 = vunpack.c.l.b16 %v951
      %v1000 = vunpack.c.l.b16 %v952
      %v1001 = vunpack.c.l.b16 %v953
      %v1002 = vunpack.c.l.b16 %v954
      %v1003 = vunpack.c.l.b16 %v955
      %v1004 = vunpack.c.l.b16 %v956
      %v1005 = vunpack.c.l.b16 %v957
      %v1006 = vunpack.c.l.b16 %v958
      %v1007 = vunpack.c.l.b16 %v959
      %v1008 = vunpack.c.l.b16 %v960
      %v1009 = vunpack.c.l.b16 %v961
      %v1010 = vunpack.c.l.b16 %v962
      %v1011 = vunpack.c.l.b16 %v963
      %v1012 = vpack.c.b16 %v989, %v988
      %v1013 = vpack.c.b16 %v991, %v990
      %v1014 = vpack.c.b16 %v993, %v992
      %v1015 = vpack.c.b16 %v995, %v994
      %v1016 = vpack.c.b16 %v997, %v996
      %v1017 = vpack.c.b16 %v999, %v998
      %v1018 = vpack.c.b16 %v1001, %v1000
      %v1019 = vpack.c.b16 %v1003, %v1002
      %v1020 = vpack.c.b16 %v1005, %v1004
      %v1021 = vpack.c.b16 %v1007, %v1006
      %v1022 = vpack.c.b16 %v1009, %v1008
      %v1023 = vpack.c.b16 %v1011, %v1010
      %v1037 = vsel %vm842, %v789, 0
      %v1040 = vsel %vm842, %v790, 0
      %v1043 = vsel %vm842, %v791, 0
      %v1046 = vsel %vm842, %v792, 0
      %v1049 = vsel %vm842, %v793, 0
      %v1052 = vsel %vm842, %v794, 0
      %v1055 = vsel %vm842, %v795, 0
      %v1058 = vsel %vm842, %v796, 0
      %v1061 = vsel %vm842, %v797, 0
      %v1064 = vsel %vm842, %v798, 0
      %v1067 = vsel %vm842, %v799, 0
      %v1070 = vsel %vm842, %v800, 0
      %v1073 = vsel %vm842, %v801, 0
      %v1076 = vsel %vm842, %v802, 0
      %v1079 = vsel %vm842, %v803, 0
      %v1082 = vsel %vm842, %v804, 0
      %1084 = vmatpush.bf16.msra.mxu0 %v1019
      %1085 = vmatpush.bf16.msra.mxu0 %v1018
      %1086 = vmatpush.bf16.msra.mxu0 %v1017
      %1087 = vmatpush.bf16.msra.mxu0 %v1016
      %1088 = vmatpush.bf16.msra.mxu0 %v1015
      %1089 = vmatpush.bf16.msra.mxu0 %v1014
      %1090 = vmatpush.bf16.msra.mxu0 %v1013
      %1091 = vmatpush.bf16.msra.mxu0 %v1012
      %1092 = vmatmul.bf16.gmra.mxu0 %v849
      %v1093 = vpop.f32.mrf.mxu0
      %v1094 = vadd.f32 0.0, %v1093
      %v1095 = vpop.f32.mrf.mxu0
      %v1096 = vadd.f32 0.0, %v1095
      %1097 = vmatmul.bf16.gmra.mxu0 %v853
      %v1098 = vpop.f32.mrf.mxu0
      %v1099 = vadd.f32 0.0, %v1098
      %v1100 = vpop.f32.mrf.mxu0
      %v1101 = vadd.f32 0.0, %v1100
      %1102 = vmatmul.bf16.gmra.mxu0 %v857
      %v1103 = vpop.f32.mrf.mxu0
      %v1104 = vadd.f32 0.0, %v1103
      %v1105 = vpop.f32.mrf.mxu0
      %v1106 = vadd.f32 0.0, %v1105
      %1107 = vmatmul.bf16.gmra.mxu0 %v861
      %v1108 = vpop.f32.mrf.mxu0
      %v1109 = vadd.f32 0.0, %v1108
      %v1110 = vpop.f32.mrf.mxu0
      %v1111 = vadd.f32 0.0, %v1110
      %1112 = vmatmul.bf16.gmra.mxu0 %v865
      %v1113 = vpop.f32.mrf.mxu0
      %v1114 = vadd.f32 0.0, %v1113
      %v1115 = vpop.f32.mrf.mxu0
      %v1116 = vadd.f32 0.0, %v1115
      %1117 = vmatmul.bf16.gmra.mxu0 %v869
      %v1118 = vpop.f32.mrf.mxu0
      %v1119 = vadd.f32 0.0, %v1118
      %v1120 = vpop.f32.mrf.mxu0
      %v1121 = vadd.f32 0.0, %v1120
      %1122 = vmatmul.bf16.gmra.mxu0 %v873
      %v1123 = vpop.f32.mrf.mxu0
      %v1124 = vadd.f32 0.0, %v1123
      %v1125 = vpop.f32.mrf.mxu0
      %v1126 = vadd.f32 0.0, %v1125
      %1127 = vmatmul.bf16.gmra.mxu0 %v877
      %v1128 = vpop.f32.mrf.mxu0
      %v1129 = vadd.f32 0.0, %v1128
      %v1130 = vpop.f32.mrf.mxu0
      %v1131 = vadd.f32 0.0, %v1130
      %1132 = vmatmul.bf16.gmra.mxu0 %v881
      %v1133 = vpop.f32.mrf.mxu0
      %v1134 = vadd.f32 0.0, %v1133
      %v1135 = vpop.f32.mrf.mxu0
      %v1136 = vadd.f32 0.0, %v1135
      %1137 = vmatmul.bf16.gmra.mxu0 %v885
      %v1138 = vpop.f32.mrf.mxu0
      %v1139 = vadd.f32 0.0, %v1138
      %v1140 = vpop.f32.mrf.mxu0
      %v1141 = vadd.f32 0.0, %v1140
      %1142 = vmatmul.bf16.gmra.mxu0 %v889
      %v1143 = vpop.f32.mrf.mxu0
      %v1144 = vadd.f32 0.0, %v1143
      %v1145 = vpop.f32.mrf.mxu0
      %v1146 = vadd.f32 0.0, %v1145
      %1147 = vmatmul.bf16.gmra.mxu0 %v893
      %v1148 = vpop.f32.mrf.mxu0
      %v1149 = vadd.f32 0.0, %v1148
      %v1150 = vpop.f32.mrf.mxu0
      %v1151 = vadd.f32 0.0, %v1150
      %1152 = vmatmul.bf16.gmra.mxu0 %v897
      %v1153 = vpop.f32.mrf.mxu0
      %v1154 = vadd.f32 0.0, %v1153
      %v1155 = vpop.f32.mrf.mxu0
      %v1156 = vadd.f32 0.0, %v1155
      %1157 = vmatmul.bf16.gmra.mxu0 %v901
      %v1158 = vpop.f32.mrf.mxu0
      %v1159 = vadd.f32 0.0, %v1158
      %v1160 = vpop.f32.mrf.mxu0
      %v1161 = vadd.f32 0.0, %v1160
      %1162 = vmatmul.bf16.gmra.mxu0 %v905
      %v1163 = vpop.f32.mrf.mxu0
      %v1164 = vadd.f32 0.0, %v1163
      %v1165 = vpop.f32.mrf.mxu0
      %v1166 = vadd.f32 0.0, %v1165
      %1167 = vmatmul.bf16.gmra.mxu0 %v909
      %v1168 = vpop.f32.mrf.mxu0
      %v1169 = vadd.f32 0.0, %v1168
      %v1170 = vpop.f32.mrf.mxu0
      %v1171 = vadd.f32 0.0, %v1170
      %1172 = vdwg.mxu0
      %1173 = vmatpush.bf16.msra.mxu0 0
      %1174 = vmatpush.bf16.msra.mxu0 0
      %1175 = vmatpush.bf16.msra.mxu0 0
      %1176 = vmatpush.bf16.msra.mxu0 0
      %1177 = vmatpush.bf16.msra.mxu0 %v1023
      %1178 = vmatpush.bf16.msra.mxu0 %v1022
      %1179 = vmatpush.bf16.msra.mxu0 %v1021
      %1180 = vmatpush.bf16.msra.mxu0 %v1020
      %1181 = vmatmul.bf16.gmra.mxu0 %v1037
      %v1182 = vpop.f32.mrf.mxu0
      %v1183 = vadd.f32 %v1094, %v1182
      %v1184 = vpop.f32.mrf.mxu0
      %v1185 = vadd.f32 %v1096, %v1184
      %1186 = vmatmul.bf16.gmra.mxu0 %v1040
      %v1187 = vpop.f32.mrf.mxu0
      %v1188 = vadd.f32 %v1099, %v1187
      %v1189 = vpop.f32.mrf.mxu0
      %v1190 = vadd.f32 %v1101, %v1189
      %1191 = vmatmul.bf16.gmra.mxu0 %v1043
      %v1192 = vpop.f32.mrf.mxu0
      %v1193 = vadd.f32 %v1104, %v1192
      %v1194 = vpop.f32.mrf.mxu0
      %v1195 = vadd.f32 %v1106, %v1194
      %1196 = vmatmul.bf16.gmra.mxu0 %v1046
      %v1197 = vpop.f32.mrf.mxu0
      %v1198 = vadd.f32 %v1109, %v1197
      %v1199 = vpop.f32.mrf.mxu0
      %v1200 = vadd.f32 %v1111, %v1199
      %1201 = vmatmul.bf16.gmra.mxu0 %v1049
      %v1202 = vpop.f32.mrf.mxu0
      %v1203 = vadd.f32 %v1114, %v1202
      %v1204 = vpop.f32.mrf.mxu0
      %v1205 = vadd.f32 %v1116, %v1204
      %1206 = vmatmul.bf16.gmra.mxu0 %v1052
      %v1207 = vpop.f32.mrf.mxu0
      %v1208 = vadd.f32 %v1119, %v1207
      %v1209 = vpop.f32.mrf.mxu0
      %v1210 = vadd.f32 %v1121, %v1209
      %1211 = vmatmul.bf16.gmra.mxu0 %v1055
      %v1212 = vpop.f32.mrf.mxu0
      %v1213 = vadd.f32 %v1124, %v1212
      %v1214 = vpop.f32.mrf.mxu0
      %v1215 = vadd.f32 %v1126, %v1214
      %1216 = vmatmul.bf16.gmra.mxu0 %v1058
      %v1217 = vpop.f32.mrf.mxu0
      %v1218 = vadd.f32 %v1129, %v1217
      %v1219 = vpop.f32.mrf.mxu0
      %v1220 = vadd.f32 %v1131, %v1219
      %1221 = vmatmul.bf16.gmra.mxu0 %v1061
      %v1222 = vpop.f32.mrf.mxu0
      %v1223 = vadd.f32 %v1134, %v1222
      %v1224 = vpop.f32.mrf.mxu0
      %v1225 = vadd.f32 %v1136, %v1224
      %1226 = vmatmul.bf16.gmra.mxu0 %v1064
      %v1227 = vpop.f32.mrf.mxu0
      %v1228 = vadd.f32 %v1139, %v1227
      %v1229 = vpop.f32.mrf.mxu0
      %v1230 = vadd.f32 %v1141, %v1229
      %1231 = vmatmul.bf16.gmra.mxu0 %v1067
      %v1232 = vpop.f32.mrf.mxu0
      %v1233 = vadd.f32 %v1144, %v1232
      %v1234 = vpop.f32.mrf.mxu0
      %v1235 = vadd.f32 %v1146, %v1234
      %1236 = vmatmul.bf16.gmra.mxu0 %v1070
      %v1237 = vpop.f32.mrf.mxu0
      %v1238 = vadd.f32 %v1149, %v1237
      %v1239 = vpop.f32.mrf.mxu0
      %v1240 = vadd.f32 %v1151, %v1239
      %1241 = vmatmul.bf16.gmra.mxu0 %v1073
      %v1242 = vpop.f32.mrf.mxu0
      %v1243 = vadd.f32 %v1154, %v1242
      %v1244 = vpop.f32.mrf.mxu0
      %v1245 = vadd.f32 %v1156, %v1244
      %1246 = vmatmul.bf16.gmra.mxu0 %v1076
      %v1247 = vpop.f32.mrf.mxu0
      %v1248 = vadd.f32 %v1159, %v1247
      %v1249 = vpop.f32.mrf.mxu0
      %v1250 = vadd.f32 %v1161, %v1249
      %1251 = vmatmul.bf16.gmra.mxu0 %v1079
      %v1252 = vpop.f32.mrf.mxu0
      %v1253 = vadd.f32 %v1164, %v1252
      %v1254 = vpop.f32.mrf.mxu0
      %v1255 = vadd.f32 %v1166, %v1254
      %1256 = vmatmul.bf16.gmra.mxu0 %v1082
      %v1257 = vpop.f32.mrf.mxu0
      %v1258 = vadd.f32 %v1169, %v1257
      %v1259 = vpop.f32.mrf.mxu0
      %v1260 = vadd.f32 %v1171, %v1259
      %1261 = vdwg.mxu0
      %v1286 = vunpack.c.l.b16 %v915
      %v1287 = vunpack.c.l.b16 %v916
      %v1288 = vunpack.c.l.b16 %v917
      %v1289 = vunpack.c.l.b16 %v918
      %v1290 = vunpack.c.l.b16 %v919
      %v1291 = vunpack.c.l.b16 %v920
      %v1292 = vunpack.c.l.b16 %v921
      %v1293 = vunpack.c.l.b16 %v922
      %v1294 = vunpack.c.l.b16 %v923
      %v1295 = vunpack.c.l.b16 %v924
      %v1296 = vunpack.c.l.b16 %v925
      %v1297 = vunpack.c.l.b16 %v926
      %v1298 = vunpack.c.l.b16 %v927
      %v1299 = vunpack.c.l.b16 %v928
      %v1300 = vunpack.c.l.b16 %v929
      %v1301 = vunpack.c.l.b16 %v930
      %v1302 = vunpack.c.l.b16 %v931
      %v1303 = vunpack.c.l.b16 %v932
      %v1304 = vunpack.c.l.b16 %v933
      %v1305 = vunpack.c.l.b16 %v934
      %v1306 = vunpack.c.l.b16 %v935
      %v1307 = vunpack.c.l.b16 %v936
      %v1308 = vunpack.c.l.b16 %v937
      %v1309 = vunpack.c.l.b16 %v938
      %v1310 = vpack.c.b16 %v1287, %v1286
      %v1311 = vpack.c.b16 %v1289, %v1288
      %v1312 = vpack.c.b16 %v1291, %v1290
      %v1313 = vpack.c.b16 %v1293, %v1292
      %v1314 = vpack.c.b16 %v1295, %v1294
      %v1315 = vpack.c.b16 %v1297, %v1296
      %v1316 = vpack.c.b16 %v1299, %v1298
      %v1317 = vpack.c.b16 %v1301, %v1300
      %v1318 = vpack.c.b16 %v1303, %v1302
      %v1319 = vpack.c.b16 %v1305, %v1304
      %v1320 = vpack.c.b16 %v1307, %v1306
      %v1321 = vpack.c.b16 %v1309, %v1308
      %v1335 = vsel %vm842, %v788, 0
      %1337 = vmatpush.bf16.msra.mxu0 %v1317
      %1338 = vmatpush.bf16.msra.mxu0 %v1316
      %1339 = vmatpush.bf16.msra.mxu0 %v1315
      %1340 = vmatpush.bf16.msra.mxu0 %v1314
      %1341 = vmatpush.bf16.msra.mxu0 %v1313
      %1342 = vmatpush.bf16.msra.mxu0 %v1312
      %1343 = vmatpush.bf16.msra.mxu0 %v1311
      %1344 = vmatpush.bf16.msra.mxu0 %v1310
      %1345 = vmatmul.bf16.gmra.mxu0 %v845
      %v1346 = vpop.f32.mrf.mxu0
      %v1347 = vadd.f32 %v1183, %v1346
      %v1348 = vpop.f32.mrf.mxu0
      %v1349 = vadd.f32 %v1185, %v1348
      %1350 = vmatmul.bf16.gmra.mxu0 %v849
      %v1351 = vpop.f32.mrf.mxu0
      %v1352 = vadd.f32 %v1188, %v1351
      %v1353 = vpop.f32.mrf.mxu0
      %v1354 = vadd.f32 %v1190, %v1353
      %1355 = vmatmul.bf16.gmra.mxu0 %v853
      %v1356 = vpop.f32.mrf.mxu0
      %v1357 = vadd.f32 %v1193, %v1356
      %v1358 = vpop.f32.mrf.mxu0
      %v1359 = vadd.f32 %v1195, %v1358
      %1360 = vmatmul.bf16.gmra.mxu0 %v857
      %v1361 = vpop.f32.mrf.mxu0
      %v1362 = vadd.f32 %v1198, %v1361
      %v1363 = vpop.f32.mrf.mxu0
      %v1364 = vadd.f32 %v1200, %v1363
      %1365 = vmatmul.bf16.gmra.mxu0 %v861
      %v1366 = vpop.f32.mrf.mxu0
      %v1367 = vadd.f32 %v1203, %v1366
      %v1368 = vpop.f32.mrf.mxu0
      %v1369 = vadd.f32 %v1205, %v1368
      %1370 = vmatmul.bf16.gmra.mxu0 %v865
      %v1371 = vpop.f32.mrf.mxu0
      %v1372 = vadd.f32 %v1208, %v1371
      %v1373 = vpop.f32.mrf.mxu0
      %v1374 = vadd.f32 %v1210, %v1373
      %1375 = vmatmul.bf16.gmra.mxu0 %v869
      %v1376 = vpop.f32.mrf.mxu0
      %v1377 = vadd.f32 %v1213, %v1376
      %v1378 = vpop.f32.mrf.mxu0
      %v1379 = vadd.f32 %v1215, %v1378
      %1380 = vmatmul.bf16.gmra.mxu0 %v873
      %v1381 = vpop.f32.mrf.mxu0
      %v1382 = vadd.f32 %v1218, %v1381
      %v1383 = vpop.f32.mrf.mxu0
      %v1384 = vadd.f32 %v1220, %v1383
      %1385 = vmatmul.bf16.gmra.mxu0 %v877
      %v1386 = vpop.f32.mrf.mxu0
      %v1387 = vadd.f32 %v1223, %v1386
      %v1388 = vpop.f32.mrf.mxu0
      %v1389 = vadd.f32 %v1225, %v1388
      %1390 = vmatmul.bf16.gmra.mxu0 %v881
      %v1391 = vpop.f32.mrf.mxu0
      %v1392 = vadd.f32 %v1228, %v1391
      %v1393 = vpop.f32.mrf.mxu0
      %v1394 = vadd.f32 %v1230, %v1393
      %1395 = vmatmul.bf16.gmra.mxu0 %v885
      %v1396 = vpop.f32.mrf.mxu0
      %v1397 = vadd.f32 %v1233, %v1396
      %v1398 = vpop.f32.mrf.mxu0
      %v1399 = vadd.f32 %v1235, %v1398
      %1400 = vmatmul.bf16.gmra.mxu0 %v889
      %v1401 = vpop.f32.mrf.mxu0
      %v1402 = vadd.f32 %v1238, %v1401
      %v1403 = vpop.f32.mrf.mxu0
      %v1404 = vadd.f32 %v1240, %v1403
      %1405 = vmatmul.bf16.gmra.mxu0 %v893
      %v1406 = vpop.f32.mrf.mxu0
      %v1407 = vadd.f32 %v1243, %v1406
      %v1408 = vpop.f32.mrf.mxu0
      %v1409 = vadd.f32 %v1245, %v1408
      %1410 = vmatmul.bf16.gmra.mxu0 %v897
      %v1411 = vpop.f32.mrf.mxu0
      %v1412 = vadd.f32 %v1248, %v1411
      %v1413 = vpop.f32.mrf.mxu0
      %v1414 = vadd.f32 %v1250, %v1413
      %1415 = vmatmul.bf16.gmra.mxu0 %v901
      %v1416 = vpop.f32.mrf.mxu0
      %v1417 = vadd.f32 %v1253, %v1416
      %v1418 = vpop.f32.mrf.mxu0
      %v1419 = vadd.f32 %v1255, %v1418
      %1420 = vmatmul.bf16.gmra.mxu0 %v905
      %v1421 = vpop.f32.mrf.mxu0
      %v1422 = vadd.f32 %v1258, %v1421
      %v1423 = vpop.f32.mrf.mxu0
      %v1424 = vadd.f32 %v1260, %v1423
      %1425 = vdwg.mxu0
      %1426 = vmatpush.bf16.msra.mxu0 0
      %1427 = vmatpush.bf16.msra.mxu0 0
      %1428 = vmatpush.bf16.msra.mxu0 0
      %1429 = vmatpush.bf16.msra.mxu0 0
      %1430 = vmatpush.bf16.msra.mxu0 %v1321
      %1431 = vmatpush.bf16.msra.mxu0 %v1320
      %1432 = vmatpush.bf16.msra.mxu0 %v1319
      %1433 = vmatpush.bf16.msra.mxu0 %v1318
      %1434 = vmatmul.bf16.gmra.mxu0 %v1335
      %v1435 = vpop.f32.mrf.mxu0
      %v1436 = vadd.f32 %v1347, %v1435
      %v1437 = vpop.f32.mrf.mxu0
      %v1438 = vadd.f32 %v1349, %v1437
      %1439 = vmatmul.bf16.gmra.mxu0 %v1037
      %v1440 = vpop.f32.mrf.mxu0
      %v1441 = vadd.f32 %v1352, %v1440
      %v1442 = vpop.f32.mrf.mxu0
      %v1443 = vadd.f32 %v1354, %v1442
      %1444 = vmatmul.bf16.gmra.mxu0 %v1040
      %v1445 = vpop.f32.mrf.mxu0
      %v1446 = vadd.f32 %v1357, %v1445
      %v1447 = vpop.f32.mrf.mxu0
      %v1448 = vadd.f32 %v1359, %v1447
      %1449 = vmatmul.bf16.gmra.mxu0 %v1043
      %v1450 = vpop.f32.mrf.mxu0
      %v1451 = vadd.f32 %v1362, %v1450
      %v1452 = vpop.f32.mrf.mxu0
      %v1453 = vadd.f32 %v1364, %v1452
      %1454 = vmatmul.bf16.gmra.mxu0 %v1046
      %v1455 = vpop.f32.mrf.mxu0
      %v1456 = vadd.f32 %v1367, %v1455
      %v1457 = vpop.f32.mrf.mxu0
      %v1458 = vadd.f32 %v1369, %v1457
      %1459 = vmatmul.bf16.gmra.mxu0 %v1049
      %v1460 = vpop.f32.mrf.mxu0
      %v1461 = vadd.f32 %v1372, %v1460
      %v1462 = vpop.f32.mrf.mxu0
      %v1463 = vadd.f32 %v1374, %v1462
      %1464 = vmatmul.bf16.gmra.mxu0 %v1052
      %v1465 = vpop.f32.mrf.mxu0
      %v1466 = vadd.f32 %v1377, %v1465
      %v1467 = vpop.f32.mrf.mxu0
      %v1468 = vadd.f32 %v1379, %v1467
      %1469 = vmatmul.bf16.gmra.mxu0 %v1055
      %v1470 = vpop.f32.mrf.mxu0
      %v1471 = vadd.f32 %v1382, %v1470
      %v1472 = vpop.f32.mrf.mxu0
      %v1473 = vadd.f32 %v1384, %v1472
      %1474 = vmatmul.bf16.gmra.mxu0 %v1058
      %v1475 = vpop.f32.mrf.mxu0
      %v1476 = vadd.f32 %v1387, %v1475
      %v1477 = vpop.f32.mrf.mxu0
      %v1478 = vadd.f32 %v1389, %v1477
      %1479 = vmatmul.bf16.gmra.mxu0 %v1061
      %v1480 = vpop.f32.mrf.mxu0
      %v1481 = vadd.f32 %v1392, %v1480
      %v1482 = vpop.f32.mrf.mxu0
      %v1483 = vadd.f32 %v1394, %v1482
      %1484 = vmatmul.bf16.gmra.mxu0 %v1064
      %v1485 = vpop.f32.mrf.mxu0
      %v1486 = vadd.f32 %v1397, %v1485
      %v1487 = vpop.f32.mrf.mxu0
      %v1488 = vadd.f32 %v1399, %v1487
      %1489 = vmatmul.bf16.gmra.mxu0 %v1067
      %v1490 = vpop.f32.mrf.mxu0
      %v1491 = vadd.f32 %v1402, %v1490
      %v1492 = vpop.f32.mrf.mxu0
      %v1493 = vadd.f32 %v1404, %v1492
      %1494 = vmatmul.bf16.gmra.mxu0 %v1070
      %v1495 = vpop.f32.mrf.mxu0
      %v1496 = vadd.f32 %v1407, %v1495
      %v1497 = vpop.f32.mrf.mxu0
      %v1498 = vadd.f32 %v1409, %v1497
      %1499 = vmatmul.bf16.gmra.mxu0 %v1073
      %v1500 = vpop.f32.mrf.mxu0
      %v1501 = vadd.f32 %v1412, %v1500
      %v1502 = vpop.f32.mrf.mxu0
      %v1503 = vadd.f32 %v1414, %v1502
      %1504 = vmatmul.bf16.gmra.mxu0 %v1076
      %v1505 = vpop.f32.mrf.mxu0
      %v1506 = vadd.f32 %v1417, %v1505
      %v1507 = vpop.f32.mrf.mxu0
      %v1508 = vadd.f32 %v1419, %v1507
      %1509 = vmatmul.bf16.gmra.mxu0 %v1079
      %v1510 = vpop.f32.mrf.mxu0
      %v1511 = vadd.f32 %v1422, %v1510
      %v1512 = vpop.f32.mrf.mxu0
      %v1513 = vadd.f32 %v1424, %v1512
      %1514 = vdwg.mxu0
      %s1515 = scalar_lea.vmem %s3, 192
      %v1516 = vld [vmem:[%s1515] sm:$0xf]
      %v1517 = vld [vmem:[%s1515 + $0x4] sm:$0xf]
      %v1518 = vld [vmem:[%s1515 + $0x8] sm:$0xf]
      %v1519 = vld [vmem:[%s1515 + $0xc] sm:$0xf]
      %v1520 = vld [vmem:[%s1515 + $0x10] sm:$0xf]
      %v1521 = vld [vmem:[%s1515 + $0x14] sm:$0xf]
      %v1522 = vld [vmem:[%s1515 + $0x18] sm:$0xf]
      %v1523 = vld [vmem:[%s1515 + $0x1c] sm:$0xf]
      %v1524 = vld [vmem:[%s1515 + $0x20] sm:$0xf]
      %v1525 = vld [vmem:[%s1515 + $0x24] sm:$0xf]
      %v1526 = vld [vmem:[%s1515 + $0x28] sm:$0xf]
      %v1527 = vld [vmem:[%s1515 + $0x2c] sm:$0xf]
      %v1528 = vld [vmem:[%s1515 + $0x30] sm:$0xf]
      %v1529 = vld [vmem:[%s1515 + $0x34] sm:$0xf]
      %v1530 = vld [vmem:[%s1515 + $0x38] sm:$0xf]
      %v1531 = vld [vmem:[%s1515 + $0x3c] sm:$0xf]
      %v1532 = vld [vmem:[%s1515 + $0x40] sm:$0xf]
      %v1533 = vld [vmem:[%s1515 + $0x44] sm:$0xf]
      %v1534 = vld [vmem:[%s1515 + $0x48] sm:$0xf]
      %v1535 = vld [vmem:[%s1515 + $0x4c] sm:$0xf]
      %v1536 = vld [vmem:[%s1515 + $0x50] sm:$0xf]
      %v1537 = vld [vmem:[%s1515 + $0x54] sm:$0xf]
      %v1538 = vld [vmem:[%s1515 + $0x58] sm:$0xf]
      %v1539 = vld [vmem:[%s1515 + $0x5c] sm:$0xf]
      %v1564 = vunpack.c.l.b16 %v1516
      %v1565 = vunpack.c.l.b16 %v1517
      %v1566 = vunpack.c.l.b16 %v1518
      %v1567 = vunpack.c.l.b16 %v1519
      %v1568 = vunpack.c.l.b16 %v1520
      %v1569 = vunpack.c.l.b16 %v1521
      %v1570 = vunpack.c.l.b16 %v1522
      %v1571 = vunpack.c.l.b16 %v1523
      %v1572 = vunpack.c.l.b16 %v1524
      %v1573 = vunpack.c.l.b16 %v1525
      %v1574 = vunpack.c.l.b16 %v1526
      %v1575 = vunpack.c.l.b16 %v1527
      %v1576 = vunpack.c.l.b16 %v1528
      %v1577 = vunpack.c.l.b16 %v1529
      %v1578 = vunpack.c.l.b16 %v1530
      %v1579 = vunpack.c.l.b16 %v1531
      %v1580 = vunpack.c.l.b16 %v1532
      %v1581 = vunpack.c.l.b16 %v1533
      %v1582 = vunpack.c.l.b16 %v1534
      %v1583 = vunpack.c.l.b16 %v1535
      %v1584 = vunpack.c.l.b16 %v1536
      %v1585 = vunpack.c.l.b16 %v1537
      %v1586 = vunpack.c.l.b16 %v1538
      %v1587 = vunpack.c.l.b16 %v1539
      %v1588 = vpack.c.b16 %v1565, %v1564
      %v1589 = vpack.c.b16 %v1567, %v1566
      %v1590 = vpack.c.b16 %v1569, %v1568
      %v1591 = vpack.c.b16 %v1571, %v1570
      %v1592 = vpack.c.b16 %v1573, %v1572
      %v1593 = vpack.c.b16 %v1575, %v1574
      %v1594 = vpack.c.b16 %v1577, %v1576
      %v1595 = vpack.c.b16 %v1579, %v1578
      %v1596 = vpack.c.b16 %v1581, %v1580
      %v1597 = vpack.c.b16 %v1583, %v1582
      %v1598 = vpack.c.b16 %v1585, %v1584
      %v1599 = vpack.c.b16 %v1587, %v1586
      %v1613 = vsel %vm842, %v805, 0
      %1615 = vmatpush.bf16.msra.mxu0 %v1595
      %1616 = vmatpush.bf16.msra.mxu0 %v1594
      %1617 = vmatpush.bf16.msra.mxu0 %v1593
      %1618 = vmatpush.bf16.msra.mxu0 %v1592
      %1619 = vmatpush.bf16.msra.mxu0 %v1591
      %1620 = vmatpush.bf16.msra.mxu0 %v1590
      %1621 = vmatpush.bf16.msra.mxu0 %v1589
      %1622 = vmatpush.bf16.msra.mxu0 %v1588
      %1623 = vmatmul.bf16.gmra.mxu0 %v853
      %v1624 = vpop.f32.mrf.mxu0
      %v1625 = vadd.f32 0.0, %v1624
      %v1626 = vpop.f32.mrf.mxu0
      %v1627 = vadd.f32 0.0, %v1626
      %1628 = vmatmul.bf16.gmra.mxu0 %v857
      %v1629 = vpop.f32.mrf.mxu0
      %v1630 = vadd.f32 0.0, %v1629
      %v1631 = vpop.f32.mrf.mxu0
      %v1632 = vadd.f32 0.0, %v1631
      %1633 = vmatmul.bf16.gmra.mxu0 %v861
      %v1634 = vpop.f32.mrf.mxu0
      %v1635 = vadd.f32 0.0, %v1634
      %v1636 = vpop.f32.mrf.mxu0
      %v1637 = vadd.f32 0.0, %v1636
      %1638 = vmatmul.bf16.gmra.mxu0 %v865
      %v1639 = vpop.f32.mrf.mxu0
      %v1640 = vadd.f32 0.0, %v1639
      %v1641 = vpop.f32.mrf.mxu0
      %v1642 = vadd.f32 0.0, %v1641
      %1643 = vmatmul.bf16.gmra.mxu0 %v869
      %v1644 = vpop.f32.mrf.mxu0
      %v1645 = vadd.f32 0.0, %v1644
      %v1646 = vpop.f32.mrf.mxu0
      %v1647 = vadd.f32 0.0, %v1646
      %1648 = vmatmul.bf16.gmra.mxu0 %v873
      %v1649 = vpop.f32.mrf.mxu0
      %v1650 = vadd.f32 0.0, %v1649
      %v1651 = vpop.f32.mrf.mxu0
      %v1652 = vadd.f32 0.0, %v1651
      %1653 = vmatmul.bf16.gmra.mxu0 %v877
      %v1654 = vpop.f32.mrf.mxu0
      %v1655 = vadd.f32 0.0, %v1654
      %v1656 = vpop.f32.mrf.mxu0
      %v1657 = vadd.f32 0.0, %v1656
      %1658 = vmatmul.bf16.gmra.mxu0 %v881
      %v1659 = vpop.f32.mrf.mxu0
      %v1660 = vadd.f32 0.0, %v1659
      %v1661 = vpop.f32.mrf.mxu0
      %v1662 = vadd.f32 0.0, %v1661
      %1663 = vmatmul.bf16.gmra.mxu0 %v885
      %v1664 = vpop.f32.mrf.mxu0
      %v1665 = vadd.f32 0.0, %v1664
      %v1666 = vpop.f32.mrf.mxu0
      %v1667 = vadd.f32 0.0, %v1666
      %1668 = vmatmul.bf16.gmra.mxu0 %v889
      %v1669 = vpop.f32.mrf.mxu0
      %v1670 = vadd.f32 0.0, %v1669
      %v1671 = vpop.f32.mrf.mxu0
      %v1672 = vadd.f32 0.0, %v1671
      %1673 = vmatmul.bf16.gmra.mxu0 %v893
      %v1674 = vpop.f32.mrf.mxu0
      %v1675 = vadd.f32 0.0, %v1674
      %v1676 = vpop.f32.mrf.mxu0
      %v1677 = vadd.f32 0.0, %v1676
      %1678 = vmatmul.bf16.gmra.mxu0 %v897
      %v1679 = vpop.f32.mrf.mxu0
      %v1680 = vadd.f32 0.0, %v1679
      %v1681 = vpop.f32.mrf.mxu0
      %v1682 = vadd.f32 0.0, %v1681
      %1683 = vmatmul.bf16.gmra.mxu0 %v901
      %v1684 = vpop.f32.mrf.mxu0
      %v1685 = vadd.f32 0.0, %v1684
      %v1686 = vpop.f32.mrf.mxu0
      %v1687 = vadd.f32 0.0, %v1686
      %1688 = vmatmul.bf16.gmra.mxu0 %v905
      %v1689 = vpop.f32.mrf.mxu0
      %v1690 = vadd.f32 0.0, %v1689
      %v1691 = vpop.f32.mrf.mxu0
      %v1692 = vadd.f32 0.0, %v1691
      %1693 = vmatmul.bf16.gmra.mxu0 %v909
      %v1694 = vpop.f32.mrf.mxu0
      %v1695 = vadd.f32 0.0, %v1694
      %v1696 = vpop.f32.mrf.mxu0
      %v1697 = vadd.f32 0.0, %v1696
      %1698 = vmatmul.bf16.gmra.mxu0 %v913
      %v1699 = vpop.f32.mrf.mxu0
      %v1700 = vadd.f32 0.0, %v1699
      %v1701 = vpop.f32.mrf.mxu0
      %v1702 = vadd.f32 0.0, %v1701
      %1703 = vdwg.mxu0
      %1704 = vmatpush.bf16.msra.mxu0 0
      %1705 = vmatpush.bf16.msra.mxu0 0
      %1706 = vmatpush.bf16.msra.mxu0 0
      %1707 = vmatpush.bf16.msra.mxu0 0
      %1708 = vmatpush.bf16.msra.mxu0 %v1599
      %1709 = vmatpush.bf16.msra.mxu0 %v1598
      %1710 = vmatpush.bf16.msra.mxu0 %v1597
      %1711 = vmatpush.bf16.msra.mxu0 %v1596
      %1712 = vmatmul.bf16.gmra.mxu0 %v1040
      %v1713 = vpop.f32.mrf.mxu0
      %v1714 = vadd.f32 %v1625, %v1713
      %v1715 = vpop.f32.mrf.mxu0
      %v1716 = vadd.f32 %v1627, %v1715
      %1717 = vmatmul.bf16.gmra.mxu0 %v1043
      %v1718 = vpop.f32.mrf.mxu0
      %v1719 = vadd.f32 %v1630, %v1718
      %v1720 = vpop.f32.mrf.mxu0
      %v1721 = vadd.f32 %v1632, %v1720
      %1722 = vmatmul.bf16.gmra.mxu0 %v1046
      %v1723 = vpop.f32.mrf.mxu0
      %v1724 = vadd.f32 %v1635, %v1723
      %v1725 = vpop.f32.mrf.mxu0
      %v1726 = vadd.f32 %v1637, %v1725
      %1727 = vmatmul.bf16.gmra.mxu0 %v1049
      %v1728 = vpop.f32.mrf.mxu0
      %v1729 = vadd.f32 %v1640, %v1728
      %v1730 = vpop.f32.mrf.mxu0
      %v1731 = vadd.f32 %v1642, %v1730
      %1732 = vmatmul.bf16.gmra.mxu0 %v1052
      %v1733 = vpop.f32.mrf.mxu0
      %v1734 = vadd.f32 %v1645, %v1733
      %v1735 = vpop.f32.mrf.mxu0
      %v1736 = vadd.f32 %v1647, %v1735
      %1737 = vmatmul.bf16.gmra.mxu0 %v1055
      %v1738 = vpop.f32.mrf.mxu0
      %v1739 = vadd.f32 %v1650, %v1738
      %v1740 = vpop.f32.mrf.mxu0
      %v1741 = vadd.f32 %v1652, %v1740
      %1742 = vmatmul.bf16.gmra.mxu0 %v1058
      %v1743 = vpop.f32.mrf.mxu0
      %v1744 = vadd.f32 %v1655, %v1743
      %v1745 = vpop.f32.mrf.mxu0
      %v1746 = vadd.f32 %v1657, %v1745
      %1747 = vmatmul.bf16.gmra.mxu0 %v1061
      %v1748 = vpop.f32.mrf.mxu0
      %v1749 = vadd.f32 %v1660, %v1748
      %v1750 = vpop.f32.mrf.mxu0
      %v1751 = vadd.f32 %v1662, %v1750
      %1752 = vmatmul.bf16.gmra.mxu0 %v1064
      %v1753 = vpop.f32.mrf.mxu0
      %v1754 = vadd.f32 %v1665, %v1753
      %v1755 = vpop.f32.mrf.mxu0
      %v1756 = vadd.f32 %v1667, %v1755
      %1757 = vmatmul.bf16.gmra.mxu0 %v1067
      %v1758 = vpop.f32.mrf.mxu0
      %v1759 = vadd.f32 %v1670, %v1758
      %v1760 = vpop.f32.mrf.mxu0
      %v1761 = vadd.f32 %v1672, %v1760
      %1762 = vmatmul.bf16.gmra.mxu0 %v1070
      %v1763 = vpop.f32.mrf.mxu0
      %v1764 = vadd.f32 %v1675, %v1763
      %v1765 = vpop.f32.mrf.mxu0
      %v1766 = vadd.f32 %v1677, %v1765
      %1767 = vmatmul.bf16.gmra.mxu0 %v1073
      %v1768 = vpop.f32.mrf.mxu0
      %v1769 = vadd.f32 %v1680, %v1768
      %v1770 = vpop.f32.mrf.mxu0
      %v1771 = vadd.f32 %v1682, %v1770
      %1772 = vmatmul.bf16.gmra.mxu0 %v1076
      %v1773 = vpop.f32.mrf.mxu0
      %v1774 = vadd.f32 %v1685, %v1773
      %v1775 = vpop.f32.mrf.mxu0
      %v1776 = vadd.f32 %v1687, %v1775
      %1777 = vmatmul.bf16.gmra.mxu0 %v1079
      %v1778 = vpop.f32.mrf.mxu0
      %v1779 = vadd.f32 %v1690, %v1778
      %v1780 = vpop.f32.mrf.mxu0
      %v1781 = vadd.f32 %v1692, %v1780
      %1782 = vmatmul.bf16.gmra.mxu0 %v1082
      %v1783 = vpop.f32.mrf.mxu0
      %v1784 = vadd.f32 %v1695, %v1783
      %v1785 = vpop.f32.mrf.mxu0
      %v1786 = vadd.f32 %v1697, %v1785
      %1787 = vmatmul.bf16.gmra.mxu0 %v1613
      %v1788 = vpop.f32.mrf.mxu0
      %v1789 = vadd.f32 %v1700, %v1788
      %v1790 = vpop.f32.mrf.mxu0
      %v1791 = vadd.f32 %v1702, %v1790
      %1792 = vdwg.mxu0
      %v1793 = vadd.f32 %v1436, %v1714
      %v1794 = vadd.f32 %v1438, %v1716
      %v1795 = vadd.f32 %v1441, %v1719
      %v1796 = vadd.f32 %v1443, %v1721
      %v1797 = vadd.f32 %v1446, %v1724
      %v1798 = vadd.f32 %v1448, %v1726
      %v1799 = vadd.f32 %v1451, %v1729
      %v1800 = vadd.f32 %v1453, %v1731
      %v1801 = vadd.f32 %v1456, %v1734
      %v1802 = vadd.f32 %v1458, %v1736
      %v1803 = vadd.f32 %v1461, %v1739
      %v1804 = vadd.f32 %v1463, %v1741
      %v1805 = vadd.f32 %v1466, %v1744
      %v1806 = vadd.f32 %v1468, %v1746
      %v1807 = vadd.f32 %v1471, %v1749
      %v1808 = vadd.f32 %v1473, %v1751
      %v1809 = vadd.f32 %v1476, %v1754
      %v1810 = vadd.f32 %v1478, %v1756
      %v1811 = vadd.f32 %v1481, %v1759
      %v1812 = vadd.f32 %v1483, %v1761
      %v1813 = vadd.f32 %v1486, %v1764
      %v1814 = vadd.f32 %v1488, %v1766
      %v1815 = vadd.f32 %v1491, %v1769
      %v1816 = vadd.f32 %v1493, %v1771
      %v1817 = vadd.f32 %v1496, %v1774
      %v1818 = vadd.f32 %v1498, %v1776
      %v1819 = vadd.f32 %v1501, %v1779
      %v1820 = vadd.f32 %v1503, %v1781
      %v1821 = vadd.f32 %v1506, %v1784
      %v1822 = vadd.f32 %v1508, %v1786
      %v1823 = vadd.f32 %v1511, %v1789
      %v1824 = vadd.f32 %v1513, %v1791
      %v1825 = vld [vmem:[%s4] sm:$0x1]
      %v1827 = vperm.slane %v1825, 0
      %v1829 = vadd.f32 %v1793, %v1827
      %v1830 = vadd.f32 %v1794, %v1827
      %v1831 = vadd.f32 %v1795, %v1827
      %v1832 = vadd.f32 %v1796, %v1827
      %v1833 = vadd.f32 %v1797, %v1827
      %v1834 = vadd.f32 %v1798, %v1827
      %v1835 = vadd.f32 %v1799, %v1827
      %v1836 = vadd.f32 %v1800, %v1827
      %v1837 = vadd.f32 %v1801, %v1827
      %v1838 = vadd.f32 %v1802, %v1827
      %v1839 = vadd.f32 %v1803, %v1827
      %v1840 = vadd.f32 %v1804, %v1827
      %v1841 = vadd.f32 %v1805, %v1827
      %v1842 = vadd.f32 %v1806, %v1827
      %v1843 = vadd.f32 %v1807, %v1827
      %v1844 = vadd.f32 %v1808, %v1827
      %v1845 = vadd.f32 %v1809, %v1827
      %v1846 = vadd.f32 %v1810, %v1827
      %v1847 = vadd.f32 %v1811, %v1827
      %v1848 = vadd.f32 %v1812, %v1827
      %v1849 = vadd.f32 %v1813, %v1827
      %v1850 = vadd.f32 %v1814, %v1827
      %v1851 = vadd.f32 %v1815, %v1827
      %v1852 = vadd.f32 %v1816, %v1827
      %v1853 = vadd.f32 %v1817, %v1827
      %v1854 = vadd.f32 %v1818, %v1827
      %v1855 = vadd.f32 %v1819, %v1827
      %v1856 = vadd.f32 %v1820, %v1827
      %v1857 = vadd.f32 %v1821, %v1827
      %v1858 = vadd.f32 %v1822, %v1827
      %v1859 = vadd.f32 %v1823, %v1827
      %v1860 = vadd.f32 %v1824, %v1827
      %v1861 = vmax.f32 %v1829, 0.0
      %v1862 = vmax.f32 %v1830, 0.0
      %v1863 = vmax.f32 %v1831, 0.0
      %v1864 = vmax.f32 %v1832, 0.0
      %v1865 = vmax.f32 %v1833, 0.0
      %v1866 = vmax.f32 %v1834, 0.0
      %v1867 = vmax.f32 %v1835, 0.0
      %v1868 = vmax.f32 %v1836, 0.0
      %v1869 = vmax.f32 %v1837, 0.0
      %v1870 = vmax.f32 %v1838, 0.0
      %v1871 = vmax.f32 %v1839, 0.0
      %v1872 = vmax.f32 %v1840, 0.0
      %v1873 = vmax.f32 %v1841, 0.0
      %v1874 = vmax.f32 %v1842, 0.0
      %v1875 = vmax.f32 %v1843, 0.0
      %v1876 = vmax.f32 %v1844, 0.0
      %v1877 = vmax.f32 %v1845, 0.0
      %v1878 = vmax.f32 %v1846, 0.0
      %v1879 = vmax.f32 %v1847, 0.0
      %v1880 = vmax.f32 %v1848, 0.0
      %v1881 = vmax.f32 %v1849, 0.0
      %v1882 = vmax.f32 %v1850, 0.0
      %v1883 = vmax.f32 %v1851, 0.0
      %v1884 = vmax.f32 %v1852, 0.0
      %v1885 = vmax.f32 %v1853, 0.0
      %v1886 = vmax.f32 %v1854, 0.0
      %v1887 = vmax.f32 %v1855, 0.0
      %v1888 = vmax.f32 %v1856, 0.0
      %v1889 = vmax.f32 %v1857, 0.0
      %v1890 = vmax.f32 %v1858, 0.0
      %v1891 = vmax.f32 %v1859, 0.0
      %v1892 = vmax.f32 %v1860, 0.0
      %v1893 = vmax.f32 %v1861, %v1863
      %v1894 = vmax.f32 %v1862, %v1864
      %v1895 = vmax.f32 %v1865, %v1867
      %v1896 = vmax.f32 %v1866, %v1868
      %v1897 = vmax.f32 %v1869, %v1871
      %v1898 = vmax.f32 %v1870, %v1872
      %v1899 = vmax.f32 %v1873, %v1875
      %v1900 = vmax.f32 %v1874, %v1876
      %v1901 = vmax.f32 %v1877, %v1879
      %v1902 = vmax.f32 %v1878, %v1880
      %v1903 = vmax.f32 %v1881, %v1883
      %v1904 = vmax.f32 %v1882, %v1884
      %v1905 = vmax.f32 %v1885, %v1887
      %v1906 = vmax.f32 %v1886, %v1888
      %v1907 = vmax.f32 %v1889, %v1891
      %v1908 = vmax.f32 %v1890, %v1892
      %1909 = vst.msk [vmem:[#allocation2] sm:$0xff] %vm842, %v1893
      %1910 = vst.msk [vmem:[#allocation2 + $0x8] sm:$0xff] %vm842, %v1894
      %1911 = vst.msk [vmem:[#allocation2 + $0x10] sm:$0xff] %vm842, %v1895
      %1912 = vst.msk [vmem:[#allocation2 + $0x18] sm:$0xff] %vm842, %v1896
      %1913 = vst.msk [vmem:[#allocation2 + $0x20] sm:$0xff] %vm842, %v1897
      %1914 = vst.msk [vmem:[#allocation2 + $0x28] sm:$0xff] %vm842, %v1898
      %1915 = vst.msk [vmem:[#allocation2 + $0x30] sm:$0xff] %vm842, %v1899
      %1916 = vst.msk [vmem:[#allocation2 + $0x38] sm:$0xff] %vm842, %v1900
      %1917 = vst.msk [vmem:[#allocation2 + $0x40] sm:$0xff] %vm842, %v1901
      %1918 = vst.msk [vmem:[#allocation2 + $0x48] sm:$0xff] %vm842, %v1902
      %1919 = vst.msk [vmem:[#allocation2 + $0x50] sm:$0xff] %vm842, %v1903
      %1920 = vst.msk [vmem:[#allocation2 + $0x58] sm:$0xff] %vm842, %v1904
      %1921 = vst.msk [vmem:[#allocation2 + $0x60] sm:$0xff] %vm842, %v1905
      %1922 = vst.msk [vmem:[#allocation2 + $0x68] sm:$0xff] %vm842, %v1906
      %1923 = vst.msk [vmem:[#allocation2 + $0x70] sm:$0xff] %vm842, %v1907
      %1924 = vst.msk [vmem:[#allocation2 + $0x78] sm:$0xff] %vm842, %v1908
      %v1925 = vld [vmem:[#allocation2] ss:$2 sm:$0xff]
      %s1926 = scalar_lea.vmem [#allocation2], 16
      %v1927 = vld [vmem:[%s1926] ss:$2 sm:$0xff]
      %s1928 = scalar_lea.vmem [#allocation2], 32
      %v1929 = vld [vmem:[%s1928] ss:$2 sm:$0xff]
      %s1930 = scalar_lea.vmem [#allocation2], 48
      %v1931 = vld [vmem:[%s1930] ss:$2 sm:$0xff]
      %s1932 = scalar_lea.vmem [#allocation2], 64
      %v1933 = vld [vmem:[%s1932] ss:$2 sm:$0xff]
      %s1934 = scalar_lea.vmem [#allocation2], 80
      %v1935 = vld [vmem:[%s1934] ss:$2 sm:$0xff]
      %s1936 = scalar_lea.vmem [#allocation2], 96
      %v1937 = vld [vmem:[%s1936] ss:$2 sm:$0xff]
      %s1938 = scalar_lea.vmem [#allocation2], 112
      %v1939 = vld [vmem:[%s1938] ss:$2 sm:$0xff]
      %s1940 = scalar_lea.vmem [#allocation2], 1
      %v1941 = vld [vmem:[%s1940] ss:$2 sm:$0xff]
      %s1942 = scalar_lea.vmem [#allocation2], 17
      %v1943 = vld [vmem:[%s1942] ss:$2 sm:$0xff]
      %s1944 = scalar_lea.vmem [#allocation2], 33
      %v1945 = vld [vmem:[%s1944] ss:$2 sm:$0xff]
      %s1946 = scalar_lea.vmem [#allocation2], 49
      %v1947 = vld [vmem:[%s1946] ss:$2 sm:$0xff]
      %s1948 = scalar_lea.vmem [#allocation2], 65
      %v1949 = vld [vmem:[%s1948] ss:$2 sm:$0xff]
      %s1950 = scalar_lea.vmem [#allocation2], 81
      %v1951 = vld [vmem:[%s1950] ss:$2 sm:$0xff]
      %s1952 = scalar_lea.vmem [#allocation2], 97
      %v1953 = vld [vmem:[%s1952] ss:$2 sm:$0xff]
      %s1954 = scalar_lea.vmem [#allocation2], 113
      %v1955 = vld [vmem:[%s1954] ss:$2 sm:$0xff]
      %v1956 = vmax.f32 %v1925, %v1941
      %v1957 = vmax.f32 %v1927, %v1943
      %v1958 = vmax.f32 %v1929, %v1945
      %v1959 = vmax.f32 %v1931, %v1947
      %v1960 = vmax.f32 %v1933, %v1949
      %v1961 = vmax.f32 %v1935, %v1951
      %v1962 = vmax.f32 %v1937, %v1953
      %v1963 = vmax.f32 %v1939, %v1955
      %v1964 = vpack.c.bf16 %v1956, %v1956
      %v1965 = vpack.c.bf16 %v1957, %v1957
      %v1966 = vpack.c.bf16 %v1958, %v1958
      %v1967 = vpack.c.bf16 %v1959, %v1959
      %v1968 = vpack.c.bf16 %v1960, %v1960
      %v1969 = vpack.c.bf16 %v1961, %v1961
      %v1970 = vpack.c.bf16 %v1962, %v1962
      %v1971 = vpack.c.bf16 %v1963, %v1963
      %vm1972 = vcmask 519168
      %1973 = vst.msk [vmem:[%s389] sm:$0xf] %vm1972, %v1964
      %1974 = vst.msk [vmem:[%s389 + $0x4] sm:$0xf] %vm1972, %v1965
      %1975 = vst.msk [vmem:[%s389 + $0x8] sm:$0xf] %vm1972, %v1966
      %1976 = vst.msk [vmem:[%s389 + $0xc] sm:$0xf] %vm1972, %v1967
      %1977 = vst.msk [vmem:[%s389 + $0x10] sm:$0xf] %vm1972, %v1968
      %1978 = vst.msk [vmem:[%s389 + $0x14] sm:$0xf] %vm1972, %v1969
      %1979 = vst.msk [vmem:[%s389 + $0x18] sm:$0xf] %vm1972, %v1970
      %1980 = vst.msk [vmem:[%s389 + $0x1c] sm:$0xf] %vm1972, %v1971
      %s1981 = smul.u32 8, %s21
      %p1982 = scmp.lt.s32.totalorder %s20, 1
      %s1983 = scalar_select %p1982, %s20, 1
      %p1984 = scmp.lt.s32.totalorder %s1981, 7
      %s1985 = scalar_select %p1984, %s1981, 7
      %s1986 = smul.addr %s1983, 8
      %s1987 = sadd.s32 %s1985, %s1986
      %s1988 = smul.addr %s1987, 4
      %s1989 = scalar_lea.vmem %s5, %s1988
      // Predicated region
      $region41: #{netf_forward.5} parent=39 // pred_check
        %p1990 = pneg %p190
      $region42: #{netf_forward.5} parent=39 // pred_check_branch
        %1992 = sbr.rel (%p1990) target = $region44
      $region43: #{netf_forward.5} parent=39 // pred_region
        %s1993 = smul.u32 8, %s21
      $region44: #{netf_forward.5} parent=39 // pred_fallthru
        _
    $region40: #{netf_forward.5} parent=5 // pred_fallthru
      _
    %p1994 = scmp.le.s32.totalorder 2, %s11
    // Predicated region
    $region45: #{netf_forward.5} parent=5 // pred_check
      %p1995 = pneg %p1994
    $region46: #{netf_forward.5} parent=5 // pred_check_branch
      %1997 = sbr.rel (%p1995) target = $region48
    $region47: #{netf_forward.5} parent=5 // pred_region
      %s1998 = ssub.s32 %s11, 2
      // Predicated region
      $region49: #{netf_forward.5} parent=47 // pred_check
        %p1999 = pneg %p196
      $region50: #{netf_forward.5} parent=47 // pred_check_branch
        %2001 = sbr.rel (%p1999) target = $region52
      $region51: #{netf_forward.5} parent=47 // pred_region
        %s2002 = smul.u32 8, %s23
        %p2003 = scmp.lt.s32.totalorder %s22, 1
        %s2004 = scalar_select %p2003, %s22, 1
        %p2005 = scmp.lt.s32.totalorder %s2002, 7
        %s2006 = scalar_select %p2005, %s2002, 7
        %s2007 = smul.addr %s2004, 8
        %s2008 = sadd.s32 %s2006, %s2007
        %s2009 = smul.addr %s2008, 4
        %s2010 = scalar_lea.vmem %s5, %s2009
      $region52: #{netf_forward.5} parent=47 // pred_fallthru
        _
    $region48: #{netf_forward.5} parent=5 // pred_fallthru
      _
  $region6: #{netf_forward.5} parent=0 // loop_footer
    %s15 = sadd.s32 1, %s11
  $region7: #{netf_forward.5} parent=0 // loop_footer_branch
    %10 = sbr.rel target = $region3
  $region8: #{netf_forward.5} parent=0 // loop_exit
    _

</llo_original>
